<compile_context>
chip_gen: v5e
topology: v5e:2x2
jax: 0.10.0
libtpu: 0.0.40
codegen_flags: <defaults>
</compile_context>

<pallas_src>
import functools

import jax
import jax.numpy as jnp
from jax.experimental import pallas as pl
from jax.experimental.pallas import tpu as pltpu

_EPS = 1e-5  # torch.nn.LayerNorm default


def _gelu_exact(x, *, approx_recip=False):
    # Exact (erf-based) GELU matching PyTorch nn.GELU() default.
    # erf via Abramowitz-Stegun 7.1.26 polynomial (max abs err 1.5e-7).
    z = x * 0.7071067811865476
    a = jnp.abs(z)
    denom = 1.0 + 0.3275911 * a
    if approx_recip:
        t = pl.reciprocal(denom, approx=True)
    else:
        t = 1.0 / denom
    poly = t * (0.254829592 + t * (-0.284496736 + t * (1.421413741 +
              t * (-1.453152027 + t * 1.061405429))))
    erf_abs = 1.0 - poly * jnp.exp(-a * a)
    erf = jnp.where(z >= 0.0, erf_abs, -erf_abs)
    return 0.5 * x * (1.0 + erf)


def _layernorm(x, gamma, beta):
    mu = jnp.mean(x, axis=-1, keepdims=True)
    var = jnp.mean(jnp.square(x - mu), axis=-1, keepdims=True)
    return (x - mu) * jax.lax.rsqrt(var + _EPS) * gamma + beta


# --------------------------------------------------------------------------
# Fused kernel: all layers (attention + feed-forward) for one batch element.
# grid = (B, depth); depth is the inner (fastest) axis so the layer carry in
# x_carry is valid per batch element.
# --------------------------------------------------------------------------
def _transformer_kernel(x_ref, ln1g_ref, ln1b_ref, wqkv_ref, wo_ref, bo_ref,
                        ln2g_ref, ln2b_ref, w1_ref, b1_ref, w2_ref, b2_ref,
                        o_ref, attn_ref,
                        x_carry, qkv_scr, ohead_scr,
                        *, heads, dim_head, depth, scale):
    bf16, f32 = jnp.bfloat16, jnp.float32
    inner = heads * dim_head
    l = pl.program_id(1)                                   # layer index

    @pl.when(l == 0)
    def _():
        x_carry[...] = x_ref[0]                            # (S, D) f32

    x = x_carry[...]

    # ---------------- PreNorm(Attention) + residual ----------------
    xn = _layernorm(x, ln1g_ref[l], ln1b_ref[l])
    qkv = jnp.dot(xn.astype(bf16), wqkv_ref[l],
                  preferred_element_type=f32)              # (S, 3*inner) f32
    # Stage qkv in bf16 scratch; fold the softmax scale into q while staging.
    qkv_scr[:, :inner] = (qkv[:, :inner] * scale).astype(bf16)
    qkv_scr[:, inner:] = qkv[:, inner:].astype(bf16)

    for h in range(heads):                                 # static unroll
        lo = h * dim_head
        q = qkv_scr[:, lo:lo + dim_head]                   # bf16, pre-scaled
        k = qkv_scr[:, inner + lo:inner + lo + dim_head]   # bf16
        v = qkv_scr[:, 2 * inner + lo:2 * inner + lo + dim_head]
        # q @ k^T without materializing the transpose; f32 accumulation.
        dots = jax.lax.dot_general(
            q, k, dimension_numbers=(((1,), (1,)), ((), ())),
            preferred_element_type=f32)                    # (S, S) f32
        m = jnp.max(dots, axis=-1, keepdims=True)
        p = jnp.exp(dots - m)
        attn = p * pl.reciprocal(jnp.sum(p, axis=-1, keepdims=True),
                                 approx=True)              # f32 softmax

        # Only the last layer's attention map is materialized to HBM.
        @pl.when(l == depth - 1)
        def _(attn=attn, h=h):
            attn_ref[0, h, :, :] = attn

        o_h = jnp.dot(attn.astype(bf16), v,
                      preferred_element_type=f32)          # (S, dh) f32
        ohead_scr[:, lo:lo + dim_head] = o_h.astype(bf16)

    # Single K = inner (=128) out-projection instead of 4 K=32 matmuls.
    proj = jnp.dot(ohead_scr[...], wo_ref[l], preferred_element_type=f32)
    x = proj + bo_ref[l] + x                               # residual 1 (f32)

    # ---------------- PreNorm(FeedForward) + residual ----------------
    xn2 = _layernorm(x, ln2g_ref[l], ln2b_ref[l])
    h1 = jnp.dot(xn2.astype(bf16), w1_ref[l],
                 preferred_element_type=f32) + b1_ref[l]   # (S, Dh) f32
    h1 = _gelu_exact(h1, approx_recip=True)
    y = jnp.dot(h1.astype(bf16), w2_ref[l],
                preferred_element_type=f32) + b2_ref[l]    # (S, D) f32
    x = y + x                                              # residual 2

    @pl.when(l < depth - 1)
    def _():
        x_carry[...] = x                                   # carry to next layer

    @pl.when(l == depth - 1)
    def _():
        o_ref[0] = x.astype(o_ref.dtype)


# --------------------------------------------------------------------------
# Wrapper: one pallas_call for the full Transformer forward
# --------------------------------------------------------------------------
def transformer_forward(x, params, *, heads, dim_head):
    B, S, D = x.shape
    depth = params["wqkv"].shape[0]
    inner = heads * dim_head
    Dh = params["w1"].shape[-1]
    scale = float(dim_head) ** -0.5

    # Small per-layer vectors reshaped to (depth, 1, N) for broadcast-friendly
    # dynamic layer indexing inside the kernel.
    ln1_g = params["ln1_g"].reshape(depth, 1, D)
    ln1_b = params["ln1_b"].reshape(depth, 1, D)
    bo = params["bo"].reshape(depth, 1, D)
    ln2_g = params["ln2_g"].reshape(depth, 1, D)
    ln2_b = params["ln2_b"].reshape(depth, 1, D)
    b1 = params["b1"].reshape(depth, 1, Dh)
    b2 = params["b2"].reshape(depth, 1, D)

    cost = pl.CostEstimate(
        flops=int(2 * B * depth * (S * D * 3 * inner
                                   + 2 * heads * S * S * dim_head
                                   + S * inner * D
                                   + 2 * S * D * Dh)),
        transcendentals=int(B * depth * (heads * S * S + S * Dh)),
        bytes_accessed=int(4 * (2 * B * S * D + B * heads * S * S)
                           + 2 * depth * (D * 3 * inner + inner * D
                                          + 2 * D * Dh)))

    kernel = functools.partial(_transformer_kernel, heads=heads,
                               dim_head=dim_head, depth=depth, scale=scale)
    const2 = lambda b, l: (0, 0, 0)

    out, attn = pl.pallas_call(
        kernel,
        out_shape=(jax.ShapeDtypeStruct((B, S, D), x.dtype),
                   jax.ShapeDtypeStruct((B, heads, S, S), jnp.float32)),
        grid_spec=pltpu.PrefetchScalarGridSpec(
            num_scalar_prefetch=0,
            grid=(B, depth),
            in_specs=[
                pl.BlockSpec((1, S, D), lambda b, l: (b, 0, 0)),       # x
                pl.BlockSpec((depth, 1, D), const2),                   # ln1 g
                pl.BlockSpec((depth, 1, D), const2),                   # ln1 b
                pl.BlockSpec((depth, D, 3 * inner), const2),           # Wqkv
                pl.BlockSpec((depth, inner, D), const2),               # Wo
                pl.BlockSpec((depth, 1, D), const2),                   # bo
                pl.BlockSpec((depth, 1, D), const2),                   # ln2 g
                pl.BlockSpec((depth, 1, D), const2),                   # ln2 b
                pl.BlockSpec((depth, D, Dh), const2),                  # W1
                pl.BlockSpec((depth, 1, Dh), const2),                  # b1
                pl.BlockSpec((depth, Dh, D), const2),                  # W2
                pl.BlockSpec((depth, 1, D), const2),                   # b2
            ],
            out_specs=(
                pl.BlockSpec((1, S, D), lambda b, l: (b, 0, 0)),
                pl.BlockSpec((1, heads, S, S), lambda b, l: (b, 0, 0, 0)),
            ),
            scratch_shapes=[
                pltpu.VMEM((S, D), jnp.float32),          # x carry across layers
                pltpu.VMEM((S, 3 * inner), jnp.bfloat16), # staged qkv
                pltpu.VMEM((S, inner), jnp.bfloat16),     # per-head outputs
            ],
        ),
        compiler_params=pltpu.CompilerParams(
            dimension_semantics=("parallel", "arbitrary"),
            vmem_limit_bytes=16 * 1024 * 1024),
        cost_estimate=cost,
    )(x, ln1_g, ln1_b, params["wqkv"], params["wo"], bo,
      ln2_g, ln2_b, params["w1"], b1, params["w2"], b2)
    return out, attn


# --------------------------------------------------------------------------
# Pure-JAX reference (mirrors the bf16 matmul / f32 accumulate recipe)
# --------------------------------------------------------------------------
def reference_transformer(x, params, *, heads, dim_head):
    bf16, f32 = jnp.bfloat16, jnp.float32
    depth = params["wqkv"].shape[0]
    B, S, D = x.shape
    inner = heads * dim_head
    scale = float(dim_head) ** -0.5
    attn = None
    for i in range(depth):
        xn = _layernorm(x, params["ln1_g"][i], params["ln1_b"][i])
        qkv = jnp.dot(xn.astype(bf16), params["wqkv"][i],
                      preferred_element_type=f32)
        q, k, v = jnp.split(qkv, 3, axis=-1)
        q = q * scale                                       # scale folded into q
        split = lambda t: t.reshape(B, S, heads, dim_head).transpose(0, 2, 1, 3)
        q, k, v = split(q), split(k), split(v)
        dots = jnp.einsum("bhqd,bhkd->bhqk", q.astype(bf16), k.astype(bf16),
                          preferred_element_type=f32)
        attn = jax.nn.softmax(dots, axis=-1)
        o = jnp.einsum("bhqk,bhkd->bhqd", attn.astype(bf16), v.astype(bf16),
                       preferred_element_type=f32)
        o = o.transpose(0, 2, 1, 3).reshape(B, S, inner)
        proj = jnp.dot(o.astype(bf16), params["wo"][i],
                       preferred_element_type=f32) + params["bo"][i]
        x = proj + x
        xn2 = _layernorm(x, params["ln2_g"][i], params["ln2_b"][i])
        h = _gelu_exact(jnp.dot(xn2.astype(bf16), params["w1"][i],
                                preferred_element_type=f32) + params["b1"][i])
        y = jnp.dot(h.astype(bf16), params["w2"][i],
                    preferred_element_type=f32) + params["b2"][i]
        x = y + x
    return x, attn


def init_params(key, depth, D, heads, dim_head, mlp_dim):
    inner = heads * dim_head
    bf16 = jnp.bfloat16
    ks = jax.random.split(key, 11)
    return dict(
        ln1_g=1.0 + 0.1 * jax.random.normal(ks[0], (depth, D), jnp.float32),
        ln1_b=0.01 * jax.random.normal(ks[1], (depth, D), jnp.float32),
        # weights cast to bf16 ONCE here (MXU inputs); biases stay f32
        wqkv=(jax.random.normal(ks[2], (depth, D, 3 * inner), jnp.float32)
              / jnp.sqrt(D)).astype(bf16),
        wo=(jax.random.normal(ks[3], (depth, inner, D), jnp.float32)
            / jnp.sqrt(inner)).astype(bf16),
        bo=0.01 * jax.random.normal(ks[4], (depth, D), jnp.float32),
        ln2_g=1.0 + 0.1 * jax.random.normal(ks[5], (depth, D), jnp.float32),
        ln2_b=0.01 * jax.random.normal(ks[6], (depth, D), jnp.float32),
        w1=(jax.random.normal(ks[7], (depth, D, mlp_dim), jnp.float32)
            / jnp.sqrt(D)).astype(bf16),
        b1=0.01 * jax.random.normal(ks[8], (depth, mlp_dim), jnp.float32),
        w2=(jax.random.normal(ks[9], (depth, mlp_dim, D), jnp.float32)
            / jnp.sqrt(mlp_dim)).astype(bf16),
        b2=0.01 * jax.random.normal(ks[10], (depth, D), jnp.float32),
    )


if __name__ == "__main__":
    # Lane-dense, MXU-friendly config: dim multiple of 128, seq = 128,
    # batch = 4 -> grid = (4, depth): even parallel axis for 2-TC v7x.
    B, S, D = 4, 128, 128
    heads, dim_head = 4, 32
    mlp_dim = 256
    depth = 2

    key = jax.random.PRNGKey(0)
    kx, kp = jax.random.split(key)
    x = jax.random.normal(kx, (B, S, D), dtype=jnp.float32)
    params = init_params(kp, depth, D, heads, dim_head, mlp_dim)

    fwd = jax.jit(functools.partial(transformer_forward,
                                    heads=heads, dim_head=dim_head))
    out, attn = fwd(x, params)
    out = jax.block_until_ready(out)
    attn = jax.block_until_ready(attn)

    ref_out, ref_attn = reference_transformer(x, params,
                                              heads=heads, dim_head=dim_head)

    assert out.shape == (B, S, D) and out.dtype == x.dtype
    assert attn.shape == (B, heads, S, S)
    assert jnp.allclose(out, ref_out, atol=2e-2, rtol=2e-2)
    assert jnp.allclose(attn, ref_attn, atol=2e-2, rtol=2e-2)

    print("KERNEL_OK")
</pallas_src>

<mosaic_0001>
module attributes {stable_mosaic.version = 11 : i64} {
  func.func @_transformer_kernel(%arg0: i32, %arg1: i32, %arg2: memref<1x128x128xf32, #tpu.memory_space<vmem>>, %arg3: memref<2x1x128xf32, #tpu.memory_space<vmem>>, %arg4: memref<2x1x128xf32, #tpu.memory_space<vmem>>, %arg5: memref<2x128x384xbf16, #tpu.memory_space<vmem>>, %arg6: memref<2x128x128xbf16, #tpu.memory_space<vmem>>, %arg7: memref<2x1x128xf32, #tpu.memory_space<vmem>>, %arg8: memref<2x1x128xf32, #tpu.memory_space<vmem>>, %arg9: memref<2x1x128xf32, #tpu.memory_space<vmem>>, %arg10: memref<2x128x256xbf16, #tpu.memory_space<vmem>>, %arg11: memref<2x1x256xf32, #tpu.memory_space<vmem>>, %arg12: memref<2x256x128xbf16, #tpu.memory_space<vmem>>, %arg13: memref<2x1x128xf32, #tpu.memory_space<vmem>>, %arg14: memref<1x128x128xf32, #tpu.memory_space<vmem>>, %arg15: memref<1x4x128x128xf32, #tpu.memory_space<vmem>>, %arg16: memref<128x128xf32, #tpu.memory_space<vmem>>, %arg17: memref<128x384xbf16, #tpu.memory_space<vmem>>, %arg18: memref<128x128xbf16, #tpu.memory_space<vmem>>) attributes {dimension_semantics = [#tpu.dimension_semantics<parallel>, #tpu.dimension_semantics<arbitrary>], iteration_bounds = array<i64: 4, 2>, scalar_prefetch = 0 : i64, scratch_operands = 3 : i64, tpu.core_type = #tpu.core_type<tc>, window_params = [{transform_indices = @transform_0, window_bounds = array<i64: 1, 128, 128>}, {pipeline_mode = #tpu.pipeline_mode<synchronous>, transform_indices = @transform_1, window_bounds = array<i64: 2, 1, 128>}, {pipeline_mode = #tpu.pipeline_mode<synchronous>, transform_indices = @transform_2, window_bounds = array<i64: 2, 1, 128>}, {pipeline_mode = #tpu.pipeline_mode<synchronous>, transform_indices = @transform_3, window_bounds = array<i64: 2, 128, 384>}, {pipeline_mode = #tpu.pipeline_mode<synchronous>, transform_indices = @transform_4, window_bounds = array<i64: 2, 128, 128>}, {pipeline_mode = #tpu.pipeline_mode<synchronous>, transform_indices = @transform_5, window_bounds = array<i64: 2, 1, 128>}, {pipeline_mode = #tpu.pipeline_mode<synchronous>, transform_indices = @transform_6, window_bounds = array<i64: 2, 1, 128>}, {pipeline_mode = #tpu.pipeline_mode<synchronous>, transform_indices = @transform_7, window_bounds = array<i64: 2, 1, 128>}, {pipeline_mode = #tpu.pipeline_mode<synchronous>, transform_indices = @transform_8, window_bounds = array<i64: 2, 128, 256>}, {pipeline_mode = #tpu.pipeline_mode<synchronous>, transform_indices = @transform_9, window_bounds = array<i64: 2, 1, 256>}, {pipeline_mode = #tpu.pipeline_mode<synchronous>, transform_indices = @transform_10, window_bounds = array<i64: 2, 256, 128>}, {pipeline_mode = #tpu.pipeline_mode<synchronous>, transform_indices = @transform_11, window_bounds = array<i64: 2, 1, 128>}, {transform_indices = @transform_12, window_bounds = array<i64: 1, 128, 128>}, {transform_indices = @transform_13, window_bounds = array<i64: 1, 4, 128, 128>}]} {
    %c0_i32 = arith.constant 0 : i32
    %0 = arith.cmpi eq, %arg1, %c0_i32 : i32
    %1 = arith.extui %0 : i1 to i32
    %c0_i32_0 = arith.constant 0 : i32
    %2 = arith.cmpi ne, %1, %c0_i32_0 : i32
    scf.if %2 {
      %c0_106 = arith.constant 0 : index
      %c0_107 = arith.constant 0 : index
      %c0_108 = arith.constant 0 : index
      %234 = vector.load %arg2[%c0_106, %c0_107, %c0_108] : memref<1x128x128xf32, #tpu.memory_space<vmem>>, vector<1x128x128xf32>
      %235 = vector.shape_cast %234 : vector<1x128x128xf32> to vector<128x128xf32>
      %c0_109 = arith.constant 0 : index
      %c0_110 = arith.constant 0 : index
      %236 = vector.load %arg16[%c0_109, %c0_110] : memref<128x128xf32, #tpu.memory_space<vmem>>, vector<128x128xf32>
      tpu.vector_store %arg16[%c0_109, %c0_110], %235 {strides = array<i32>} : memref<128x128xf32, #tpu.memory_space<vmem>>, vector<128x128xf32>,
    } else {
    }
    %c0 = arith.constant 0 : index
    %c0_1 = arith.constant 0 : index
    %3 = vector.load %arg16[%c0, %c0_1] : memref<128x128xf32, #tpu.memory_space<vmem>>, vector<128x128xf32>
    %4 = arith.index_cast %arg1 : i32 to index
    %c0_2 = arith.constant 0 : index
    %c0_3 = arith.constant 0 : index
    %5 = vector.load %arg3[%4, %c0_2, %c0_3] : memref<2x1x128xf32, #tpu.memory_space<vmem>>, vector<1x1x128xf32>
    %6 = vector.shape_cast %5 : vector<1x1x128xf32> to vector<1x128xf32>
    %7 = arith.index_cast %arg1 : i32 to index
    %c0_4 = arith.constant 0 : index
    %c0_5 = arith.constant 0 : index
    %8 = vector.load %arg4[%7, %c0_4, %c0_5] : memref<2x1x128xf32, #tpu.memory_space<vmem>>, vector<1x1x128xf32>
    %9 = vector.shape_cast %8 : vector<1x1x128xf32> to vector<1x128xf32>
    %cst = arith.constant dense<0.000000e+00> : vector<128xf32>
    %10 = vector.multi_reduction <add>, %3, %cst [1] : vector<128x128xf32> to vector<128xf32>
    %11 = vector.shape_cast %10 : vector<128xf32> to vector<128x1xf32>
    %cst_6 = arith.constant 1.280000e+02 : f32
    %12 = vector.broadcast %cst_6 : f32 to vector<128x1xf32>
    %13 = arith.divf %11, %12 : vector<128x1xf32>
    %14 = vector.broadcast %13 : vector<128x1xf32> to vector<128x128xf32>
    %15 = arith.subf %3, %14 : vector<128x128xf32>
    %16 = arith.mulf %15, %15 : vector<128x128xf32>
    %cst_7 = arith.constant dense<0.000000e+00> : vector<128xf32>
    %17 = vector.multi_reduction <add>, %16, %cst_7 [1] : vector<128x128xf32> to vector<128xf32>
    %18 = vector.shape_cast %17 : vector<128xf32> to vector<128x1xf32>
    %cst_8 = arith.constant 1.280000e+02 : f32
    %19 = vector.broadcast %cst_8 : f32 to vector<128x1xf32>
    %20 = arith.divf %18, %19 : vector<128x1xf32>
    %21 = vector.broadcast %13 : vector<128x1xf32> to vector<128x128xf32>
    %22 = arith.subf %3, %21 : vector<128x128xf32>
    %cst_9 = arith.constant 9.99999974E-6 : f32
    %23 = vector.broadcast %cst_9 : f32 to vector<128x1xf32>
    %24 = arith.addf %20, %23 : vector<128x1xf32>
    %25 = math.rsqrt %24 : vector<128x1xf32>
    %26 = vector.broadcast %25 : vector<128x1xf32> to vector<128x128xf32>
    %27 = arith.mulf %22, %26 : vector<128x128xf32>
    %28 = vector.broadcast %6 : vector<1x128xf32> to vector<128x128xf32>
    %29 = arith.mulf %27, %28 : vector<128x128xf32>
    %30 = vector.broadcast %9 : vector<1x128xf32> to vector<128x128xf32>
    %31 = arith.addf %29, %30 : vector<128x128xf32>
    %32 = arith.truncf %31 : vector<128x128xf32> to vector<128x128xbf16>
    %33 = arith.index_cast %arg1 : i32 to index
    %c0_10 = arith.constant 0 : index
    %c0_11 = arith.constant 0 : index
    %34 = vector.load %arg5[%33, %c0_10, %c0_11] : memref<2x128x384xbf16, #tpu.memory_space<vmem>>, vector<1x128x384xbf16>
    %35 = vector.shape_cast %34 : vector<1x128x384xbf16> to vector<128x384xbf16>
    %cst_12 = arith.constant dense<0.000000e+00> : vector<128x384xf32>
    %36 = tpu.matmul %32, %35, %cst_12 {dimension_numbers = #tpu.dot_dimension_numbers<[1], [0], [0], [1], [0, 0, 1, 1], [], []>} : vector<128x128xbf16>, vector<128x384xbf16>, vector<128x384xf32> -> vector<128x384xf32>
    %37 = vector.extract_strided_slice %36 {offsets = [0, 0], sizes = [128, 128], strides = [1, 1]} : vector<128x384xf32> to vector<128x128xf32>
    %cst_13 = arith.constant 0.176776692 : f32
    %38 = vector.broadcast %cst_13 : f32 to vector<128x128xf32>
    %39 = arith.mulf %37, %38 : vector<128x128xf32>
    %40 = arith.truncf %39 : vector<128x128xf32> to vector<128x128xbf16>
    %c0_14 = arith.constant 0 : index
    %c0_15 = arith.constant 0 : index
    %41 = vector.load %arg17[%c0_14, %c0_15] : memref<128x384xbf16, #tpu.memory_space<vmem>>, vector<128x128xbf16>
    tpu.vector_store %arg17[%c0_14, %c0_15], %40 {strides = array<i32>} : memref<128x384xbf16, #tpu.memory_space<vmem>>, vector<128x128xbf16>,
    %42 = vector.extract_strided_slice %36 {offsets = [0, 128], sizes = [128, 256], strides = [1, 1]} : vector<128x384xf32> to vector<128x256xf32>
    %43 = arith.truncf %42 : vector<128x256xf32> to vector<128x256xbf16>
    %c0_16 = arith.constant 0 : index
    %c128 = arith.constant 128 : index
    %44 = vector.load %arg17[%c0_16, %c128] : memref<128x384xbf16, #tpu.memory_space<vmem>>, vector<128x256xbf16>
    tpu.vector_store %arg17[%c0_16, %c128], %43 {strides = array<i32>} : memref<128x384xbf16, #tpu.memory_space<vmem>>, vector<128x256xbf16>,
    %c0_17 = arith.constant 0 : index
    %c0_18 = arith.constant 0 : index
    %45 = vector.load %arg17[%c0_17, %c0_18] : memref<128x384xbf16, #tpu.memory_space<vmem>>, vector<128x32xbf16>
    %c0_19 = arith.constant 0 : index
    %c128_20 = arith.constant 128 : index
    %46 = vector.load %arg17[%c0_19, %c128_20] : memref<128x384xbf16, #tpu.memory_space<vmem>>, vector<128x32xbf16>
    %c0_21 = arith.constant 0 : index
    %c256 = arith.constant 256 : index
    %47 = vector.load %arg17[%c0_21, %c256] : memref<128x384xbf16, #tpu.memory_space<vmem>>, vector<128x32xbf16>
    %cst_22 = arith.constant dense<0.000000e+00> : vector<128x128xf32>
    %48 = tpu.matmul %45, %46, %cst_22 {dimension_numbers = #tpu.dot_dimension_numbers<[1], [1], [0], [0], [0, 0, 1, 0], [], []>} : vector<128x32xbf16>, vector<128x32xbf16>, vector<128x128xf32> -> vector<128x128xf32>
    %cst_23 = arith.constant dense<0xFF800000> : vector<128xf32>
    %49 = vector.multi_reduction <maximumf>, %48, %cst_23 [1] : vector<128x128xf32> to vector<128xf32>
    %50 = vector.shape_cast %49 : vector<128xf32> to vector<128x1xf32>
    %51 = vector.broadcast %50 : vector<128x1xf32> to vector<128x128xf32>
    %52 = arith.subf %48, %51 : vector<128x128xf32>
    %53 = math.exp %52 : vector<128x128xf32>
    %cst_24 = arith.constant dense<0.000000e+00> : vector<128xf32>
    %54 = vector.multi_reduction <add>, %53, %cst_24 [1] : vector<128x128xf32> to vector<128xf32>
    %55 = vector.shape_cast %54 : vector<128xf32> to vector<128x1xf32>
    %56 = tpu.reciprocal %55 {approx = true} : vector<128x1xf32> -> vector<128x1xf32>
    %57 = vector.broadcast %56 : vector<128x1xf32> to vector<128x128xf32>
    %58 = arith.mulf %53, %57 : vector<128x128xf32>
    %c1_i32 = arith.constant 1 : i32
    %59 = arith.cmpi eq, %arg1, %c1_i32 : i32
    %60 = arith.extui %59 : i1 to i32
    %c0_i32_25 = arith.constant 0 : i32
    %61 = arith.cmpi ne, %60, %c0_i32_25 : i32
    scf.if %61 {
      %c0_106 = arith.constant 0 : index
      %c0_107 = arith.constant 0 : index
      %c0_108 = arith.constant 0 : index
      %c0_109 = arith.constant 0 : index
      %234 = vector.load %arg15[%c0_106, %c0_107, %c0_108, %c0_109] : memref<1x4x128x128xf32, #tpu.memory_space<vmem>>, vector<1x1x128x128xf32>
      %235 = vector.shape_cast %234 : vector<1x1x128x128xf32> to vector<128x128xf32>
      %236 = vector.shape_cast %58 : vector<128x128xf32> to vector<1x1x128x128xf32>
      tpu.vector_store %arg15[%c0_106, %c0_107, %c0_108, %c0_109], %236 {strides = array<i32>} : memref<1x4x128x128xf32, #tpu.memory_space<vmem>>, vector<1x1x128x128xf32>,
    } else {
    }
    %62 = arith.truncf %58 : vector<128x128xf32> to vector<128x128xbf16>
    %cst_26 = arith.constant dense<0.000000e+00> : vector<128x32xf32>
    %63 = tpu.matmul %62, %47, %cst_26 {dimension_numbers = #tpu.dot_dimension_numbers<[1], [0], [0], [1], [0, 0, 1, 1], [], []>} : vector<128x128xbf16>, vector<128x32xbf16>, vector<128x32xf32> -> vector<128x32xf32>
    %64 = arith.truncf %63 : vector<128x32xf32> to vector<128x32xbf16>
    %c0_27 = arith.constant 0 : index
    %c0_28 = arith.constant 0 : index
    %65 = vector.load %arg18[%c0_27, %c0_28] : memref<128x128xbf16, #tpu.memory_space<vmem>>, vector<128x32xbf16>
    tpu.vector_store %arg18[%c0_27, %c0_28], %64 {strides = array<i32>} : memref<128x128xbf16, #tpu.memory_space<vmem>>, vector<128x32xbf16>,
    %c0_29 = arith.constant 0 : index
    %c32 = arith.constant 32 : index
    %66 = vector.load %arg17[%c0_29, %c32] : memref<128x384xbf16, #tpu.memory_space<vmem>>, vector<128x32xbf16>
    %c0_30 = arith.constant 0 : index
    %c160 = arith.constant 160 : index
    %67 = vector.load %arg17[%c0_30, %c160] : memref<128x384xbf16, #tpu.memory_space<vmem>>, vector<128x32xbf16>
    %c0_31 = arith.constant 0 : index
    %c288 = arith.constant 288 : index
    %68 = vector.load %arg17[%c0_31, %c288] : memref<128x384xbf16, #tpu.memory_space<vmem>>, vector<128x32xbf16>
    %cst_32 = arith.constant dense<0.000000e+00> : vector<128x128xf32>
    %69 = tpu.matmul %66, %67, %cst_32 {dimension_numbers = #tpu.dot_dimension_numbers<[1], [1], [0], [0], [0, 0, 1, 0], [], []>} : vector<128x32xbf16>, vector<128x32xbf16>, vector<128x128xf32> -> vector<128x128xf32>
    %cst_33 = arith.constant dense<0xFF800000> : vector<128xf32>
    %70 = vector.multi_reduction <maximumf>, %69, %cst_33 [1] : vector<128x128xf32> to vector<128xf32>
    %71 = vector.shape_cast %70 : vector<128xf32> to vector<128x1xf32>
    %72 = vector.broadcast %71 : vector<128x1xf32> to vector<128x128xf32>
    %73 = arith.subf %69, %72 : vector<128x128xf32>
    %74 = math.exp %73 : vector<128x128xf32>
    %cst_34 = arith.constant dense<0.000000e+00> : vector<128xf32>
    %75 = vector.multi_reduction <add>, %74, %cst_34 [1] : vector<128x128xf32> to vector<128xf32>
    %76 = vector.shape_cast %75 : vector<128xf32> to vector<128x1xf32>
    %77 = tpu.reciprocal %76 {approx = true} : vector<128x1xf32> -> vector<128x1xf32>
    %78 = vector.broadcast %77 : vector<128x1xf32> to vector<128x128xf32>
    %79 = arith.mulf %74, %78 : vector<128x128xf32>
    %c1_i32_35 = arith.constant 1 : i32
    %80 = arith.cmpi eq, %arg1, %c1_i32_35 : i32
    %81 = arith.extui %80 : i1 to i32
    %c0_i32_36 = arith.constant 0 : i32
    %82 = arith.cmpi ne, %81, %c0_i32_36 : i32
    scf.if %82 {
      %c0_106 = arith.constant 0 : index
      %c1 = arith.constant 1 : index
      %c0_107 = arith.constant 0 : index
      %c0_108 = arith.constant 0 : index
      %234 = vector.load %arg15[%c0_106, %c1, %c0_107, %c0_108] : memref<1x4x128x128xf32, #tpu.memory_space<vmem>>, vector<1x1x128x128xf32>
      %235 = vector.shape_cast %234 : vector<1x1x128x128xf32> to vector<128x128xf32>
      %236 = vector.shape_cast %79 : vector<128x128xf32> to vector<1x1x128x128xf32>
      tpu.vector_store %arg15[%c0_106, %c1, %c0_107, %c0_108], %236 {strides = array<i32>} : memref<1x4x128x128xf32, #tpu.memory_space<vmem>>, vector<1x1x128x128xf32>,
    } else {
    }
    %83 = arith.truncf %79 : vector<128x128xf32> to vector<128x128xbf16>
    %cst_37 = arith.constant dense<0.000000e+00> : vector<128x32xf32>
    %84 = tpu.matmul %83, %68, %cst_37 {dimension_numbers = #tpu.dot_dimension_numbers<[1], [0], [0], [1], [0, 0, 1, 1], [], []>} : vector<128x128xbf16>, vector<128x32xbf16>, vector<128x32xf32> -> vector<128x32xf32>
    %85 = arith.truncf %84 : vector<128x32xf32> to vector<128x32xbf16>
    %c0_38 = arith.constant 0 : index
    %c32_39 = arith.constant 32 : index
    %86 = vector.load %arg18[%c0_38, %c32_39] : memref<128x128xbf16, #tpu.memory_space<vmem>>, vector<128x32xbf16>
    tpu.vector_store %arg18[%c0_38, %c32_39], %85 {strides = array<i32>} : memref<128x128xbf16, #tpu.memory_space<vmem>>, vector<128x32xbf16>,
    %c0_40 = arith.constant 0 : index
    %c64 = arith.constant 64 : index
    %87 = vector.load %arg17[%c0_40, %c64] : memref<128x384xbf16, #tpu.memory_space<vmem>>, vector<128x32xbf16>
    %c0_41 = arith.constant 0 : index
    %c192 = arith.constant 192 : index
    %88 = vector.load %arg17[%c0_41, %c192] : memref<128x384xbf16, #tpu.memory_space<vmem>>, vector<128x32xbf16>
    %c0_42 = arith.constant 0 : index
    %c320 = arith.constant 320 : index
    %89 = vector.load %arg17[%c0_42, %c320] : memref<128x384xbf16, #tpu.memory_space<vmem>>, vector<128x32xbf16>
    %cst_43 = arith.constant dense<0.000000e+00> : vector<128x128xf32>
    %90 = tpu.matmul %87, %88, %cst_43 {dimension_numbers = #tpu.dot_dimension_numbers<[1], [1], [0], [0], [0, 0, 1, 0], [], []>} : vector<128x32xbf16>, vector<128x32xbf16>, vector<128x128xf32> -> vector<128x128xf32>
    %cst_44 = arith.constant dense<0xFF800000> : vector<128xf32>
    %91 = vector.multi_reduction <maximumf>, %90, %cst_44 [1] : vector<128x128xf32> to vector<128xf32>
    %92 = vector.shape_cast %91 : vector<128xf32> to vector<128x1xf32>
    %93 = vector.broadcast %92 : vector<128x1xf32> to vector<128x128xf32>
    %94 = arith.subf %90, %93 : vector<128x128xf32>
    %95 = math.exp %94 : vector<128x128xf32>
    %cst_45 = arith.constant dense<0.000000e+00> : vector<128xf32>
    %96 = vector.multi_reduction <add>, %95, %cst_45 [1] : vector<128x128xf32> to vector<128xf32>
    %97 = vector.shape_cast %96 : vector<128xf32> to vector<128x1xf32>
    %98 = tpu.reciprocal %97 {approx = true} : vector<128x1xf32> -> vector<128x1xf32>
    %99 = vector.broadcast %98 : vector<128x1xf32> to vector<128x128xf32>
    %100 = arith.mulf %95, %99 : vector<128x128xf32>
    %c1_i32_46 = arith.constant 1 : i32
    %101 = arith.cmpi eq, %arg1, %c1_i32_46 : i32
    %102 = arith.extui %101 : i1 to i32
    %c0_i32_47 = arith.constant 0 : i32
    %103 = arith.cmpi ne, %102, %c0_i32_47 : i32
    scf.if %103 {
      %c0_106 = arith.constant 0 : index
      %c2 = arith.constant 2 : index
      %c0_107 = arith.constant 0 : index
      %c0_108 = arith.constant 0 : index
      %234 = vector.load %arg15[%c0_106, %c2, %c0_107, %c0_108] : memref<1x4x128x128xf32, #tpu.memory_space<vmem>>, vector<1x1x128x128xf32>
      %235 = vector.shape_cast %234 : vector<1x1x128x128xf32> to vector<128x128xf32>
      %236 = vector.shape_cast %100 : vector<128x128xf32> to vector<1x1x128x128xf32>
      tpu.vector_store %arg15[%c0_106, %c2, %c0_107, %c0_108], %236 {strides = array<i32>} : memref<1x4x128x128xf32, #tpu.memory_space<vmem>>, vector<1x1x128x128xf32>,
    } else {
    }
    %104 = arith.truncf %100 : vector<128x128xf32> to vector<128x128xbf16>
    %cst_48 = arith.constant dense<0.000000e+00> : vector<128x32xf32>
    %105 = tpu.matmul %104, %89, %cst_48 {dimension_numbers = #tpu.dot_dimension_numbers<[1], [0], [0], [1], [0, 0, 1, 1], [], []>} : vector<128x128xbf16>, vector<128x32xbf16>, vector<128x32xf32> -> vector<128x32xf32>
    %106 = arith.truncf %105 : vector<128x32xf32> to vector<128x32xbf16>
    %c0_49 = arith.constant 0 : index
    %c64_50 = arith.constant 64 : index
    %107 = vector.load %arg18[%c0_49, %c64_50] : memref<128x128xbf16, #tpu.memory_space<vmem>>, vector<128x32xbf16>
    tpu.vector_store %arg18[%c0_49, %c64_50], %106 {strides = array<i32>} : memref<128x128xbf16, #tpu.memory_space<vmem>>, vector<128x32xbf16>,
    %c0_51 = arith.constant 0 : index
    %c96 = arith.constant 96 : index
    %108 = vector.load %arg17[%c0_51, %c96] : memref<128x384xbf16, #tpu.memory_space<vmem>>, vector<128x32xbf16>
    %c0_52 = arith.constant 0 : index
    %c224 = arith.constant 224 : index
    %109 = vector.load %arg17[%c0_52, %c224] : memref<128x384xbf16, #tpu.memory_space<vmem>>, vector<128x32xbf16>
    %c0_53 = arith.constant 0 : index
    %c352 = arith.constant 352 : index
    %110 = vector.load %arg17[%c0_53, %c352] : memref<128x384xbf16, #tpu.memory_space<vmem>>, vector<128x32xbf16>
    %cst_54 = arith.constant dense<0.000000e+00> : vector<128x128xf32>
    %111 = tpu.matmul %108, %109, %cst_54 {dimension_numbers = #tpu.dot_dimension_numbers<[1], [1], [0], [0], [0, 0, 1, 0], [], []>} : vector<128x32xbf16>, vector<128x32xbf16>, vector<128x128xf32> -> vector<128x128xf32>
    %cst_55 = arith.constant dense<0xFF800000> : vector<128xf32>
    %112 = vector.multi_reduction <maximumf>, %111, %cst_55 [1] : vector<128x128xf32> to vector<128xf32>
    %113 = vector.shape_cast %112 : vector<128xf32> to vector<128x1xf32>
    %114 = vector.broadcast %113 : vector<128x1xf32> to vector<128x128xf32>
    %115 = arith.subf %111, %114 : vector<128x128xf32>
    %116 = math.exp %115 : vector<128x128xf32>
    %cst_56 = arith.constant dense<0.000000e+00> : vector<128xf32>
    %117 = vector.multi_reduction <add>, %116, %cst_56 [1] : vector<128x128xf32> to vector<128xf32>
    %118 = vector.shape_cast %117 : vector<128xf32> to vector<128x1xf32>
    %119 = tpu.reciprocal %118 {approx = true} : vector<128x1xf32> -> vector<128x1xf32>
    %120 = vector.broadcast %119 : vector<128x1xf32> to vector<128x128xf32>
    %121 = arith.mulf %116, %120 : vector<128x128xf32>
    %c1_i32_57 = arith.constant 1 : i32
    %122 = arith.cmpi eq, %arg1, %c1_i32_57 : i32
    %123 = arith.extui %122 : i1 to i32
    %c0_i32_58 = arith.constant 0 : i32
    %124 = arith.cmpi ne, %123, %c0_i32_58 : i32
    scf.if %124 {
      %c0_106 = arith.constant 0 : index
      %c3 = arith.constant 3 : index
      %c0_107 = arith.constant 0 : index
      %c0_108 = arith.constant 0 : index
      %234 = vector.load %arg15[%c0_106, %c3, %c0_107, %c0_108] : memref<1x4x128x128xf32, #tpu.memory_space<vmem>>, vector<1x1x128x128xf32>
      %235 = vector.shape_cast %234 : vector<1x1x128x128xf32> to vector<128x128xf32>
      %236 = vector.shape_cast %121 : vector<128x128xf32> to vector<1x1x128x128xf32>
      tpu.vector_store %arg15[%c0_106, %c3, %c0_107, %c0_108], %236 {strides = array<i32>} : memref<1x4x128x128xf32, #tpu.memory_space<vmem>>, vector<1x1x128x128xf32>,
    } else {
    }
    %125 = arith.truncf %121 : vector<128x128xf32> to vector<128x128xbf16>
    %cst_59 = arith.constant dense<0.000000e+00> : vector<128x32xf32>
    %126 = tpu.matmul %125, %110, %cst_59 {dimension_numbers = #tpu.dot_dimension_numbers<[1], [0], [0], [1], [0, 0, 1, 1], [], []>} : vector<128x128xbf16>, vector<128x32xbf16>, vector<128x32xf32> -> vector<128x32xf32>
    %127 = arith.truncf %126 : vector<128x32xf32> to vector<128x32xbf16>
    %c0_60 = arith.constant 0 : index
    %c96_61 = arith.constant 96 : index
    %128 = vector.load %arg18[%c0_60, %c96_61] : memref<128x128xbf16, #tpu.memory_space<vmem>>, vector<128x32xbf16>
    tpu.vector_store %arg18[%c0_60, %c96_61], %127 {strides = array<i32>} : memref<128x128xbf16, #tpu.memory_space<vmem>>, vector<128x32xbf16>,
    %c0_62 = arith.constant 0 : index
    %c0_63 = arith.constant 0 : index
    %129 = vector.load %arg18[%c0_62, %c0_63] : memref<128x128xbf16, #tpu.memory_space<vmem>>, vector<128x128xbf16>
    %130 = arith.index_cast %arg1 : i32 to index
    %c0_64 = arith.constant 0 : index
    %c0_65 = arith.constant 0 : index
    %131 = vector.load %arg6[%130, %c0_64, %c0_65] : memref<2x128x128xbf16, #tpu.memory_space<vmem>>, vector<1x128x128xbf16>
    %132 = vector.shape_cast %131 : vector<1x128x128xbf16> to vector<128x128xbf16>
    %cst_66 = arith.constant dense<0.000000e+00> : vector<128x128xf32>
    %133 = tpu.matmul %129, %132, %cst_66 {dimension_numbers = #tpu.dot_dimension_numbers<[1], [0], [0], [1], [0, 0, 1, 1], [], []>} : vector<128x128xbf16>, vector<128x128xbf16>, vector<128x128xf32> -> vector<128x128xf32>
    %134 = arith.index_cast %arg1 : i32 to index
    %c0_67 = arith.constant 0 : index
    %c0_68 = arith.constant 0 : index
    %135 = vector.load %arg7[%134, %c0_67, %c0_68] : memref<2x1x128xf32, #tpu.memory_space<vmem>>, vector<1x1x128xf32>
    %136 = vector.shape_cast %135 : vector<1x1x128xf32> to vector<1x128xf32>
    %137 = vector.broadcast %136 : vector<1x128xf32> to vector<128x128xf32>
    %138 = arith.addf %133, %137 : vector<128x128xf32>
    %139 = arith.addf %138, %3 : vector<128x128xf32>
    %140 = arith.index_cast %arg1 : i32 to index
    %c0_69 = arith.constant 0 : index
    %c0_70 = arith.constant 0 : index
    %141 = vector.load %arg8[%140, %c0_69, %c0_70] : memref<2x1x128xf32, #tpu.memory_space<vmem>>, vector<1x1x128xf32>
    %142 = vector.shape_cast %141 : vector<1x1x128xf32> to vector<1x128xf32>
    %143 = arith.index_cast %arg1 : i32 to index
    %c0_71 = arith.constant 0 : index
    %c0_72 = arith.constant 0 : index
    %144 = vector.load %arg9[%143, %c0_71, %c0_72] : memref<2x1x128xf32, #tpu.memory_space<vmem>>, vector<1x1x128xf32>
    %145 = vector.shape_cast %144 : vector<1x1x128xf32> to vector<1x128xf32>
    %cst_73 = arith.constant dense<0.000000e+00> : vector<128xf32>
    %146 = vector.multi_reduction <add>, %139, %cst_73 [1] : vector<128x128xf32> to vector<128xf32>
    %147 = vector.shape_cast %146 : vector<128xf32> to vector<128x1xf32>
    %cst_74 = arith.constant 1.280000e+02 : f32
    %148 = vector.broadcast %cst_74 : f32 to vector<128x1xf32>
    %149 = arith.divf %147, %148 : vector<128x1xf32>
    %150 = vector.broadcast %149 : vector<128x1xf32> to vector<128x128xf32>
    %151 = arith.subf %139, %150 : vector<128x128xf32>
    %152 = arith.mulf %151, %151 : vector<128x128xf32>
    %cst_75 = arith.constant dense<0.000000e+00> : vector<128xf32>
    %153 = vector.multi_reduction <add>, %152, %cst_75 [1] : vector<128x128xf32> to vector<128xf32>
    %154 = vector.shape_cast %153 : vector<128xf32> to vector<128x1xf32>
    %cst_76 = arith.constant 1.280000e+02 : f32
    %155 = vector.broadcast %cst_76 : f32 to vector<128x1xf32>
    %156 = arith.divf %154, %155 : vector<128x1xf32>
    %157 = vector.broadcast %149 : vector<128x1xf32> to vector<128x128xf32>
    %158 = arith.subf %139, %157 : vector<128x128xf32>
    %cst_77 = arith.constant 9.99999974E-6 : f32
    %159 = vector.broadcast %cst_77 : f32 to vector<128x1xf32>
    %160 = arith.addf %156, %159 : vector<128x1xf32>
    %161 = math.rsqrt %160 : vector<128x1xf32>
    %162 = vector.broadcast %161 : vector<128x1xf32> to vector<128x128xf32>
    %163 = arith.mulf %158, %162 : vector<128x128xf32>
    %164 = vector.broadcast %142 : vector<1x128xf32> to vector<128x128xf32>
    %165 = arith.mulf %163, %164 : vector<128x128xf32>
    %166 = vector.broadcast %145 : vector<1x128xf32> to vector<128x128xf32>
    %167 = arith.addf %165, %166 : vector<128x128xf32>
    %168 = arith.truncf %167 : vector<128x128xf32> to vector<128x128xbf16>
    %169 = arith.index_cast %arg1 : i32 to index
    %c0_78 = arith.constant 0 : index
    %c0_79 = arith.constant 0 : index
    %170 = vector.load %arg10[%169, %c0_78, %c0_79] : memref<2x128x256xbf16, #tpu.memory_space<vmem>>, vector<1x128x256xbf16>
    %171 = vector.shape_cast %170 : vector<1x128x256xbf16> to vector<128x256xbf16>
    %cst_80 = arith.constant dense<0.000000e+00> : vector<128x256xf32>
    %172 = tpu.matmul %168, %171, %cst_80 {dimension_numbers = #tpu.dot_dimension_numbers<[1], [0], [0], [1], [0, 0, 1, 1], [], []>} : vector<128x128xbf16>, vector<128x256xbf16>, vector<128x256xf32> -> vector<128x256xf32>
    %173 = arith.index_cast %arg1 : i32 to index
    %c0_81 = arith.constant 0 : index
    %c0_82 = arith.constant 0 : index
    %174 = vector.load %arg11[%173, %c0_81, %c0_82] : memref<2x1x256xf32, #tpu.memory_space<vmem>>, vector<1x1x256xf32>
    %175 = vector.shape_cast %174 : vector<1x1x256xf32> to vector<1x256xf32>
    %176 = vector.broadcast %175 : vector<1x256xf32> to vector<128x256xf32>
    %177 = arith.addf %172, %176 : vector<128x256xf32>
    %cst_83 = arith.constant 0.707106769 : f32
    %178 = vector.broadcast %cst_83 : f32 to vector<128x256xf32>
    %179 = arith.mulf %177, %178 : vector<128x256xf32>
    %180 = math.absf %179 : vector<128x256xf32>
    %cst_84 = arith.constant 0.327591091 : f32
    %181 = vector.broadcast %cst_84 : f32 to vector<128x256xf32>
    %182 = arith.mulf %181, %180 : vector<128x256xf32>
    %cst_85 = arith.constant 1.000000e+00 : f32
    %183 = vector.broadcast %cst_85 : f32 to vector<128x256xf32>
    %184 = arith.addf %183, %182 : vector<128x256xf32>
    %185 = tpu.reciprocal %184 {approx = true} : vector<128x256xf32> -> vector<128x256xf32>
    %cst_86 = arith.constant 1.06140542 : f32
    %186 = vector.broadcast %cst_86 : f32 to vector<128x256xf32>
    %187 = arith.mulf %185, %186 : vector<128x256xf32>
    %cst_87 = arith.constant -1.45315206 : f32
    %188 = vector.broadcast %cst_87 : f32 to vector<128x256xf32>
    %189 = arith.addf %188, %187 : vector<128x256xf32>
    %190 = arith.mulf %185, %189 : vector<128x256xf32>
    %cst_88 = arith.constant 1.42141378 : f32
    %191 = vector.broadcast %cst_88 : f32 to vector<128x256xf32>
    %192 = arith.addf %191, %190 : vector<128x256xf32>
    %193 = arith.mulf %185, %192 : vector<128x256xf32>
    %cst_89 = arith.constant -0.284496725 : f32
    %194 = vector.broadcast %cst_89 : f32 to vector<128x256xf32>
    %195 = arith.addf %194, %193 : vector<128x256xf32>
    %196 = arith.mulf %185, %195 : vector<128x256xf32>
    %cst_90 = arith.constant 0.254829586 : f32
    %197 = vector.broadcast %cst_90 : f32 to vector<128x256xf32>
    %198 = arith.addf %197, %196 : vector<128x256xf32>
    %199 = arith.mulf %185, %198 : vector<128x256xf32>
    %cst_91 = arith.constant 0.000000e+00 : f32
    %200 = vector.broadcast %cst_91 : f32 to vector<128x256xf32>
    %201 = arith.subf %200, %180 : vector<128x256xf32>
    %202 = arith.mulf %201, %180 : vector<128x256xf32>
    %203 = math.exp %202 : vector<128x256xf32>
    %204 = arith.mulf %199, %203 : vector<128x256xf32>
    %cst_92 = arith.constant 1.000000e+00 : f32
    %205 = vector.broadcast %cst_92 : f32 to vector<128x256xf32>
    %206 = arith.subf %205, %204 : vector<128x256xf32>
    %cst_93 = arith.constant 0.000000e+00 : f32
    %207 = vector.broadcast %cst_93 : f32 to vector<128x256xf32>
    %208 = arith.cmpf oge, %179, %207 : vector<128x256xf32>
    %cst_94 = arith.constant 0.000000e+00 : f32
    %209 = vector.broadcast %cst_94 : f32 to vector<128x256xf32>
    %210 = arith.subf %209, %206 : vector<128x256xf32>
    %211 = arith.select %208, %206, %210 : vector<128x256xi1>, vector<128x256xf32>
    %cst_95 = arith.constant 5.000000e-01 : f32
    %212 = vector.broadcast %cst_95 : f32 to vector<128x256xf32>
    %213 = arith.mulf %212, %177 : vector<128x256xf32>
    %cst_96 = arith.constant 1.000000e+00 : f32
    %214 = vector.broadcast %cst_96 : f32 to vector<128x256xf32>
    %215 = arith.addf %214, %211 : vector<128x256xf32>
    %216 = arith.mulf %213, %215 : vector<128x256xf32>
    %217 = arith.truncf %216 : vector<128x256xf32> to vector<128x256xbf16>
    %218 = arith.index_cast %arg1 : i32 to index
    %c0_97 = arith.constant 0 : index
    %c0_98 = arith.constant 0 : index
    %219 = vector.load %arg12[%218, %c0_97, %c0_98] : memref<2x256x128xbf16, #tpu.memory_space<vmem>>, vector<1x256x128xbf16>
    %220 = vector.shape_cast %219 : vector<1x256x128xbf16> to vector<256x128xbf16>
    %cst_99 = arith.constant dense<0.000000e+00> : vector<128x128xf32>
    %221 = tpu.matmul %217, %220, %cst_99 {dimension_numbers = #tpu.dot_dimension_numbers<[1], [0], [0], [1], [0, 0, 1, 1], [], []>} : vector<128x256xbf16>, vector<256x128xbf16>, vector<128x128xf32> -> vector<128x128xf32>
    %222 = arith.index_cast %arg1 : i32 to index
    %c0_100 = arith.constant 0 : index
    %c0_101 = arith.constant 0 : index
    %223 = vector.load %arg13[%222, %c0_100, %c0_101] : memref<2x1x128xf32, #tpu.memory_space<vmem>>, vector<1x1x128xf32>
    %224 = vector.shape_cast %223 : vector<1x1x128xf32> to vector<1x128xf32>
    %225 = vector.broadcast %224 : vector<1x128xf32> to vector<128x128xf32>
    %226 = arith.addf %221, %225 : vector<128x128xf32>
    %227 = arith.addf %226, %139 : vector<128x128xf32>
    %c1_i32_102 = arith.constant 1 : i32
    %228 = arith.cmpi slt, %arg1, %c1_i32_102 : i32
    %229 = arith.extui %228 : i1 to i32
    %c0_i32_103 = arith.constant 0 : i32
    %230 = arith.cmpi ne, %229, %c0_i32_103 : i32
    scf.if %230 {
      %c0_106 = arith.constant 0 : index
      %c0_107 = arith.constant 0 : index
      %234 = vector.load %arg16[%c0_106, %c0_107] : memref<128x128xf32, #tpu.memory_space<vmem>>, vector<128x128xf32>
      tpu.vector_store %arg16[%c0_106, %c0_107], %227 {strides = array<i32>} : memref<128x128xf32, #tpu.memory_space<vmem>>, vector<128x128xf32>,
    } else {
    }
    %c1_i32_104 = arith.constant 1 : i32
    %231 = arith.cmpi eq, %arg1, %c1_i32_104 : i32
    %232 = arith.extui %231 : i1 to i32
    %c0_i32_105 = arith.constant 0 : i32
    %233 = arith.cmpi ne, %232, %c0_i32_105 : i32
    scf.if %233 {
      %c0_106 = arith.constant 0 : index
      %c0_107 = arith.constant 0 : index
      %c0_108 = arith.constant 0 : index
      %234 = vector.load %arg14[%c0_106, %c0_107, %c0_108] : memref<1x128x128xf32, #tpu.memory_space<vmem>>, vector<1x128x128xf32>
      %235 = vector.shape_cast %234 : vector<1x128x128xf32> to vector<128x128xf32>
      %236 = vector.shape_cast %227 : vector<128x128xf32> to vector<1x128x128xf32>
      tpu.vector_store %arg14[%c0_106, %c0_107, %c0_108], %236 {strides = array<i32>} : memref<1x128x128xf32, #tpu.memory_space<vmem>>, vector<1x128x128xf32>,
    } else {
    }
    return
  }
  func.func @transform_0(%arg0: i32, %arg1: i32) -> (i32, i32, i32) {
    %c0_i32 = arith.constant 0 : i32
    %c0_i32_0 = arith.constant 0 : i32
    %c0_i32_1 = arith.constant 0 : i32
    return %arg0, %c0_i32, %c0_i32_0 : i32, i32, i32
  }
  func.func @transform_1(%arg0: i32, %arg1: i32) -> (i32, i32, i32) {
    %c0_i32 = arith.constant 0 : i32
    %c0_i32_0 = arith.constant 0 : i32
    %c0_i32_1 = arith.constant 0 : i32
    %c0_i32_2 = arith.constant 0 : i32
    return %c0_i32, %c0_i32_0, %c0_i32_1 : i32, i32, i32
  }
  func.func @transform_2(%arg0: i32, %arg1: i32) -> (i32, i32, i32) {
    %c0_i32 = arith.constant 0 : i32
    %c0_i32_0 = arith.constant 0 : i32
    %c0_i32_1 = arith.constant 0 : i32
    %c0_i32_2 = arith.constant 0 : i32
    return %c0_i32, %c0_i32_0, %c0_i32_1 : i32, i32, i32
  }
  func.func @transform_3(%arg0: i32, %arg1: i32) -> (i32, i32, i32) {
    %c0_i32 = arith.constant 0 : i32
    %c0_i32_0 = arith.constant 0 : i32
    %c0_i32_1 = arith.constant 0 : i32
    %c0_i32_2 = arith.constant 0 : i32
    return %c0_i32, %c0_i32_0, %c0_i32_1 : i32, i32, i32
  }
  func.func @transform_4(%arg0: i32, %arg1: i32) -> (i32, i32, i32) {
    %c0_i32 = arith.constant 0 : i32
    %c0_i32_0 = arith.constant 0 : i32
    %c0_i32_1 = arith.constant 0 : i32
    %c0_i32_2 = arith.constant 0 : i32
    return %c0_i32, %c0_i32_0, %c0_i32_1 : i32, i32, i32
  }
  func.func @transform_5(%arg0: i32, %arg1: i32) -> (i32, i32, i32) {
    %c0_i32 = arith.constant 0 : i32
    %c0_i32_0 = arith.constant 0 : i32
    %c0_i32_1 = arith.constant 0 : i32
    %c0_i32_2 = arith.constant 0 : i32
    return %c0_i32, %c0_i32_0, %c0_i32_1 : i32, i32, i32
  }
  func.func @transform_6(%arg0: i32, %arg1: i32) -> (i32, i32, i32) {
    %c0_i32 = arith.constant 0 : i32
    %c0_i32_0 = arith.constant 0 : i32
    %c0_i32_1 = arith.constant 0 : i32
    %c0_i32_2 = arith.constant 0 : i32
    return %c0_i32, %c0_i32_0, %c0_i32_1 : i32, i32, i32
  }
  func.func @transform_7(%arg0: i32, %arg1: i32) -> (i32, i32, i32) {
    %c0_i32 = arith.constant 0 : i32
    %c0_i32_0 = arith.constant 0 : i32
    %c0_i32_1 = arith.constant 0 : i32
    %c0_i32_2 = arith.constant 0 : i32
    return %c0_i32, %c0_i32_0, %c0_i32_1 : i32, i32, i32
  }
  func.func @transform_8(%arg0: i32, %arg1: i32) -> (i32, i32, i32) {
    %c0_i32 = arith.constant 0 : i32
    %c0_i32_0 = arith.constant 0 : i32
    %c0_i32_1 = arith.constant 0 : i32
    %c0_i32_2 = arith.constant 0 : i32
    return %c0_i32, %c0_i32_0, %c0_i32_1 : i32, i32, i32
  }
  func.func @transform_9(%arg0: i32, %arg1: i32) -> (i32, i32, i32) {
    %c0_i32 = arith.constant 0 : i32
    %c0_i32_0 = arith.constant 0 : i32
    %c0_i32_1 = arith.constant 0 : i32
    %c0_i32_2 = arith.constant 0 : i32
    return %c0_i32, %c0_i32_0, %c0_i32_1 : i32, i32, i32
  }
  func.func @transform_10(%arg0: i32, %arg1: i32) -> (i32, i32, i32) {
    %c0_i32 = arith.constant 0 : i32
    %c0_i32_0 = arith.constant 0 : i32
    %c0_i32_1 = arith.constant 0 : i32
    %c0_i32_2 = arith.constant 0 : i32
    return %c0_i32, %c0_i32_0, %c0_i32_1 : i32, i32, i32
  }
  func.func @transform_11(%arg0: i32, %arg1: i32) -> (i32, i32, i32) {
    %c0_i32 = arith.constant 0 : i32
    %c0_i32_0 = arith.constant 0 : i32
    %c0_i32_1 = arith.constant 0 : i32
    %c0_i32_2 = arith.constant 0 : i32
    return %c0_i32, %c0_i32_0, %c0_i32_1 : i32, i32, i32
  }
  func.func @transform_12(%arg0: i32, %arg1: i32) -> (i32, i32, i32) {
    %c0_i32 = arith.constant 0 : i32
    %c0_i32_0 = arith.constant 0 : i32
    %c0_i32_1 = arith.constant 0 : i32
    return %arg0, %c0_i32, %c0_i32_0 : i32, i32, i32
  }
  func.func @transform_13(%arg0: i32, %arg1: i32) -> (i32, i32, i32, i32) {
    %c0_i32 = arith.constant 0 : i32
    %c0_i32_0 = arith.constant 0 : i32
    %c0_i32_1 = arith.constant 0 : i32
    %c0_i32_2 = arith.constant 0 : i32
    return %arg0, %c0_i32, %c0_i32_0, %c0_i32_1 : i32, i32, i32, i32
  }
}

</mosaic_0001>

<llo_original>
// kernel: transformer_forward.1
$region0: #{transformer_forward.1}
  #allocation0 [shape = 'u32[]', space=smem, size = 0x4, offset = 0x4, fixed_abs, tag = 'smem constant byte address 0x4 - core index']
  #allocation1 [shape = 'u32[72,128]{1,0:T(1,128)}', space=vmem, size = 0x9000, scoped, tag = 'internal scratch']
  #allocation2 [shape = 'f32[128,128]{1,0:T(8,128)}', space=vmem, size = 0x10000, scoped, tag = 'scratch operand']
  #allocation3 [shape = 'bf16[128,384]{1,0:T(8,128)(2,1)}', space=vmem, size = 0x18000, scoped, tag = 'scratch operand']
  #allocation4 [shape = 'bf16[128,128]{1,0:T(8,128)(2,1)}', space=vmem, size = 0x8000, scoped, tag = 'scratch operand']
  %s0 = inlined_call_operand.hbm [shape: f32[4,128,128], index: 0, kind: input, shape index: {}]
  %s1 = inlined_call_operand.vmem [shape: f32[2,1,128], index: 1, kind: input, shape index: {}]
  %s2 = inlined_call_operand.vmem [shape: f32[2,1,128], index: 2, kind: input, shape index: {}]
  %s3 = inlined_call_operand.hbm [shape: bf16[2,128,384], index: 3, kind: input, shape index: {}]
  %s4 = inlined_call_operand.hbm [shape: bf16[2,128,128], index: 4, kind: input, shape index: {}]
  %s5 = inlined_call_operand.vmem [shape: f32[2,1,128], index: 5, kind: input, shape index: {}]
  %s6 = inlined_call_operand.vmem [shape: f32[2,1,128], index: 6, kind: input, shape index: {}]
  %s7 = inlined_call_operand.vmem [shape: f32[2,1,128], index: 7, kind: input, shape index: {}]
  %s8 = inlined_call_operand.hbm [shape: bf16[2,128,256], index: 8, kind: input, shape index: {}]
  %s9 = inlined_call_operand.vmem [shape: f32[2,1,256], index: 9, kind: input, shape index: {}]
  %s10 = inlined_call_operand.hbm [shape: bf16[2,256,128], index: 10, kind: input, shape index: {}]
  %s11 = inlined_call_operand.hbm [shape: f32[2,1,128], index: 11, kind: input, shape index: {}]
  %s12 = inlined_call_operand.hbm [shape: f32[4,128,128], index: 12, kind: output, shape index: {0}]
  %s13 = inlined_call_operand.hbm [shape: f32[4,4,128,128], index: 13, kind: output, shape index: {1}]
  %14 = xla_tuple %s12, %s13
  %s15 = sld [smem:[#allocation0]]
  $region141: #{transformer_forward.1} parent=0
    _
  %s17 = ssub.s32 1, %s15
  %s18 = scalar_select 0, %s17, %s15
  $region1: #{transformer_forward.1} parent=0
    #allocation5 [shape = 'u8[131072]{0}', space=vmem, size = 0x20000, scoped, tag = 'input window, operand 0']
    #allocation6 [shape = 's32[2]{0}', space=sflag, size = 0x8, scoped, tag = 'scoped memory for transformer_forward.1']
    #allocation7 [shape = 's32[2]{0}', space=sflag, size = 0x8, scoped, tag = 'scoped memory for transformer_forward.1']
    #allocation8 [shape = 'u8[196608]{0}', space=vmem, size = 0x30000, scoped, tag = 'input window, operand 3, single buffered']
    #allocation9 [shape = 's32[1]{0}', space=sflag, size = 0x4, scoped, tag = 'scoped memory for transformer_forward.1']
    #allocation10 [shape = 'u8[65536]{0}', space=vmem, size = 0x10000, scoped, tag = 'input window, operand 4, single buffered']
    #allocation11 [shape = 'u8[131072]{0}', space=vmem, size = 0x20000, scoped, tag = 'input window, operand 8, single buffered']
    #allocation12 [shape = 's32[1]{0}', space=sflag, size = 0x4, scoped, tag = 'scoped memory for transformer_forward.1']
    #allocation13 [shape = 'u8[131072]{0}', space=vmem, size = 0x20000, scoped, tag = 'input window, operand 10, single buffered']
    #allocation14 [shape = 'u8[1024]{0}', space=vmem, size = 0x400, scoped, tag = 'input window, operand 11, single buffered']
    #allocation15 [shape = 's32[1]{0}', space=sflag, size = 0x4, scoped, tag = 'scoped memory for transformer_forward.1']
    #allocation16 [shape = 'u8[131072]{0}', space=vmem, size = 0x20000, scoped, tag = 'output window, operand 0']
    #allocation17 [shape = 'u8[524288]{0}', space=vmem, size = 0x80000, scoped, tag = 'output window, operand 1']
    #allocation18 [shape = 's32[2]{0}', space=sflag, size = 0x8, scoped, tag = 'scoped memory for transformer_forward.1']
    %19 = vsyncpa [#allocation6], 0
    %s20 = scalar_lea.sflag [#allocation6], 1
    %21 = vsyncpa %s20, 0
    %22 = vsyncpa [#allocation9], 0
    %23 = vsyncpa [#allocation12], 0
    %24 = vsyncpa [#allocation15], 0
    %25 = vsyncpa [#allocation7], 0
    %s26 = scalar_lea.sflag [#allocation7], 1
    %27 = vsyncpa %s26, 0
    %28 = vsyncpa [#allocation18], 0
    %s29 = scalar_lea.sflag [#allocation18], 1
    %30 = vsyncpa %s29, 0
    loop: start=0, step=1, limit=10
    $region2: #{transformer_forward.1} parent=1 // loop_pre_header
      _
    $region3: #{transformer_forward.1} parent=1 // loop_header
      %s32 = sphi 0, %s36
      %p33 = scmp.ge.s32.totalorder %s32, 10
      %s39 = sphi 0, %s51
      %s40 = sphi 0, %s47
      %s41 = sphi 0, %s39
      %s42 = sphi 0, %s40
      %s43 = sphi 0, %s41
      %s44 = sphi 0, %s42
      %s54 = sphi 0, %s56
      %s57 = sphi 0, %s54
      %s58 = sphi 0, %s57
      %s74 = sphi 0, %s58
      %s78 = sphi 0, %s78
      %s80 = sphi 0, %s78
      %s81 = sphi 0, %s80
      %s95 = sphi 0, %s81
      %s99 = sphi 0, %s99
      %s101 = sphi 0, %s99
      %s102 = sphi 0, %s101
      %s116 = sphi 0, %s102
      %s120 = sphi 0, %s120
      %s122 = sphi 0, %s120
      %s123 = sphi 0, %s122
      %s137 = sphi 0, %s123
      %s141 = sphi 0, %s141
      %s143 = sphi 0, %s141
      %s144 = sphi 0, %s143
      %s158 = sphi 0, %s144
      %s162 = sphi 0, %s162
      %s164 = sphi 0, %s162
      %s165 = sphi 0, %s164
      %s179 = sphi 0, %s165
      %s183 = sphi 0, %s183
      %s185 = sphi 0, %s183
      %s186 = sphi 0, %s185
      %s200 = sphi 0, %s186
      %s204 = sphi 0, %s204
      %s206 = sphi 0, %s204
      %s207 = sphi 0, %s206
      %s221 = sphi 0, %s207
      %s225 = sphi 0, %s225
      %s227 = sphi 0, %s225
      %s228 = sphi 0, %s227
      %s242 = sphi 0, %s228
      %s246 = sphi 0, %s246
      %s248 = sphi 0, %s246
      %s249 = sphi 0, %s248
      %s263 = sphi 0, %s249
      %s267 = sphi 0, %s267
      %s269 = sphi 0, %s267
      %s270 = sphi 0, %s269
      %s284 = sphi 0, %s270
      %s288 = sphi 0, %s288
      %s290 = sphi 0, %s288
      %s291 = sphi 0, %s290
      %s305 = sphi 0, %s291
      %s311 = sphi 0, %s313
      %s314 = sphi 0, %s311
      %s315 = sphi 0, %s314
      %s331 = sphi 0, %s315
      %s337 = sphi 0, %s339
      %s340 = sphi 0, %s337
      %s341 = sphi 0, %s340
      %s357 = sphi 0, %s341
    $region4: #{transformer_forward.1} parent=1 // loop_header_branch
      %35 = sbr.rel (%p33) target = $region8
    $region5: #{transformer_forward.1} parent=1 // loop_body
      %s37 = ssub.s32 %s32, 1
      %s38 = ssub.s32 %s32, 2
      %s45 = sadd.s32 1, %s40
      %p46 = scmp.ge.s32.totalorder %s45, 2
      %s47 = scalar_select %p46, 0, %s45
      %s48 = sadd.s32 1, %s39
      %s49 = scalar_select %p46, %s48, %s39
      %p50 = scmp.ge.s32.totalorder %s49, 4
      %s51 = scalar_select %p50, 0, %s49
      %s52 = ssub.s32 %s39, %s51
      %p53 = scmp.eq.s32.totalorder %s52, 0
      %s55 = sadd.s32 %s54, 1
      %s56 = scalar_select %p53, %s54, %s55
      %p59 = pneg %p53
      %p60 = scmp.eq.s32.totalorder %s32, 7
      %p61 = por %p59, %p60
      %p62 = scmp.ne.s32.totalorder %s54, %s57
      %p63 = scmp.eq.s32.totalorder %s32, 0
      %p64 = por %p62, %p63
      %p65 = scmp.ne.s32.totalorder %s54, %s57
      %p66 = scmp.eq.s32.totalorder %s37, 7
      %p67 = por %p65, %p66
      %p68 = scmp.ne.s32.totalorder %s57, %s58
      %p69 = scmp.eq.s32.totalorder %s37, 0
      %p70 = por %p68, %p69
      %p71 = scmp.ne.s32.totalorder %s57, %s58
      %p72 = scmp.eq.s32.totalorder %s38, 7
      %p73 = por %p71, %p72
      %p75 = scmp.ne.s32.totalorder %s58, %s74
      %p76 = scmp.eq.s32.totalorder %s38, 0
      %p77 = por %p75, %p76
      %s79 = sadd.s32 %s78, 1
      %p82 = scmp.eq.s32.totalorder %s32, 7
      %p83 = scmp.ne.s32.totalorder %s78, %s80
      %p84 = scmp.eq.s32.totalorder %s32, 0
      %p85 = por %p83, %p84
      %p86 = scmp.ne.s32.totalorder %s78, %s80
      %p87 = scmp.eq.s32.totalorder %s37, 7
      %p88 = por %p86, %p87
      %p89 = scmp.ne.s32.totalorder %s80, %s81
      %p90 = scmp.eq.s32.totalorder %s37, 0
      %p91 = por %p89, %p90
      %p92 = scmp.ne.s32.totalorder %s80, %s81
      %p93 = scmp.eq.s32.totalorder %s38, 7
      %p94 = por %p92, %p93
      %p96 = scmp.ne.s32.totalorder %s81, %s95
      %p97 = scmp.eq.s32.totalorder %s38, 0
      %p98 = por %p96, %p97
      %s100 = sadd.s32 %s99, 1
      %p103 = scmp.eq.s32.totalorder %s32, 7
      %p104 = scmp.ne.s32.totalorder %s99, %s101
      %p105 = scmp.eq.s32.totalorder %s32, 0
      %p106 = por %p104, %p105
      %p107 = scmp.ne.s32.totalorder %s99, %s101
      %p108 = scmp.eq.s32.totalorder %s37, 7
      %p109 = por %p107, %p108
      %p110 = scmp.ne.s32.totalorder %s101, %s102
      %p111 = scmp.eq.s32.totalorder %s37, 0
      %p112 = por %p110, %p111
      %p113 = scmp.ne.s32.totalorder %s101, %s102
      %p114 = scmp.eq.s32.totalorder %s38, 7
      %p115 = por %p113, %p114
      %p117 = scmp.ne.s32.totalorder %s102, %s116
      %p118 = scmp.eq.s32.totalorder %s38, 0
      %p119 = por %p117, %p118
      %s121 = sadd.s32 %s120, 1
      %p124 = scmp.eq.s32.totalorder %s32, 7
      %p125 = scmp.ne.s32.totalorder %s120, %s122
      %p126 = scmp.eq.s32.totalorder %s32, 0
      %p127 = por %p125, %p126
      %p128 = scmp.ne.s32.totalorder %s120, %s122
      %p129 = scmp.eq.s32.totalorder %s37, 7
      %p130 = por %p128, %p129
      %p131 = scmp.ne.s32.totalorder %s122, %s123
      %p132 = scmp.eq.s32.totalorder %s37, 0
      %p133 = por %p131, %p132
      %p134 = scmp.ne.s32.totalorder %s122, %s123
      %p135 = scmp.eq.s32.totalorder %s38, 7
      %p136 = por %p134, %p135
      %p138 = scmp.ne.s32.totalorder %s123, %s137
      %p139 = scmp.eq.s32.totalorder %s38, 0
      %p140 = por %p138, %p139
      %s142 = sadd.s32 %s141, 1
      %p145 = scmp.eq.s32.totalorder %s32, 7
      %p146 = scmp.ne.s32.totalorder %s141, %s143
      %p147 = scmp.eq.s32.totalorder %s32, 0
      %p148 = por %p146, %p147
      %p149 = scmp.ne.s32.totalorder %s141, %s143
      %p150 = scmp.eq.s32.totalorder %s37, 7
      %p151 = por %p149, %p150
      %p152 = scmp.ne.s32.totalorder %s143, %s144
      %p153 = scmp.eq.s32.totalorder %s37, 0
      %p154 = por %p152, %p153
      %p155 = scmp.ne.s32.totalorder %s143, %s144
      %p156 = scmp.eq.s32.totalorder %s38, 7
      %p157 = por %p155, %p156
      %p159 = scmp.ne.s32.totalorder %s144, %s158
      %p160 = scmp.eq.s32.totalorder %s38, 0
      %p161 = por %p159, %p160
      %s163 = sadd.s32 %s162, 1
      %p166 = scmp.eq.s32.totalorder %s32, 7
      %p167 = scmp.ne.s32.totalorder %s162, %s164
      %p168 = scmp.eq.s32.totalorder %s32, 0
      %p169 = por %p167, %p168
      %p170 = scmp.ne.s32.totalorder %s162, %s164
      %p171 = scmp.eq.s32.totalorder %s37, 7
      %p172 = por %p170, %p171
      %p173 = scmp.ne.s32.totalorder %s164, %s165
      %p174 = scmp.eq.s32.totalorder %s37, 0
      %p175 = por %p173, %p174
      %p176 = scmp.ne.s32.totalorder %s164, %s165
      %p177 = scmp.eq.s32.totalorder %s38, 7
      %p178 = por %p176, %p177
      %p180 = scmp.ne.s32.totalorder %s165, %s179
      %p181 = scmp.eq.s32.totalorder %s38, 0
      %p182 = por %p180, %p181
      %s184 = sadd.s32 %s183, 1
      %p187 = scmp.eq.s32.totalorder %s32, 7
      %p188 = scmp.ne.s32.totalorder %s183, %s185
      %p189 = scmp.eq.s32.totalorder %s32, 0
      %p190 = por %p188, %p189
      %p191 = scmp.ne.s32.totalorder %s183, %s185
      %p192 = scmp.eq.s32.totalorder %s37, 7
      %p193 = por %p191, %p192
      %p194 = scmp.ne.s32.totalorder %s185, %s186
      %p195 = scmp.eq.s32.totalorder %s37, 0
      %p196 = por %p194, %p195
      %p197 = scmp.ne.s32.totalorder %s185, %s186
      %p198 = scmp.eq.s32.totalorder %s38, 7
      %p199 = por %p197, %p198
      %p201 = scmp.ne.s32.totalorder %s186, %s200
      %p202 = scmp.eq.s32.totalorder %s38, 0
      %p203 = por %p201, %p202
      %s205 = sadd.s32 %s204, 1
      %p208 = scmp.eq.s32.totalorder %s32, 7
      %p209 = scmp.ne.s32.totalorder %s204, %s206
      %p210 = scmp.eq.s32.totalorder %s32, 0
      %p211 = por %p209, %p210
      %p212 = scmp.ne.s32.totalorder %s204, %s206
      %p213 = scmp.eq.s32.totalorder %s37, 7
      %p214 = por %p212, %p213
      %p215 = scmp.ne.s32.totalorder %s206, %s207
      %p216 = scmp.eq.s32.totalorder %s37, 0
      %p217 = por %p215, %p216
      %p218 = scmp.ne.s32.totalorder %s206, %s207
      %p219 = scmp.eq.s32.totalorder %s38, 7
      %p220 = por %p218, %p219
      %p222 = scmp.ne.s32.totalorder %s207, %s221
      %p223 = scmp.eq.s32.totalorder %s38, 0
      %p224 = por %p222, %p223
      %s226 = sadd.s32 %s225, 1
      %p229 = scmp.eq.s32.totalorder %s32, 7
      %p230 = scmp.ne.s32.totalorder %s225, %s227
      %p231 = scmp.eq.s32.totalorder %s32, 0
      %p232 = por %p230, %p231
      %p233 = scmp.ne.s32.totalorder %s225, %s227
      %p234 = scmp.eq.s32.totalorder %s37, 7
      %p235 = por %p233, %p234
      %p236 = scmp.ne.s32.totalorder %s227, %s228
      %p237 = scmp.eq.s32.totalorder %s37, 0
      %p238 = por %p236, %p237
      %p239 = scmp.ne.s32.totalorder %s227, %s228
      %p240 = scmp.eq.s32.totalorder %s38, 7
      %p241 = por %p239, %p240
      %p243 = scmp.ne.s32.totalorder %s228, %s242
      %p244 = scmp.eq.s32.totalorder %s38, 0
      %p245 = por %p243, %p244
      %s247 = sadd.s32 %s246, 1
      %p250 = scmp.eq.s32.totalorder %s32, 7
      %p251 = scmp.ne.s32.totalorder %s246, %s248
      %p252 = scmp.eq.s32.totalorder %s32, 0
      %p253 = por %p251, %p252
      %p254 = scmp.ne.s32.totalorder %s246, %s248
      %p255 = scmp.eq.s32.totalorder %s37, 7
      %p256 = por %p254, %p255
      %p257 = scmp.ne.s32.totalorder %s248, %s249
      %p258 = scmp.eq.s32.totalorder %s37, 0
      %p259 = por %p257, %p258
      %p260 = scmp.ne.s32.totalorder %s248, %s249
      %p261 = scmp.eq.s32.totalorder %s38, 7
      %p262 = por %p260, %p261
      %p264 = scmp.ne.s32.totalorder %s249, %s263
      %p265 = scmp.eq.s32.totalorder %s38, 0
      %p266 = por %p264, %p265
      %s268 = sadd.s32 %s267, 1
      %p271 = scmp.eq.s32.totalorder %s32, 7
      %p272 = scmp.ne.s32.totalorder %s267, %s269
      %p273 = scmp.eq.s32.totalorder %s32, 0
      %p274 = por %p272, %p273
      %p275 = scmp.ne.s32.totalorder %s267, %s269
      %p276 = scmp.eq.s32.totalorder %s37, 7
      %p277 = por %p275, %p276
      %p278 = scmp.ne.s32.totalorder %s269, %s270
      %p279 = scmp.eq.s32.totalorder %s37, 0
      %p280 = por %p278, %p279
      %p281 = scmp.ne.s32.totalorder %s269, %s270
      %p282 = scmp.eq.s32.totalorder %s38, 7
      %p283 = por %p281, %p282
      %p285 = scmp.ne.s32.totalorder %s270, %s284
      %p286 = scmp.eq.s32.totalorder %s38, 0
      %p287 = por %p285, %p286
      %s289 = sadd.s32 %s288, 1
      %p292 = scmp.eq.s32.totalorder %s32, 7
      %p293 = scmp.ne.s32.totalorder %s288, %s290
      %p294 = scmp.eq.s32.totalorder %s32, 0
      %p295 = por %p293, %p294
      %p296 = scmp.ne.s32.totalorder %s288, %s290
      %p297 = scmp.eq.s32.totalorder %s37, 7
      %p298 = por %p296, %p297
      %p299 = scmp.ne.s32.totalorder %s290, %s291
      %p300 = scmp.eq.s32.totalorder %s37, 0
      %p301 = por %p299, %p300
      %p302 = scmp.ne.s32.totalorder %s290, %s291
      %p303 = scmp.eq.s32.totalorder %s38, 7
      %p304 = por %p302, %p303
      %p306 = scmp.ne.s32.totalorder %s291, %s305
      %p307 = scmp.eq.s32.totalorder %s38, 0
      %p308 = por %p306, %p307
      %s309 = ssub.s32 %s39, %s51
      %p310 = scmp.eq.s32.totalorder %s309, 0
      %s312 = sadd.s32 %s311, 1
      %s313 = scalar_select %p310, %s311, %s312
      %p316 = pneg %p310
      %p317 = scmp.eq.s32.totalorder %s32, 7
      %p318 = por %p316, %p317
      %p319 = scmp.ne.s32.totalorder %s311, %s314
      %p320 = scmp.eq.s32.totalorder %s32, 0
      %p321 = por %p319, %p320
      %p322 = scmp.ne.s32.totalorder %s311, %s314
      %p323 = scmp.eq.s32.totalorder %s37, 7
      %p324 = por %p322, %p323
      %p325 = scmp.ne.s32.totalorder %s314, %s315
      %p326 = scmp.eq.s32.totalorder %s37, 0
      %p327 = por %p325, %p326
      %p328 = scmp.ne.s32.totalorder %s314, %s315
      %p329 = scmp.eq.s32.totalorder %s38, 7
      %p330 = por %p328, %p329
      %p332 = scmp.ne.s32.totalorder %s315, %s331
      %p333 = scmp.eq.s32.totalorder %s38, 0
      %p334 = por %p332, %p333
      %s335 = ssub.s32 %s39, %s51
      %p336 = scmp.eq.s32.totalorder %s335, 0
      %s338 = sadd.s32 %s337, 1
      %s339 = scalar_select %p336, %s337, %s338
      %p342 = pneg %p336
      %p343 = scmp.eq.s32.totalorder %s32, 7
      %p344 = por %p342, %p343
      %p345 = scmp.ne.s32.totalorder %s337, %s340
      %p346 = scmp.eq.s32.totalorder %s32, 0
      %p347 = por %p345, %p346
      %p348 = scmp.ne.s32.totalorder %s337, %s340
      %p349 = scmp.eq.s32.totalorder %s37, 7
      %p350 = por %p348, %p349
      %p351 = scmp.ne.s32.totalorder %s340, %s341
      %p352 = scmp.eq.s32.totalorder %s37, 0
      %p353 = por %p351, %p352
      %p354 = scmp.ne.s32.totalorder %s340, %s341
      %p355 = scmp.eq.s32.totalorder %s38, 7
      %p356 = por %p354, %p355
      %p358 = scmp.ne.s32.totalorder %s341, %s357
      %p359 = scmp.eq.s32.totalorder %s38, 0
      %p360 = por %p358, %p359
      %p361 = scmp.le.s32.totalorder 1, %s32
      %p362 = scmp.lt.s32.totalorder %s32, 9
      %p363 = pnand %p361, %p362
      %p364 = pneg %p363
      // Predicated region
      $region9: #{transformer_forward.1} parent=5 // pred_check
        _
      $region10: #{transformer_forward.1} parent=5 // pred_check_branch
        %366 = sbr.rel (%p363) target = $region12
      $region11: #{transformer_forward.1} parent=5 // pred_region
        %s367 = ssub.s32 %s32, 1
        // Predicated region
        $region13: #{transformer_forward.1} parent=11 // pred_check
          %p368 = pneg %p91
        $region14: #{transformer_forward.1} parent=11 // pred_check_branch
          %370 = sbr.rel (%p368) target = $region16
        $region15: #{transformer_forward.1} parent=11 // pred_region
          _
        $region16: #{transformer_forward.1} parent=11 // pred_fallthru
          _
        // Predicated region
        $region17: #{transformer_forward.1} parent=11 // pred_check
          %p371 = pneg %p112
        $region18: #{transformer_forward.1} parent=11 // pred_check_branch
          %373 = sbr.rel (%p371) target = $region20
        $region19: #{transformer_forward.1} parent=11 // pred_region
          _
        $region20: #{transformer_forward.1} parent=11 // pred_fallthru
          _
        // Predicated region
        $region21: #{transformer_forward.1} parent=11 // pred_check
          %p374 = pneg %p133
        $region22: #{transformer_forward.1} parent=11 // pred_check_branch
          %376 = sbr.rel (%p374) target = $region24
        $region23: #{transformer_forward.1} parent=11 // pred_region
          %378 = vsyncadd [#allocation9], 0
          %s379 = sshll.u32 %s3, 4
          %s380 = int_to_ptr.hbm [resolvable:$true] %s379
          %s381 = sshll.u32 [#allocation8], 4
          %s382 = int_to_ptr.vmem [resolvable:$true] %s381
          %387 = dma.hbm_to_vmem [thread:$0]  %s380, 6144, %s382, [#allocation9], 192, 192, 12
        $region24: #{transformer_forward.1} parent=11 // pred_fallthru
          _
        // Predicated region
        $region25: #{transformer_forward.1} parent=11 // pred_check
          %p388 = pneg %p154
        $region26: #{transformer_forward.1} parent=11 // pred_check_branch
          %390 = sbr.rel (%p388) target = $region28
        $region27: #{transformer_forward.1} parent=11 // pred_region
          %392 = vsyncadd [#allocation9], 0
          %s393 = sshll.u32 %s4, 4
          %s394 = int_to_ptr.hbm [resolvable:$true] %s393
          %s395 = sshll.u32 [#allocation10], 4
          %s396 = int_to_ptr.vmem [resolvable:$true] %s395
          %401 = dma.hbm_to_vmem [thread:$0]  %s394, 2048, %s396, [#allocation9], 64, 64, 4
        $region28: #{transformer_forward.1} parent=11 // pred_fallthru
          _
        // Predicated region
        $region29: #{transformer_forward.1} parent=11 // pred_check
          %p402 = pneg %p175
        $region30: #{transformer_forward.1} parent=11 // pred_check_branch
          %404 = sbr.rel (%p402) target = $region32
        $region31: #{transformer_forward.1} parent=11 // pred_region
          _
        $region32: #{transformer_forward.1} parent=11 // pred_fallthru
          _
        // Predicated region
        $region33: #{transformer_forward.1} parent=11 // pred_check
          %p405 = pneg %p196
        $region34: #{transformer_forward.1} parent=11 // pred_check_branch
          %407 = sbr.rel (%p405) target = $region36
        $region35: #{transformer_forward.1} parent=11 // pred_region
          _
        $region36: #{transformer_forward.1} parent=11 // pred_fallthru
          _
        // Predicated region
        $region37: #{transformer_forward.1} parent=11 // pred_check
          %p408 = pneg %p217
        $region38: #{transformer_forward.1} parent=11 // pred_check_branch
          %410 = sbr.rel (%p408) target = $region40
        $region39: #{transformer_forward.1} parent=11 // pred_region
          _
        $region40: #{transformer_forward.1} parent=11 // pred_fallthru
          _
        // Predicated region
        $region41: #{transformer_forward.1} parent=11 // pred_check
          %p411 = pneg %p238
        $region42: #{transformer_forward.1} parent=11 // pred_check_branch
          %413 = sbr.rel (%p411) target = $region44
        $region43: #{transformer_forward.1} parent=11 // pred_region
          %415 = vsyncadd [#allocation12], 0
          %s416 = sshll.u32 %s8, 4
          %s417 = int_to_ptr.hbm [resolvable:$true] %s416
          %s418 = sshll.u32 [#allocation11], 4
          %s419 = int_to_ptr.vmem [resolvable:$true] %s418
          %424 = dma.hbm_to_vmem [thread:$0]  %s417, 4096, %s419, [#allocation12], 128, 128, 8
        $region44: #{transformer_forward.1} parent=11 // pred_fallthru
          _
        // Predicated region
        $region45: #{transformer_forward.1} parent=11 // pred_check
          %p425 = pneg %p259
        $region46: #{transformer_forward.1} parent=11 // pred_check_branch
          %427 = sbr.rel (%p425) target = $region48
        $region47: #{transformer_forward.1} parent=11 // pred_region
          _
        $region48: #{transformer_forward.1} parent=11 // pred_fallthru
          _
        // Predicated region
        $region49: #{transformer_forward.1} parent=11 // pred_check
          %p428 = pneg %p280
        $region50: #{transformer_forward.1} parent=11 // pred_check_branch
          %430 = sbr.rel (%p428) target = $region52
        $region51: #{transformer_forward.1} parent=11 // pred_region
          %432 = vsyncadd [#allocation12], 0
          %s433 = sshll.u32 %s10, 4
          %s434 = int_to_ptr.hbm [resolvable:$true] %s433
          %s435 = sshll.u32 [#allocation13], 4
          %s436 = int_to_ptr.vmem [resolvable:$true] %s435
          %441 = dma.hbm_to_vmem [thread:$0]  %s434, 4096, %s436, [#allocation12], 64, 64, 4
        $region52: #{transformer_forward.1} parent=11 // pred_fallthru
          _
        // Predicated region
        $region53: #{transformer_forward.1} parent=11 // pred_check
          %p442 = pneg %p301
        $region54: #{transformer_forward.1} parent=11 // pred_check_branch
          %444 = sbr.rel (%p442) target = $region56
        $region55: #{transformer_forward.1} parent=11 // pred_region
          %446 = vsyncadd [#allocation15], 0
          %s447 = sshll.u32 %s11, 4
          %s448 = int_to_ptr.hbm [resolvable:$true] %s447
          %s449 = sshll.u32 [#allocation14], 4
          %s450 = int_to_ptr.vmem [resolvable:$true] %s449
          %455 = dma.hbm_to_vmem [thread:$0]  %s448, 32, %s450, [#allocation15], 16, 16, 1
        $region56: #{transformer_forward.1} parent=11 // pred_fallthru
          _
      $region12: #{transformer_forward.1} parent=5 // pred_fallthru
        _
      %p456 = scmp.lt.s32.totalorder %s32, 8
      // Predicated region
      $region57: #{transformer_forward.1} parent=5 // pred_check
        %p457 = pneg %p456
      $region58: #{transformer_forward.1} parent=5 // pred_check_branch
        %459 = sbr.rel (%p457) target = $region60
      $region59: #{transformer_forward.1} parent=5 // pred_region
        // Predicated region
        $region61: #{transformer_forward.1} parent=59 // pred_check
          %p460 = pneg %p64
        $region62: #{transformer_forward.1} parent=59 // pred_check_branch
          %462 = sbr.rel (%p460) target = $region64
        $region63: #{transformer_forward.1} parent=59 // pred_region
          %s463 = sand.u32 %s54, 1
          %s464 = scalar_lea.sflag [#allocation6], %s463
          %s465 = sand.u32 %s54, 1
          %s466 = smul.addr %s465, 128
          %s467 = scalar_lea.vmem [#allocation5], %s466
          %469 = vsyncadd %s464, 0
          %s470 = smul.addr %s39, 16
          %s471 = smul.addr %s470, 8
          %s472 = scalar_lea.hbm %s0, %s471
          %s473 = sshll.u32 %s472, 4
          %s474 = int_to_ptr.hbm [resolvable:$true] %s473
          %s475 = sshll.u32 %s467, 4
          %s476 = int_to_ptr.vmem [resolvable:$true] %s475
          %481 = dma.hbm_to_vmem [thread:$0]  %s474, 2048, %s476, %s464, 128, 128, 8
        $region64: #{transformer_forward.1} parent=59 // pred_fallthru
          _
      $region60: #{transformer_forward.1} parent=5 // pred_fallthru
        _
      %p482 = scmp.le.s32.totalorder 1, %s32
      %p483 = scmp.lt.s32.totalorder %s32, 9
      %p484 = pnand %p482, %p483
      %p485 = pneg %p484
      // Predicated region
      $region65: #{transformer_forward.1} parent=5 // pred_check
        _
      $region66: #{transformer_forward.1} parent=5 // pred_check_branch
        %487 = sbr.rel (%p484) target = $region68
      $region67: #{transformer_forward.1} parent=5 // pred_region
        %s488 = ssub.s32 %s32, 1
        %s489 = sand.u32 %s57, 1
        %s490 = scalar_lea.sflag [#allocation6], %s489
        %s491 = sand.u32 %s57, 1
        %s492 = smul.addr %s491, 128
        %s493 = scalar_lea.vmem [#allocation5], %s492
        // Predicated region
        $region69: #{transformer_forward.1} parent=67 // pred_check
          %p494 = pneg %p70
        $region70: #{transformer_forward.1} parent=67 // pred_check_branch
          %496 = sbr.rel (%p494) target = $region72
        $region71: #{transformer_forward.1} parent=67 // pred_region
          %498 = dma.done %s490, 2048
        $region72: #{transformer_forward.1} parent=67 // pred_fallthru
          _
        // Predicated region
        $region73: #{transformer_forward.1} parent=67 // pred_check
          %p499 = pneg %p133
        $region74: #{transformer_forward.1} parent=67 // pred_check_branch
          %501 = sbr.rel (%p499) target = $region76
        $region75: #{transformer_forward.1} parent=67 // pred_region
          %503 = dma.done [#allocation9], 6144
        $region76: #{transformer_forward.1} parent=67 // pred_fallthru
          _
        // Predicated region
        $region77: #{transformer_forward.1} parent=67 // pred_check
          %p504 = pneg %p154
        $region78: #{transformer_forward.1} parent=67 // pred_check_branch
          %506 = sbr.rel (%p504) target = $region80
        $region79: #{transformer_forward.1} parent=67 // pred_region
          %508 = dma.done [#allocation9], 2048
        $region80: #{transformer_forward.1} parent=67 // pred_fallthru
          _
        // Predicated region
        $region81: #{transformer_forward.1} parent=67 // pred_check
          %p509 = pneg %p238
        $region82: #{transformer_forward.1} parent=67 // pred_check_branch
          %511 = sbr.rel (%p509) target = $region84
        $region83: #{transformer_forward.1} parent=67 // pred_region
          %513 = dma.done [#allocation12], 4096
        $region84: #{transformer_forward.1} parent=67 // pred_fallthru
          _
        // Predicated region
        $region85: #{transformer_forward.1} parent=67 // pred_check
          %p514 = pneg %p280
        $region86: #{transformer_forward.1} parent=67 // pred_check_branch
          %516 = sbr.rel (%p514) target = $region88
        $region87: #{transformer_forward.1} parent=67 // pred_region
          %518 = dma.done [#allocation12], 4096
        $region88: #{transformer_forward.1} parent=67 // pred_fallthru
          _
        // Predicated region
        $region89: #{transformer_forward.1} parent=67 // pred_check
          %p519 = pneg %p301
        $region90: #{transformer_forward.1} parent=67 // pred_check_branch
          %521 = sbr.rel (%p519) target = $region92
        $region91: #{transformer_forward.1} parent=67 // pred_region
          %523 = dma.done [#allocation15], 32
        $region92: #{transformer_forward.1} parent=67 // pred_fallthru
          _
        %s524 = sand.u32 %s57, 1
        %s525 = scalar_lea.sflag [#allocation6], %s524
        %s526 = sand.u32 %s57, 1
        %s527 = smul.addr %s526, 128
        %s528 = scalar_lea.vmem [#allocation5], %s527
        %p529 = pneg %p70
        %p530 = pneg %p67
        %p531 = pneg %p91
        %p532 = pneg %p88
        %p533 = pneg %p112
        %p534 = pneg %p109
        %p535 = pneg %p133
        %p536 = pneg %p130
        %p537 = pneg %p154
        %p538 = pneg %p151
        %p539 = pneg %p175
        %p540 = pneg %p172
        %p541 = pneg %p196
        %p542 = pneg %p193
        %p543 = pneg %p217
        %p544 = pneg %p214
        %p545 = pneg %p238
        %p546 = pneg %p235
        %p547 = pneg %p259
        %p548 = pneg %p256
        %p549 = pneg %p280
        %p550 = pneg %p277
        %p551 = pneg %p301
        %p552 = pneg %p298
        %p553 = pneg %p327
        %p554 = pneg %p324
        %s555 = sand.u32 %s314, 1
        %s556 = scalar_lea.sflag [#allocation7], %s555
        %s557 = sand.u32 %s314, 1
        %s558 = smul.addr %s557, 128
        %s559 = scalar_lea.vmem [#allocation16], %s558
        %p560 = pneg %p353
        %p561 = pneg %p350
        %s562 = sand.u32 %s340, 1
        %s563 = scalar_lea.sflag [#allocation18], %s562
        %s564 = sand.u32 %s340, 1
        %s565 = smul.addr %s564, 512
        %s566 = scalar_lea.vmem [#allocation17], %s565
        %p567 = scmp.eq.s32.totalorder %s42, 0
        // Predicated region
        $region93: #{transformer_forward.1} parent=67 // pred_check
          %p568 = pneg %p567
        $region94: #{transformer_forward.1} parent=67 // pred_check_branch
          %570 = sbr.rel (%p568) target = $region96
        $region95: #{transformer_forward.1} parent=67 // pred_region
          %v571 = vld [vmem:[%s493] sm:$0xff]
          %v572 = vld [vmem:[%s493 + $0x8] sm:$0xff]
          %v573 = vld [vmem:[%s493 + $0x10] sm:$0xff]
          %v574 = vld [vmem:[%s493 + $0x18] sm:$0xff]
          %v575 = vld [vmem:[%s493 + $0x20] sm:$0xff]
          %v576 = vld [vmem:[%s493 + $0x28] sm:$0xff]
          %v577 = vld [vmem:[%s493 + $0x30] sm:$0xff]
          %v578 = vld [vmem:[%s493 + $0x38] sm:$0xff]
          %v579 = vld [vmem:[%s493 + $0x40] sm:$0xff]
          %v580 = vld [vmem:[%s493 + $0x48] sm:$0xff]
          %v581 = vld [vmem:[%s493 + $0x50] sm:$0xff]
          %v582 = vld [vmem:[%s493 + $0x58] sm:$0xff]
          %v583 = vld [vmem:[%s493 + $0x60] sm:$0xff]
          %v584 = vld [vmem:[%s493 + $0x68] sm:$0xff]
          %v585 = vld [vmem:[%s493 + $0x70] sm:$0xff]
          %v586 = vld [vmem:[%s493 + $0x78] sm:$0xff]
          %587 = vst [vmem:[#allocation2] sm:$0xff] %v571
          %588 = vst [vmem:[#allocation2 + $0x8] sm:$0xff] %v572
          %589 = vst [vmem:[#allocation2 + $0x10] sm:$0xff] %v573
          %590 = vst [vmem:[#allocation2 + $0x18] sm:$0xff] %v574
          %591 = vst [vmem:[#allocation2 + $0x20] sm:$0xff] %v575
          %592 = vst [vmem:[#allocation2 + $0x28] sm:$0xff] %v576
          %593 = vst [vmem:[#allocation2 + $0x30] sm:$0xff] %v577
          %594 = vst [vmem:[#allocation2 + $0x38] sm:$0xff] %v578
          %595 = vst [vmem:[#allocation2 + $0x40] sm:$0xff] %v579
          %596 = vst [vmem:[#allocation2 + $0x48] sm:$0xff] %v580
          %597 = vst [vmem:[#allocation2 + $0x50] sm:$0xff] %v581
          %598 = vst [vmem:[#allocation2 + $0x58] sm:$0xff] %v582
          %599 = vst [vmem:[#allocation2 + $0x60] sm:$0xff] %v583
          %600 = vst [vmem:[#allocation2 + $0x68] sm:$0xff] %v584
          %601 = vst [vmem:[#allocation2 + $0x70] sm:$0xff] %v585
          %602 = vst [vmem:[#allocation2 + $0x78] sm:$0xff] %v586
        $region96: #{transformer_forward.1} parent=67 // pred_fallthru
          _
        %v603 = vld [vmem:[#allocation2] sm:$0xff]
        %v604 = vld [vmem:[#allocation2 + $0x8] sm:$0xff]
        %v605 = vld [vmem:[#allocation2 + $0x10] sm:$0xff]
        %v606 = vld [vmem:[#allocation2 + $0x18] sm:$0xff]
        %v607 = vld [vmem:[#allocation2 + $0x20] sm:$0xff]
        %v608 = vld [vmem:[#allocation2 + $0x28] sm:$0xff]
        %v609 = vld [vmem:[#allocation2 + $0x30] sm:$0xff]
        %v610 = vld [vmem:[#allocation2 + $0x38] sm:$0xff]
        %v611 = vld [vmem:[#allocation2 + $0x40] sm:$0xff]
        %v612 = vld [vmem:[#allocation2 + $0x48] sm:$0xff]
        %v613 = vld [vmem:[#allocation2 + $0x50] sm:$0xff]
        %v614 = vld [vmem:[#allocation2 + $0x58] sm:$0xff]
        %v615 = vld [vmem:[#allocation2 + $0x60] sm:$0xff]
        %v616 = vld [vmem:[#allocation2 + $0x68] sm:$0xff]
        %v617 = vld [vmem:[#allocation2 + $0x70] sm:$0xff]
        %v618 = vld [vmem:[#allocation2 + $0x78] sm:$0xff]
        %s619 = scalar_lea.vmem %s1, %s42
        %v620 = vld [vmem:[%s619] sm:$0x1]
        %s621 = scalar_lea.vmem %s2, %s42
        %v622 = vld [vmem:[%s621] sm:$0x1]
        %623 = vadd.xlane.f32.xlu0 %v603
        %v624 = vpop.xlane.xlu0 %623
        %625 = vadd.xlane.f32.xlu0 %v604
        %v626 = vpop.xlane.xlu0 %625
        %627 = vadd.xlane.f32.xlu0 %v605
        %v628 = vpop.xlane.xlu0 %627
        %629 = vadd.xlane.f32.xlu0 %v606
        %v630 = vpop.xlane.xlu0 %629
        %631 = vadd.xlane.f32.xlu0 %v607
        %v632 = vpop.xlane.xlu0 %631
        %633 = vadd.xlane.f32.xlu0 %v608
        %v634 = vpop.xlane.xlu0 %633
        %635 = vadd.xlane.f32.xlu0 %v609
        %v636 = vpop.xlane.xlu0 %635
        %637 = vadd.xlane.f32.xlu0 %v610
        %v638 = vpop.xlane.xlu0 %637
        %639 = vadd.xlane.f32.xlu0 %v611
        %v640 = vpop.xlane.xlu0 %639
        %641 = vadd.xlane.f32.xlu0 %v612
        %v642 = vpop.xlane.xlu0 %641
        %643 = vadd.xlane.f32.xlu0 %v613
        %v644 = vpop.xlane.xlu0 %643
        %645 = vadd.xlane.f32.xlu0 %v614
        %v646 = vpop.xlane.xlu0 %645
        %647 = vadd.xlane.f32.xlu0 %v615
        %v648 = vpop.xlane.xlu0 %647
        %649 = vadd.xlane.f32.xlu0 %v616
        %v650 = vpop.xlane.xlu0 %649
        %651 = vadd.xlane.f32.xlu0 %v617
        %v652 = vpop.xlane.xlu0 %651
        %653 = vadd.xlane.f32.xlu0 %v618
        %v654 = vpop.xlane.xlu0 %653
        %v655 = vrcp.pop 128.0
        %v656 = vmul.f32 128.0, %v655
        %v657 = vsub.f32 1.0, %v656
        %v658 = vmul.f32 %v655, %v657
        %v659 = vadd.f32 %v655, %v658
        %vm660 = vweird.f32 %v655
        %v661 = vsel %vm660, %v655, %v659
        %v662 = vmul.f32 %v624, %v661
        %v663 = vmul.f32 %v626, %v661
        %v664 = vmul.f32 %v628, %v661
        %v665 = vmul.f32 %v630, %v661
        %v666 = vmul.f32 %v632, %v661
        %v667 = vmul.f32 %v634, %v661
        %v668 = vmul.f32 %v636, %v661
        %v669 = vmul.f32 %v638, %v661
        %v670 = vmul.f32 %v640, %v661
        %v671 = vmul.f32 %v642, %v661
        %v672 = vmul.f32 %v644, %v661
        %v673 = vmul.f32 %v646, %v661
        %v674 = vmul.f32 %v648, %v661
        %v675 = vmul.f32 %v650, %v661
        %v676 = vmul.f32 %v652, %v661
        %v677 = vmul.f32 %v654, %v661
        %v678 = vsub.f32 %v603, %v662
        %v679 = vsub.f32 %v604, %v663
        %v680 = vsub.f32 %v605, %v664
        %v681 = vsub.f32 %v606, %v665
        %v682 = vsub.f32 %v607, %v666
        %v683 = vsub.f32 %v608, %v667
        %v684 = vsub.f32 %v609, %v668
        %v685 = vsub.f32 %v610, %v669
        %v686 = vsub.f32 %v611, %v670
        %v687 = vsub.f32 %v612, %v671
        %v688 = vsub.f32 %v613, %v672
        %v689 = vsub.f32 %v614, %v673
        %v690 = vsub.f32 %v615, %v674
        %v691 = vsub.f32 %v616, %v675
        %v692 = vsub.f32 %v617, %v676
        %v693 = vsub.f32 %v618, %v677
        %v694 = vmul.f32 %v678, %v678
        %v695 = vmul.f32 %v679, %v679
        %v696 = vmul.f32 %v680, %v680
        %v697 = vmul.f32 %v681, %v681
        %v698 = vmul.f32 %v682, %v682
        %v699 = vmul.f32 %v683, %v683
        %v700 = vmul.f32 %v684, %v684
        %v701 = vmul.f32 %v685, %v685
        %v702 = vmul.f32 %v686, %v686
        %v703 = vmul.f32 %v687, %v687
        %v704 = vmul.f32 %v688, %v688
        %v705 = vmul.f32 %v689, %v689
        %v706 = vmul.f32 %v690, %v690
        %v707 = vmul.f32 %v691, %v691
        %v708 = vmul.f32 %v692, %v692
        %v709 = vmul.f32 %v693, %v693
        %710 = vadd.xlane.f32.xlu0 %v694
        %v711 = vpop.xlane.xlu0 %710
        %712 = vadd.xlane.f32.xlu0 %v695
        %v713 = vpop.xlane.xlu0 %712
        %714 = vadd.xlane.f32.xlu0 %v696
        %v715 = vpop.xlane.xlu0 %714
        %716 = vadd.xlane.f32.xlu0 %v697
        %v717 = vpop.xlane.xlu0 %716
        %718 = vadd.xlane.f32.xlu0 %v698
        %v719 = vpop.xlane.xlu0 %718
        %720 = vadd.xlane.f32.xlu0 %v699
        %v721 = vpop.xlane.xlu0 %720
        %722 = vadd.xlane.f32.xlu0 %v700
        %v723 = vpop.xlane.xlu0 %722
        %724 = vadd.xlane.f32.xlu0 %v701
        %v725 = vpop.xlane.xlu0 %724
        %726 = vadd.xlane.f32.xlu0 %v702
        %v727 = vpop.xlane.xlu0 %726
        %728 = vadd.xlane.f32.xlu0 %v703
        %v729 = vpop.xlane.xlu0 %728
        %730 = vadd.xlane.f32.xlu0 %v704
        %v731 = vpop.xlane.xlu0 %730
        %732 = vadd.xlane.f32.xlu0 %v705
        %v733 = vpop.xlane.xlu0 %732
        %734 = vadd.xlane.f32.xlu0 %v706
        %v735 = vpop.xlane.xlu0 %734
        %736 = vadd.xlane.f32.xlu0 %v707
        %v737 = vpop.xlane.xlu0 %736
        %738 = vadd.xlane.f32.xlu0 %v708
        %v739 = vpop.xlane.xlu0 %738
        %740 = vadd.xlane.f32.xlu0 %v709
        %v741 = vpop.xlane.xlu0 %740
        %v742 = vmul.f32 %v711, %v661
        %v743 = vmul.f32 %v713, %v661
        %v744 = vmul.f32 %v715, %v661
        %v745 = vmul.f32 %v717, %v661
        %v746 = vmul.f32 %v719, %v661
        %v747 = vmul.f32 %v721, %v661
        %v748 = vmul.f32 %v723, %v661
        %v749 = vmul.f32 %v725, %v661
        %v750 = vmul.f32 %v727, %v661
        %v751 = vmul.f32 %v729, %v661
        %v752 = vmul.f32 %v731, %v661
        %v753 = vmul.f32 %v733, %v661
        %v754 = vmul.f32 %v735, %v661
        %v755 = vmul.f32 %v737, %v661
        %v756 = vmul.f32 %v739, %v661
        %v757 = vmul.f32 %v741, %v661
        %v758 = vadd.f32 %v742, 1e-05
        %v759 = vadd.f32 %v743, 1e-05
        %v760 = vadd.f32 %v744, 1e-05
        %v761 = vadd.f32 %v745, 1e-05
        %v762 = vadd.f32 %v746, 1e-05
        %v763 = vadd.f32 %v747, 1e-05
        %v764 = vadd.f32 %v748, 1e-05
        %v765 = vadd.f32 %v749, 1e-05
        %v766 = vadd.f32 %v750, 1e-05
        %v767 = vadd.f32 %v751, 1e-05
        %v768 = vadd.f32 %v752, 1e-05
        %v769 = vadd.f32 %v753, 1e-05
        %v770 = vadd.f32 %v754, 1e-05
        %v771 = vadd.f32 %v755, 1e-05
        %v772 = vadd.f32 %v756, 1e-05
        %v773 = vadd.f32 %v757, 1e-05
        %v774 = vrsqrt.pop %v758
        %v775 = vmul.f32 %v774, %v758
        %v776 = vmul.f32 %v775, %v774
        %v777 = vmul.f32 0.5, %v776
        %v778 = vsub.f32 1.5, %v777
        %v779 = vmul.f32 %v774, %v778
        %vm780 = vweird.f32 %v758
        %vm781 = vweird.f32 %v774
        %vm782 = vmor %vm780, %vm781
        %v783 = vsel %vm782, %v774, %v779
        %v784 = vrsqrt.pop %v759
        %v785 = vmul.f32 %v784, %v759
        %v786 = vmul.f32 %v785, %v784
        %v787 = vmul.f32 0.5, %v786
        %v788 = vsub.f32 1.5, %v787
        %v789 = vmul.f32 %v784, %v788
        %vm790 = vweird.f32 %v759
        %vm791 = vweird.f32 %v784
        %vm792 = vmor %vm790, %vm791
        %v793 = vsel %vm792, %v784, %v789
        %v794 = vrsqrt.pop %v760
        %v795 = vmul.f32 %v794, %v760
        %v796 = vmul.f32 %v795, %v794
        %v797 = vmul.f32 0.5, %v796
        %v798 = vsub.f32 1.5, %v797
        %v799 = vmul.f32 %v794, %v798
        %vm800 = vweird.f32 %v760
        %vm801 = vweird.f32 %v794
        %vm802 = vmor %vm800, %vm801
        %v803 = vsel %vm802, %v794, %v799
        %v804 = vrsqrt.pop %v761
        %v805 = vmul.f32 %v804, %v761
        %v806 = vmul.f32 %v805, %v804
        %v807 = vmul.f32 0.5, %v806
        %v808 = vsub.f32 1.5, %v807
        %v809 = vmul.f32 %v804, %v808
        %vm810 = vweird.f32 %v761
        %vm811 = vweird.f32 %v804
        %vm812 = vmor %vm810, %vm811
        %v813 = vsel %vm812, %v804, %v809
        %v814 = vrsqrt.pop %v762
        %v815 = vmul.f32 %v814, %v762
        %v816 = vmul.f32 %v815, %v814
        %v817 = vmul.f32 0.5, %v816
        %v818 = vsub.f32 1.5, %v817
        %v819 = vmul.f32 %v814, %v818
        %vm820 = vweird.f32 %v762
        %vm821 = vweird.f32 %v814
        %vm822 = vmor %vm820, %vm821
        %v823 = vsel %vm822, %v814, %v819
        %v824 = vrsqrt.pop %v763
        %v825 = vmul.f32 %v824, %v763
        %v826 = vmul.f32 %v825, %v824
        %v827 = vmul.f32 0.5, %v826
        %v828 = vsub.f32 1.5, %v827
        %v829 = vmul.f32 %v824, %v828
        %vm830 = vweird.f32 %v763
        %vm831 = vweird.f32 %v824
        %vm832 = vmor %vm830, %vm831
        %v833 = vsel %vm832, %v824, %v829
        %v834 = vrsqrt.pop %v764
        %v835 = vmul.f32 %v834, %v764
        %v836 = vmul.f32 %v835, %v834
        %v837 = vmul.f32 0.5, %v836
        %v838 = vsub.f32 1.5, %v837
        %v839 = vmul.f32 %v834, %v838
        %vm840 = vweird.f32 %v764
        %vm841 = vweird.f32 %v834
        %vm842 = vmor %vm840, %vm841
        %v843 = vsel %vm842, %v834, %v839
        %v844 = vrsqrt.pop %v765
        %v845 = vmul.f32 %v844, %v765
        %v846 = vmul.f32 %v845, %v844
        %v847 = vmul.f32 0.5, %v846
        %v848 = vsub.f32 1.5, %v847
        %v849 = vmul.f32 %v844, %v848
        %vm850 = vweird.f32 %v765
        %vm851 = vweird.f32 %v844
        %vm852 = vmor %vm850, %vm851
        %v853 = vsel %vm852, %v844, %v849
        %v854 = vrsqrt.pop %v766
        %v855 = vmul.f32 %v854, %v766
        %v856 = vmul.f32 %v855, %v854
        %v857 = vmul.f32 0.5, %v856
        %v858 = vsub.f32 1.5, %v857
        %v859 = vmul.f32 %v854, %v858
        %vm860 = vweird.f32 %v766
        %vm861 = vweird.f32 %v854
        %vm862 = vmor %vm860, %vm861
        %v863 = vsel %vm862, %v854, %v859
        %v864 = vrsqrt.pop %v767
        %v865 = vmul.f32 %v864, %v767
        %v866 = vmul.f32 %v865, %v864
        %v867 = vmul.f32 0.5, %v866
        %v868 = vsub.f32 1.5, %v867
        %v869 = vmul.f32 %v864, %v868
        %vm870 = vweird.f32 %v767
        %vm871 = vweird.f32 %v864
        %vm872 = vmor %vm870, %vm871
        %v873 = vsel %vm872, %v864, %v869
        %v874 = vrsqrt.pop %v768
        %v875 = vmul.f32 %v874, %v768
        %v876 = vmul.f32 %v875, %v874
        %v877 = vmul.f32 0.5, %v876
        %v878 = vsub.f32 1.5, %v877
        %v879 = vmul.f32 %v874, %v878
        %vm880 = vweird.f32 %v768
        %vm881 = vweird.f32 %v874
        %vm882 = vmor %vm880, %vm881
        %v883 = vsel %vm882, %v874, %v879
        %v884 = vrsqrt.pop %v769
        %v885 = vmul.f32 %v884, %v769
        %v886 = vmul.f32 %v885, %v884
        %v887 = vmul.f32 0.5, %v886
        %v888 = vsub.f32 1.5, %v887
        %v889 = vmul.f32 %v884, %v888
        %vm890 = vweird.f32 %v769
        %vm891 = vweird.f32 %v884
        %vm892 = vmor %vm890, %vm891
        %v893 = vsel %vm892, %v884, %v889
        %v894 = vrsqrt.pop %v770
        %v895 = vmul.f32 %v894, %v770
        %v896 = vmul.f32 %v895, %v894
        %v897 = vmul.f32 0.5, %v896
        %v898 = vsub.f32 1.5, %v897
        %v899 = vmul.f32 %v894, %v898
        %vm900 = vweird.f32 %v770
        %vm901 = vweird.f32 %v894
        %vm902 = vmor %vm900, %vm901
        %v903 = vsel %vm902, %v894, %v899
        %v904 = vrsqrt.pop %v771
        %v905 = vmul.f32 %v904, %v771
        %v906 = vmul.f32 %v905, %v904
        %v907 = vmul.f32 0.5, %v906
        %v908 = vsub.f32 1.5, %v907
        %v909 = vmul.f32 %v904, %v908
        %vm910 = vweird.f32 %v771
        %vm911 = vweird.f32 %v904
        %vm912 = vmor %vm910, %vm911
        %v913 = vsel %vm912, %v904, %v909
        %v914 = vrsqrt.pop %v772
        %v915 = vmul.f32 %v914, %v772
        %v916 = vmul.f32 %v915, %v914
        %v917 = vmul.f32 0.5, %v916
        %v918 = vsub.f32 1.5, %v917
        %v919 = vmul.f32 %v914, %v918
        %vm920 = vweird.f32 %v772
        %vm921 = vweird.f32 %v914
        %vm922 = vmor %vm920, %vm921
        %v923 = vsel %vm922, %v914, %v919
        %v924 = vrsqrt.pop %v773
        %v925 = vmul.f32 %v924, %v773
        %v926 = vmul.f32 %v925, %v924
        %v927 = vmul.f32 0.5, %v926
        %v928 = vsub.f32 1.5, %v927
        %v929 = vmul.f32 %v924, %v928
        %vm930 = vweird.f32 %v773
        %vm931 = vweird.f32 %v924
        %vm932 = vmor %vm930, %vm931
        %v933 = vsel %vm932, %v924, %v929
        %v934 = vmul.f32 %v678, %v783
        %v935 = vmul.f32 %v679, %v793
        %v936 = vmul.f32 %v680, %v803
        %v937 = vmul.f32 %v681, %v813
        %v938 = vmul.f32 %v682, %v823
        %v939 = vmul.f32 %v683, %v833
        %v940 = vmul.f32 %v684, %v843
        %v941 = vmul.f32 %v685, %v853
        %v942 = vmul.f32 %v686, %v863
        %v943 = vmul.f32 %v687, %v873
        %v944 = vmul.f32 %v688, %v883
        %v945 = vmul.f32 %v689, %v893
        %v946 = vmul.f32 %v690, %v903
        %v947 = vmul.f32 %v691, %v913
        %v948 = vmul.f32 %v692, %v923
        %v949 = vmul.f32 %v693, %v933
        %v951 = vperm.slane %v620, 0
        %v953 = vmul.f32 %v934, %v951
        %v954 = vmul.f32 %v935, %v951
        %v955 = vmul.f32 %v936, %v951
        %v956 = vmul.f32 %v937, %v951
        %v957 = vmul.f32 %v938, %v951
        %v958 = vmul.f32 %v939, %v951
        %v959 = vmul.f32 %v940, %v951
        %v960 = vmul.f32 %v941, %v951
        %v961 = vmul.f32 %v942, %v951
        %v962 = vmul.f32 %v943, %v951
        %v963 = vmul.f32 %v944, %v951
        %v964 = vmul.f32 %v945, %v951
        %v965 = vmul.f32 %v946, %v951
        %v966 = vmul.f32 %v947, %v951
        %v967 = vmul.f32 %v948, %v951
        %v968 = vmul.f32 %v949, %v951
        %v970 = vperm.slane %v622, 0
        %v972 = vadd.f32 %v953, %v970
        %v973 = vadd.f32 %v954, %v970
        %v974 = vadd.f32 %v955, %v970
        %v975 = vadd.f32 %v956, %v970
        %v976 = vadd.f32 %v957, %v970
        %v977 = vadd.f32 %v958, %v970
        %v978 = vadd.f32 %v959, %v970
        %v979 = vadd.f32 %v960, %v970
        %v980 = vadd.f32 %v961, %v970
        %v981 = vadd.f32 %v962, %v970
        %v982 = vadd.f32 %v963, %v970
        %v983 = vadd.f32 %v964, %v970
        %v984 = vadd.f32 %v965, %v970
        %v985 = vadd.f32 %v966, %v970
        %v986 = vadd.f32 %v967, %v970
        %v987 = vadd.f32 %v968, %v970
        %v988 = vpack.c.bf16 %v973, %v972
        %v989 = vpack.c.bf16 %v975, %v974
        %v990 = vpack.c.bf16 %v977, %v976
        %v991 = vpack.c.bf16 %v979, %v978
        %v992 = vpack.c.bf16 %v981, %v980
        %v993 = vpack.c.bf16 %v983, %v982
        %v994 = vpack.c.bf16 %v985, %v984
        %v995 = vpack.c.bf16 %v987, %v986
        %s996 = smul.u32 %s42, 48
        %s997 = smul.addr %s996, 4
        %s998 = scalar_lea.vmem [#allocation8], %s997
        %v999 = vld [vmem:[%s998] sm:$0xff]
        %v1000 = vld [vmem:[%s998 + $0x8] sm:$0xf]
        %v1001 = vld [vmem:[%s998 + $0xc] sm:$0xff]
        %v1002 = vld [vmem:[%s998 + $0x14] sm:$0xf]
        %v1003 = vld [vmem:[%s998 + $0x18] sm:$0xff]
        %v1004 = vld [vmem:[%s998 + $0x20] sm:$0xf]
        %v1005 = vld [vmem:[%s998 + $0x24] sm:$0xff]
        %v1006 = vld [vmem:[%s998 + $0x2c] sm:$0xf]
        %v1007 = vld [vmem:[%s998 + $0x30] sm:$0xff]
        %v1008 = vld [vmem:[%s998 + $0x38] sm:$0xf]
        %v1009 = vld [vmem:[%s998 + $0x3c] sm:$0xff]
        %v1010 = vld [vmem:[%s998 + $0x44] sm:$0xf]
        %v1011 = vld [vmem:[%s998 + $0x48] sm:$0xff]
        %v1012 = vld [vmem:[%s998 + $0x50] sm:$0xf]
        %v1013 = vld [vmem:[%s998 + $0x54] sm:$0xff]
        %v1014 = vld [vmem:[%s998 + $0x5c] sm:$0xf]
        %v1015 = vld [vmem:[%s998 + $0x60] sm:$0xff]
        %v1016 = vld [vmem:[%s998 + $0x68] sm:$0xf]
        %v1017 = vld [vmem:[%s998 + $0x6c] sm:$0xff]
        %v1018 = vld [vmem:[%s998 + $0x74] sm:$0xf]
        %v1019 = vld [vmem:[%s998 + $0x78] sm:$0xff]
        %v1020 = vld [vmem:[%s998 + $0x80] sm:$0xf]
        %v1021 = vld [vmem:[%s998 + $0x84] sm:$0xff]
        %v1022 = vld [vmem:[%s998 + $0x8c] sm:$0xf]
        %v1023 = vld [vmem:[%s998 + $0x90] sm:$0xff]
        %v1024 = vld [vmem:[%s998 + $0x98] sm:$0xf]
        %v1025 = vld [vmem:[%s998 + $0x9c] sm:$0xff]
        %v1026 = vld [vmem:[%s998 + $0xa4] sm:$0xf]
        %v1027 = vld [vmem:[%s998 + $0xa8] sm:$0xff]
        %v1028 = vld [vmem:[%s998 + $0xb0] sm:$0xf]
        %v1029 = vld [vmem:[%s998 + $0xb4] sm:$0xff]
        %v1030 = vld [vmem:[%s998 + $0xbc] sm:$0xf]
        %v1063 = vunpack.c.l.b16 %v999
        %v1064 = vunpack.c.h.b16 %v999
        %v1065 = vunpack.c.l.b16 %v1000
        %v1066 = vunpack.c.l.b16 %v1001
        %v1067 = vunpack.c.h.b16 %v1001
        %v1068 = vunpack.c.l.b16 %v1002
        %v1069 = vunpack.c.l.b16 %v1003
        %v1070 = vunpack.c.h.b16 %v1003
        %v1071 = vunpack.c.l.b16 %v1004
        %v1072 = vunpack.c.l.b16 %v1005
        %v1073 = vunpack.c.h.b16 %v1005
        %v1074 = vunpack.c.l.b16 %v1006
        %v1075 = vunpack.c.l.b16 %v1007
        %v1076 = vunpack.c.h.b16 %v1007
        %v1077 = vunpack.c.l.b16 %v1008
        %v1078 = vunpack.c.l.b16 %v1009
        %v1079 = vunpack.c.h.b16 %v1009
        %v1080 = vunpack.c.l.b16 %v1010
        %v1081 = vunpack.c.l.b16 %v1011
        %v1082 = vunpack.c.h.b16 %v1011
        %v1083 = vunpack.c.l.b16 %v1012
        %v1084 = vunpack.c.l.b16 %v1013
        %v1085 = vunpack.c.h.b16 %v1013
        %v1086 = vunpack.c.l.b16 %v1014
        %v1087 = vunpack.c.l.b16 %v1015
        %v1088 = vunpack.c.h.b16 %v1015
        %v1089 = vunpack.c.l.b16 %v1016
        %v1090 = vunpack.c.l.b16 %v1017
        %v1091 = vunpack.c.h.b16 %v1017
        %v1092 = vunpack.c.l.b16 %v1018
        %v1093 = vunpack.c.l.b16 %v1019
        %v1094 = vunpack.c.h.b16 %v1019
        %v1095 = vunpack.c.l.b16 %v1020
        %v1096 = vunpack.c.l.b16 %v1021
        %v1097 = vunpack.c.h.b16 %v1021
        %v1098 = vunpack.c.l.b16 %v1022
        %v1099 = vunpack.c.l.b16 %v1023
        %v1100 = vunpack.c.h.b16 %v1023
        %v1101 = vunpack.c.l.b16 %v1024
        %v1102 = vunpack.c.l.b16 %v1025
        %v1103 = vunpack.c.h.b16 %v1025
        %v1104 = vunpack.c.l.b16 %v1026
        %v1105 = vunpack.c.l.b16 %v1027
        %v1106 = vunpack.c.h.b16 %v1027
        %v1107 = vunpack.c.l.b16 %v1028
        %v1108 = vunpack.c.l.b16 %v1029
        %v1109 = vunpack.c.h.b16 %v1029
        %v1110 = vunpack.c.l.b16 %v1030
        %v1111 = vpack.c.b16 %v1066, %v1063
        %v1112 = vpack.c.b16 %v1067, %v1064
        %v1113 = vpack.c.b16 %v1068, %v1065
        %v1114 = vpack.c.b16 %v1072, %v1069
        %v1115 = vpack.c.b16 %v1073, %v1070
        %v1116 = vpack.c.b16 %v1074, %v1071
        %v1117 = vpack.c.b16 %v1078, %v1075
        %v1118 = vpack.c.b16 %v1079, %v1076
        %v1119 = vpack.c.b16 %v1080, %v1077
        %v1120 = vpack.c.b16 %v1084, %v1081
        %v1121 = vpack.c.b16 %v1085, %v1082
        %v1122 = vpack.c.b16 %v1086, %v1083
        %v1123 = vpack.c.b16 %v1090, %v1087
        %v1124 = vpack.c.b16 %v1091, %v1088
        %v1125 = vpack.c.b16 %v1092, %v1089
        %v1126 = vpack.c.b16 %v1096, %v1093
        %v1127 = vpack.c.b16 %v1097, %v1094
        %v1128 = vpack.c.b16 %v1098, %v1095
        %v1129 = vpack.c.b16 %v1102, %v1099
        %v1130 = vpack.c.b16 %v1103, %v1100
        %v1131 = vpack.c.b16 %v1104, %v1101
        %v1132 = vpack.c.b16 %v1108, %v1105
        %v1133 = vpack.c.b16 %v1109, %v1106
        %v1134 = vpack.c.b16 %v1110, %v1107
        %1159 = vmatpush.bf16.msra.mxu0 %v1132
        %1160 = vmatpush.bf16.msra.mxu0 %v1129
        %1161 = vmatpush.bf16.msra.mxu0 %v1126
        %1162 = vmatpush.bf16.msra.mxu0 %v1123
        %1163 = vmatpush.bf16.msra.mxu0 %v1120
        %1164 = vmatpush.bf16.msra.mxu0 %v1117
        %1165 = vmatpush.bf16.msra.mxu0 %v1114
        %1166 = vmatpush.bf16.msra.mxu0 %v1111
        %1167 = vmatmul.bf16.gmra.mxu0 %v988
        %v1168 = vpop.f32.mrf.mxu0
        %v1169 = vadd.f32 0.0, %v1168
        %v1170 = vpop.f32.mrf.mxu0
        %v1171 = vadd.f32 0.0, %v1170
        %1172 = vmatmul.bf16.gmra.mxu0 %v989
        %v1173 = vpop.f32.mrf.mxu0
        %v1174 = vadd.f32 0.0, %v1173
        %v1175 = vpop.f32.mrf.mxu0
        %v1176 = vadd.f32 0.0, %v1175
        %1177 = vmatmul.bf16.gmra.mxu0 %v990
        %v1178 = vpop.f32.mrf.mxu0
        %v1179 = vadd.f32 0.0, %v1178
        %v1180 = vpop.f32.mrf.mxu0
        %v1181 = vadd.f32 0.0, %v1180
        %1182 = vmatmul.bf16.gmra.mxu0 %v991
        %v1183 = vpop.f32.mrf.mxu0
        %v1184 = vadd.f32 0.0, %v1183
        %v1185 = vpop.f32.mrf.mxu0
        %v1186 = vadd.f32 0.0, %v1185
        %1187 = vmatmul.bf16.gmra.mxu0 %v992
        %v1188 = vpop.f32.mrf.mxu0
        %v1189 = vadd.f32 0.0, %v1188
        %v1190 = vpop.f32.mrf.mxu0
        %v1191 = vadd.f32 0.0, %v1190
        %1192 = vmatmul.bf16.gmra.mxu0 %v993
        %v1193 = vpop.f32.mrf.mxu0
        %v1194 = vadd.f32 0.0, %v1193
        %v1195 = vpop.f32.mrf.mxu0
        %v1196 = vadd.f32 0.0, %v1195
        %1197 = vmatmul.bf16.gmra.mxu0 %v994
        %v1198 = vpop.f32.mrf.mxu0
        %v1199 = vadd.f32 0.0, %v1198
        %v1200 = vpop.f32.mrf.mxu0
        %v1201 = vadd.f32 0.0, %v1200
        %1202 = vmatmul.bf16.gmra.mxu0 %v995
        %v1203 = vpop.f32.mrf.mxu0
        %v1204 = vadd.f32 0.0, %v1203
        %v1205 = vpop.f32.mrf.mxu0
        %v1206 = vadd.f32 0.0, %v1205
        %1207 = vdwg.mxu0
        %1208 = vmatpush.bf16.msra.mxu0 %v1133
        %1209 = vmatpush.bf16.msra.mxu0 %v1130
        %1210 = vmatpush.bf16.msra.mxu0 %v1127
        %1211 = vmatpush.bf16.msra.mxu0 %v1124
        %1212 = vmatpush.bf16.msra.mxu0 %v1121
        %1213 = vmatpush.bf16.msra.mxu0 %v1118
        %1214 = vmatpush.bf16.msra.mxu0 %v1115
        %1215 = vmatpush.bf16.msra.mxu0 %v1112
        %1216 = vmatmul.bf16.gmra.mxu0 %v988
        %v1217 = vpop.f32.mrf.mxu0
        %v1218 = vadd.f32 0.0, %v1217
        %v1219 = vpop.f32.mrf.mxu0
        %v1220 = vadd.f32 0.0, %v1219
        %1221 = vmatmul.bf16.gmra.mxu0 %v989
        %v1222 = vpop.f32.mrf.mxu0
        %v1223 = vadd.f32 0.0, %v1222
        %v1224 = vpop.f32.mrf.mxu0
        %v1225 = vadd.f32 0.0, %v1224
        %1226 = vmatmul.bf16.gmra.mxu0 %v990
        %v1227 = vpop.f32.mrf.mxu0
        %v1228 = vadd.f32 0.0, %v1227
        %v1229 = vpop.f32.mrf.mxu0
        %v1230 = vadd.f32 0.0, %v1229
        %1231 = vmatmul.bf16.gmra.mxu0 %v991
        %v1232 = vpop.f32.mrf.mxu0
        %v1233 = vadd.f32 0.0, %v1232
        %v1234 = vpop.f32.mrf.mxu0
        %v1235 = vadd.f32 0.0, %v1234
        %1236 = vmatmul.bf16.gmra.mxu0 %v992
        %v1237 = vpop.f32.mrf.mxu0
        %v1238 = vadd.f32 0.0, %v1237
        %v1239 = vpop.f32.mrf.mxu0
        %v1240 = vadd.f32 0.0, %v1239
        %1241 = vmatmul.bf16.gmra.mxu0 %v993
        %v1242 = vpop.f32.mrf.mxu0
        %v1243 = vadd.f32 0.0, %v1242
        %v1244 = vpop.f32.mrf.mxu0
        %v1245 = vadd.f32 0.0, %v1244
        %1246 = vmatmul.bf16.gmra.mxu0 %v994
        %v1247 = vpop.f32.mrf.mxu0
        %v1248 = vadd.f32 0.0, %v1247
        %v1249 = vpop.f32.mrf.mxu0
        %v1250 = vadd.f32 0.0, %v1249
        %1251 = vmatmul.bf16.gmra.mxu0 %v995
        %v1252 = vpop.f32.mrf.mxu0
        %v1253 = vadd.f32 0.0, %v1252
        %v1254 = vpop.f32.mrf.mxu0
        %v1255 = vadd.f32 0.0, %v1254
        %1256 = vdwg.mxu0
        %1257 = vmatpush.bf16.msra.mxu0 %v1134
        %1258 = vmatpush.bf16.msra.mxu0 %v1131
        %1259 = vmatpush.bf16.msra.mxu0 %v1128
        %1260 = vmatpush.bf16.msra.mxu0 %v1125
        %1261 = vmatpush.bf16.msra.mxu0 %v1122
        %1262 = vmatpush.bf16.msra.mxu0 %v1119
        %1263 = vmatpush.bf16.msra.mxu0 %v1116
        %1264 = vmatpush.bf16.msra.mxu0 %v1113
        %1265 = vmatmul.bf16.gmra.mxu0 %v988
        %v1266 = vpop.f32.mrf.mxu0
        %v1267 = vadd.f32 0.0, %v1266
        %v1268 = vpop.f32.mrf.mxu0
        %v1269 = vadd.f32 0.0, %v1268
        %1270 = vmatmul.bf16.gmra.mxu0 %v989
        %v1271 = vpop.f32.mrf.mxu0
        %v1272 = vadd.f32 0.0, %v1271
        %v1273 = vpop.f32.mrf.mxu0
        %v1274 = vadd.f32 0.0, %v1273
        %1275 = vmatmul.bf16.gmra.mxu0 %v990
        %v1276 = vpop.f32.mrf.mxu0
        %v1277 = vadd.f32 0.0, %v1276
        %v1278 = vpop.f32.mrf.mxu0
        %v1279 = vadd.f32 0.0, %v1278
        %1280 = vmatmul.bf16.gmra.mxu0 %v991
        %v1281 = vpop.f32.mrf.mxu0
        %v1282 = vadd.f32 0.0, %v1281
        %v1283 = vpop.f32.mrf.mxu0
        %v1284 = vadd.f32 0.0, %v1283
        %1285 = vmatmul.bf16.gmra.mxu0 %v992
        %v1286 = vpop.f32.mrf.mxu0
        %v1287 = vadd.f32 0.0, %v1286
        %v1288 = vpop.f32.mrf.mxu0
        %v1289 = vadd.f32 0.0, %v1288
        %1290 = vmatmul.bf16.gmra.mxu0 %v993
        %v1291 = vpop.f32.mrf.mxu0
        %v1292 = vadd.f32 0.0, %v1291
        %v1293 = vpop.f32.mrf.mxu0
        %v1294 = vadd.f32 0.0, %v1293
        %1295 = vmatmul.bf16.gmra.mxu0 %v994
        %v1296 = vpop.f32.mrf.mxu0
        %v1297 = vadd.f32 0.0, %v1296
        %v1298 = vpop.f32.mrf.mxu0
        %v1299 = vadd.f32 0.0, %v1298
        %1300 = vmatmul.bf16.gmra.mxu0 %v995
        %v1301 = vpop.f32.mrf.mxu0
        %v1302 = vadd.f32 0.0, %v1301
        %v1303 = vpop.f32.mrf.mxu0
        %v1304 = vadd.f32 0.0, %v1303
        %1305 = vdwg.mxu0
        %v1306 = vmul.f32 %v1169, 0.17677669
        %v1307 = vmul.f32 %v1171, 0.17677669
        %v1308 = vmul.f32 %v1174, 0.17677669
        %v1309 = vmul.f32 %v1176, 0.17677669
        %v1310 = vmul.f32 %v1179, 0.17677669
        %v1311 = vmul.f32 %v1181, 0.17677669
        %v1312 = vmul.f32 %v1184, 0.17677669
        %v1313 = vmul.f32 %v1186, 0.17677669
        %v1314 = vmul.f32 %v1189, 0.17677669
        %v1315 = vmul.f32 %v1191, 0.17677669
        %v1316 = vmul.f32 %v1194, 0.17677669
        %v1317 = vmul.f32 %v1196, 0.17677669
        %v1318 = vmul.f32 %v1199, 0.17677669
        %v1319 = vmul.f32 %v1201, 0.17677669
        %v1320 = vmul.f32 %v1204, 0.17677669
        %v1321 = vmul.f32 %v1206, 0.17677669
        %v1322 = vpack.c.bf16 %v1306, %v1306
        %v1323 = vpack.c.bf16 %v1307, %v1307
        %v1324 = vpack.c.bf16 %v1308, %v1308
        %v1325 = vpack.c.bf16 %v1309, %v1309
        %v1326 = vpack.c.bf16 %v1310, %v1310
        %v1327 = vpack.c.bf16 %v1311, %v1311
        %v1328 = vpack.c.bf16 %v1312, %v1312
        %v1329 = vpack.c.bf16 %v1313, %v1313
        %v1330 = vpack.c.bf16 %v1314, %v1314
        %v1331 = vpack.c.bf16 %v1315, %v1315
        %v1332 = vpack.c.bf16 %v1316, %v1316
        %v1333 = vpack.c.bf16 %v1317, %v1317
        %v1334 = vpack.c.bf16 %v1318, %v1318
        %v1335 = vpack.c.bf16 %v1319, %v1319
        %v1336 = vpack.c.bf16 %v1320, %v1320
        %v1337 = vpack.c.bf16 %v1321, %v1321
        %1338 = vst [vmem:[#allocation3] sm:$0xf] %v1322
        %1339 = vst [vmem:[#allocation3 + $0xc] sm:$0xf] %v1323
        %1340 = vst [vmem:[#allocation3 + $0x18] sm:$0xf] %v1324
        %1341 = vst [vmem:[#allocation3 + $0x24] sm:$0xf] %v1325
        %1342 = vst [vmem:[#allocation3 + $0x30] sm:$0xf] %v1326
        %1343 = vst [vmem:[#allocation3 + $0x3c] sm:$0xf] %v1327
        %1344 = vst [vmem:[#allocation3 + $0x48] sm:$0xf] %v1328
        %1345 = vst [vmem:[#allocation3 + $0x54] sm:$0xf] %v1329
        %1346 = vst [vmem:[#allocation3 + $0x60] sm:$0xf] %v1330
        %1347 = vst [vmem:[#allocation3 + $0x6c] sm:$0xf] %v1331
        %1348 = vst [vmem:[#allocation3 + $0x78] sm:$0xf] %v1332
        %1349 = vst [vmem:[#allocation3 + $0x84] sm:$0xf] %v1333
        %1350 = vst [vmem:[#allocation3 + $0x90] sm:$0xf] %v1334
        %1351 = vst [vmem:[#allocation3 + $0x9c] sm:$0xf] %v1335
        %1352 = vst [vmem:[#allocation3 + $0xa8] sm:$0xf] %v1336
        %1353 = vst [vmem:[#allocation3 + $0xb4] sm:$0xf] %v1337
        %v1354 = vpack.c.bf16 %v1267, %v1218
        %v1355 = vpack.c.bf16 %v1269, %v1220
        %v1356 = vpack.c.bf16 %v1272, %v1223
        %v1357 = vpack.c.bf16 %v1274, %v1225
        %v1358 = vpack.c.bf16 %v1277, %v1228
        %v1359 = vpack.c.bf16 %v1279, %v1230
        %v1360 = vpack.c.bf16 %v1282, %v1233
        %v1361 = vpack.c.bf16 %v1284, %v1235
        %v1362 = vpack.c.bf16 %v1287, %v1238
        %v1363 = vpack.c.bf16 %v1289, %v1240
        %v1364 = vpack.c.bf16 %v1292, %v1243
        %v1365 = vpack.c.bf16 %v1294, %v1245
        %v1366 = vpack.c.bf16 %v1297, %v1248
        %v1367 = vpack.c.bf16 %v1299, %v1250
        %v1368 = vpack.c.bf16 %v1302, %v1253
        %v1369 = vpack.c.bf16 %v1304, %v1255
        %1370 = vst [vmem:[#allocation3 + $0x4] sm:$0xff] %v1354
        %1371 = vst [vmem:[#allocation3 + $0x10] sm:$0xff] %v1355
        %1372 = vst [vmem:[#allocation3 + $0x1c] sm:$0xff] %v1356
        %1373 = vst [vmem:[#allocation3 + $0x28] sm:$0xff] %v1357
        %1374 = vst [vmem:[#allocation3 + $0x34] sm:$0xff] %v1358
        %1375 = vst [vmem:[#allocation3 + $0x40] sm:$0xff] %v1359
        %1376 = vst [vmem:[#allocation3 + $0x4c] sm:$0xff] %v1360
        %1377 = vst [vmem:[#allocation3 + $0x58] sm:$0xff] %v1361
        %1378 = vst [vmem:[#allocation3 + $0x64] sm:$0xff] %v1362
        %1379 = vst [vmem:[#allocation3 + $0x70] sm:$0xff] %v1363
        %1380 = vst [vmem:[#allocation3 + $0x7c] sm:$0xff] %v1364
        %1381 = vst [vmem:[#allocation3 + $0x88] sm:$0xff] %v1365
        %1382 = vst [vmem:[#allocation3 + $0x94] sm:$0xff] %v1366
        %1383 = vst [vmem:[#allocation3 + $0xa0] sm:$0xff] %v1367
        %1384 = vst [vmem:[#allocation3 + $0xac] sm:$0xff] %v1368
        %1385 = vst [vmem:[#allocation3 + $0xb8] sm:$0xff] %v1369
        %v1386 = vld [vmem:[#allocation3] sm:$0xf]
        %v1387 = vld [vmem:[#allocation3 + $0xc] sm:$0xf]
        %v1388 = vld [vmem:[#allocation3 + $0x18] sm:$0xf]
        %v1389 = vld [vmem:[#allocation3 + $0x24] sm:$0xf]
        %v1390 = vld [vmem:[#allocation3 + $0x30] sm:$0xf]
        %v1391 = vld [vmem:[#allocation3 + $0x3c] sm:$0xf]
        %v1392 = vld [vmem:[#allocation3 + $0x48] sm:$0xf]
        %v1393 = vld [vmem:[#allocation3 + $0x54] sm:$0xf]
        %v1394 = vld [vmem:[#allocation3 + $0x60] sm:$0xf]
        %v1395 = vld [vmem:[#allocation3 + $0x6c] sm:$0xf]
        %v1396 = vld [vmem:[#allocation3 + $0x78] sm:$0xf]
        %v1397 = vld [vmem:[#allocation3 + $0x84] sm:$0xf]
        %v1398 = vld [vmem:[#allocation3 + $0x90] sm:$0xf]
        %v1399 = vld [vmem:[#allocation3 + $0x9c] sm:$0xf]
        %v1400 = vld [vmem:[#allocation3 + $0xa8] sm:$0xf]
        %v1401 = vld [vmem:[#allocation3 + $0xb4] sm:$0xf]
        %v1402 = vld [vmem:[#allocation3 + $0x4] sm:$0xf]
        %v1403 = vld [vmem:[#allocation3 + $0x10] sm:$0xf]
        %v1404 = vld [vmem:[#allocation3 + $0x1c] sm:$0xf]
        %v1405 = vld [vmem:[#allocation3 + $0x28] sm:$0xf]
        %v1406 = vld [vmem:[#allocation3 + $0x34] sm:$0xf]
        %v1407 = vld [vmem:[#allocation3 + $0x40] sm:$0xf]
        %v1408 = vld [vmem:[#allocation3 + $0x4c] sm:$0xf]
        %v1409 = vld [vmem:[#allocation3 + $0x58] sm:$0xf]
        %v1410 = vld [vmem:[#allocation3 + $0x64] sm:$0xf]
        %v1411 = vld [vmem:[#allocation3 + $0x70] sm:$0xf]
        %v1412 = vld [vmem:[#allocation3 + $0x7c] sm:$0xf]
        %v1413 = vld [vmem:[#allocation3 + $0x88] sm:$0xf]
        %v1414 = vld [vmem:[#allocation3 + $0x94] sm:$0xf]
        %v1415 = vld [vmem:[#allocation3 + $0xa0] sm:$0xf]
        %v1416 = vld [vmem:[#allocation3 + $0xac] sm:$0xf]
        %v1417 = vld [vmem:[#allocation3 + $0xb8] sm:$0xf]
        %v1418 = vld [vmem:[#allocation3 + $0x8] sm:$0xf]
        %v1419 = vld [vmem:[#allocation3 + $0x14] sm:$0xf]
        %v1420 = vld [vmem:[#allocation3 + $0x20] sm:$0xf]
        %v1421 = vld [vmem:[#allocation3 + $0x2c] sm:$0xf]
        %v1422 = vld [vmem:[#allocation3 + $0x38] sm:$0xf]
        %v1423 = vld [vmem:[#allocation3 + $0x44] sm:$0xf]
        %v1424 = vld [vmem:[#allocation3 + $0x50] sm:$0xf]
        %v1425 = vld [vmem:[#allocation3 + $0x5c] sm:$0xf]
        %v1426 = vld [vmem:[#allocation3 + $0x68] sm:$0xf]
        %v1427 = vld [vmem:[#allocation3 + $0x74] sm:$0xf]
        %v1428 = vld [vmem:[#allocation3 + $0x80] sm:$0xf]
        %v1429 = vld [vmem:[#allocation3 + $0x8c] sm:$0xf]
        %v1430 = vld [vmem:[#allocation3 + $0x98] sm:$0xf]
        %v1431 = vld [vmem:[#allocation3 + $0xa4] sm:$0xf]
        %v1432 = vld [vmem:[#allocation3 + $0xb0] sm:$0xf]
        %v1433 = vld [vmem:[#allocation3 + $0xbc] sm:$0xf]
        %v1450 = vunpack.c.l.b16 %v1386
        %v1451 = vunpack.c.l.b16 %v1387
        %v1452 = vunpack.c.l.b16 %v1388
        %v1453 = vunpack.c.l.b16 %v1389
        %v1454 = vunpack.c.l.b16 %v1390
        %v1455 = vunpack.c.l.b16 %v1391
        %v1456 = vunpack.c.l.b16 %v1392
        %v1457 = vunpack.c.l.b16 %v1393
        %v1458 = vunpack.c.l.b16 %v1394
        %v1459 = vunpack.c.l.b16 %v1395
        %v1460 = vunpack.c.l.b16 %v1396
        %v1461 = vunpack.c.l.b16 %v1397
        %v1462 = vunpack.c.l.b16 %v1398
        %v1463 = vunpack.c.l.b16 %v1399
        %v1464 = vunpack.c.l.b16 %v1400
        %v1465 = vunpack.c.l.b16 %v1401
        %v1466 = vpack.c.b16 %v1451, %v1450
        %v1467 = vpack.c.b16 %v1453, %v1452
        %v1468 = vpack.c.b16 %v1455, %v1454
        %v1469 = vpack.c.b16 %v1457, %v1456
        %v1470 = vpack.c.b16 %v1459, %v1458
        %v1471 = vpack.c.b16 %v1461, %v1460
        %v1472 = vpack.c.b16 %v1463, %v1462
        %v1473 = vpack.c.b16 %v1465, %v1464
        %v1490 = vunpack.c.l.b16 %v1402
        %v1491 = vunpack.c.l.b16 %v1403
        %v1492 = vunpack.c.l.b16 %v1404
        %v1493 = vunpack.c.l.b16 %v1405
        %v1494 = vunpack.c.l.b16 %v1406
        %v1495 = vunpack.c.l.b16 %v1407
        %v1496 = vunpack.c.l.b16 %v1408
        %v1497 = vunpack.c.l.b16 %v1409
        %v1498 = vunpack.c.l.b16 %v1410
        %v1499 = vunpack.c.l.b16 %v1411
        %v1500 = vunpack.c.l.b16 %v1412
        %v1501 = vunpack.c.l.b16 %v1413
        %v1502 = vunpack.c.l.b16 %v1414
        %v1503 = vunpack.c.l.b16 %v1415
        %v1504 = vunpack.c.l.b16 %v1416
        %v1505 = vunpack.c.l.b16 %v1417
        %v1506 = vpack.c.b16 %v1491, %v1490
        %v1507 = vpack.c.b16 %v1493, %v1492
        %v1508 = vpack.c.b16 %v1495, %v1494
        %v1509 = vpack.c.b16 %v1497, %v1496
        %v1510 = vpack.c.b16 %v1499, %v1498
        %v1511 = vpack.c.b16 %v1501, %v1500
        %v1512 = vpack.c.b16 %v1503, %v1502
        %v1513 = vpack.c.b16 %v1505, %v1504
        %vm1514 = vcmask 261120
        %v1516 = vsel %vm1514, %v1466, 0
        %v1519 = vsel %vm1514, %v1467, 0
        %v1522 = vsel %vm1514, %v1468, 0
        %v1525 = vsel %vm1514, %v1469, 0
        %v1528 = vsel %vm1514, %v1470, 0
        %v1531 = vsel %vm1514, %v1471, 0
        %v1534 = vsel %vm1514, %v1472, 0
        %v1537 = vsel %vm1514, %v1473, 0
        %v1540 = vsel %vm1514, %v1506, 0
        %v1543 = vsel %vm1514, %v1507, 0
        %v1546 = vsel %vm1514, %v1508, 0
        %v1549 = vsel %vm1514, %v1509, 0
        %v1552 = vsel %vm1514, %v1510, 0
        %v1555 = vsel %vm1514, %v1511, 0
        %v1558 = vsel %vm1514, %v1512, 0
        %v1561 = vsel %vm1514, %v1513, 0
        %1563 = vmatpush.bf16.xpose.msra.mxu0 %v1561
        %1564 = vmatpush.bf16.xpose.msra.mxu0 %v1558
        %1565 = vmatpush.bf16.xpose.msra.mxu0 %v1555
        %1566 = vmatpush.bf16.xpose.msra.mxu0 %v1552
        %1567 = vmatpush.bf16.xpose.msra.mxu0 %v1549
        %1568 = vmatpush.bf16.xpose.msra.mxu0 %v1546
        %1569 = vmatpush.bf16.xpose.msra.mxu0 %v1543
        %1570 = vmatpush.bf16.xpose.msra.mxu0 %v1540
        %1571 = vmatmul.bf16.gmra.mxu0 %v1516
        %v1572 = vpop.f32.mrf.mxu0
        %v1573 = vadd.f32 0.0, %v1572
        %v1574 = vpop.f32.mrf.mxu0
        %v1575 = vadd.f32 0.0, %v1574
        %1576 = vmatmul.bf16.gmra.mxu0 %v1519
        %v1577 = vpop.f32.mrf.mxu0
        %v1578 = vadd.f32 0.0, %v1577
        %v1579 = vpop.f32.mrf.mxu0
        %v1580 = vadd.f32 0.0, %v1579
        %1581 = vmatmul.bf16.gmra.mxu0 %v1522
        %v1582 = vpop.f32.mrf.mxu0
        %v1583 = vadd.f32 0.0, %v1582
        %v1584 = vpop.f32.mrf.mxu0
        %v1585 = vadd.f32 0.0, %v1584
        %1586 = vmatmul.bf16.gmra.mxu0 %v1525
        %v1587 = vpop.f32.mrf.mxu0
        %v1588 = vadd.f32 0.0, %v1587
        %v1589 = vpop.f32.mrf.mxu0
        %v1590 = vadd.f32 0.0, %v1589
        %1591 = vmatmul.bf16.gmra.mxu0 %v1528
        %v1592 = vpop.f32.mrf.mxu0
        %v1593 = vadd.f32 0.0, %v1592
        %v1594 = vpop.f32.mrf.mxu0
        %v1595 = vadd.f32 0.0, %v1594
        %1596 = vmatmul.bf16.gmra.mxu0 %v1531
        %v1597 = vpop.f32.mrf.mxu0
        %v1598 = vadd.f32 0.0, %v1597
        %v1599 = vpop.f32.mrf.mxu0
        %v1600 = vadd.f32 0.0, %v1599
        %1601 = vmatmul.bf16.gmra.mxu0 %v1534
        %v1602 = vpop.f32.mrf.mxu0
        %v1603 = vadd.f32 0.0, %v1602
        %v1604 = vpop.f32.mrf.mxu0
        %v1605 = vadd.f32 0.0, %v1604
        %1606 = vmatmul.bf16.gmra.mxu0 %v1537
        %v1607 = vpop.f32.mrf.mxu0
        %v1608 = vadd.f32 0.0, %v1607
        %v1609 = vpop.f32.mrf.mxu0
        %v1610 = vadd.f32 0.0, %v1609
        %1611 = vdwg.mxu0
        %1612 = vmax.xlane.f32.xlu0 %v1573
        %v1613 = vpop.xlane.xlu0 %1612
        %1614 = vmax.xlane.f32.xlu0 %v1575
        %v1615 = vpop.xlane.xlu0 %1614
        %1616 = vmax.xlane.f32.xlu0 %v1578
        %v1617 = vpop.xlane.xlu0 %1616
        %1618 = vmax.xlane.f32.xlu0 %v1580
        %v1619 = vpop.xlane.xlu0 %1618
        %1620 = vmax.xlane.f32.xlu0 %v1583
        %v1621 = vpop.xlane.xlu0 %1620
        %1622 = vmax.xlane.f32.xlu0 %v1585
        %v1623 = vpop.xlane.xlu0 %1622
        %1624 = vmax.xlane.f32.xlu0 %v1588
        %v1625 = vpop.xlane.xlu0 %1624
        %1626 = vmax.xlane.f32.xlu0 %v1590
        %v1627 = vpop.xlane.xlu0 %1626
        %1628 = vmax.xlane.f32.xlu0 %v1593
        %v1629 = vpop.xlane.xlu0 %1628
        %1630 = vmax.xlane.f32.xlu0 %v1595
        %v1631 = vpop.xlane.xlu0 %1630
        %1632 = vmax.xlane.f32.xlu0 %v1598
        %v1633 = vpop.xlane.xlu0 %1632
        %1634 = vmax.xlane.f32.xlu0 %v1600
        %v1635 = vpop.xlane.xlu0 %1634
        %1636 = vmax.xlane.f32.xlu0 %v1603
        %v1637 = vpop.xlane.xlu0 %1636
        %1638 = vmax.xlane.f32.xlu0 %v1605
        %v1639 = vpop.xlane.xlu0 %1638
        %1640 = vmax.xlane.f32.xlu0 %v1608
        %v1641 = vpop.xlane.xlu0 %1640
        %1642 = vmax.xlane.f32.xlu0 %v1610
        %v1643 = vpop.xlane.xlu0 %1642
        %v1644 = vsub.f32 %v1573, %v1613
        %v1645 = vsub.f32 %v1575, %v1615
        %v1646 = vsub.f32 %v1578, %v1617
        %v1647 = vsub.f32 %v1580, %v1619
        %v1648 = vsub.f32 %v1583, %v1621
        %v1649 = vsub.f32 %v1585, %v1623
        %v1650 = vsub.f32 %v1588, %v1625
        %v1651 = vsub.f32 %v1590, %v1627
        %v1652 = vsub.f32 %v1593, %v1629
        %v1653 = vsub.f32 %v1595, %v1631
        %v1654 = vsub.f32 %v1598, %v1633
        %v1655 = vsub.f32 %v1600, %v1635
        %v1656 = vsub.f32 %v1603, %v1637
        %v1657 = vsub.f32 %v1605, %v1639
        %v1658 = vsub.f32 %v1608, %v1641
        %v1659 = vsub.f32 %v1610, %v1643
        %v1660 = vmul.f32 %v1644, 1.442695
        %v1661 = vpow.pop %v1660
        %v1662 = vmul.f32 %v1645, 1.442695
        %v1663 = vpow.pop %v1662
        %v1664 = vmul.f32 %v1646, 1.442695
        %v1665 = vpow.pop %v1664
        %v1666 = vmul.f32 %v1647, 1.442695
        %v1667 = vpow.pop %v1666
        %v1668 = vmul.f32 %v1648, 1.442695
        %v1669 = vpow.pop %v1668
        %v1670 = vmul.f32 %v1649, 1.442695
        %v1671 = vpow.pop %v1670
        %v1672 = vmul.f32 %v1650, 1.442695
        %v1673 = vpow.pop %v1672
        %v1674 = vmul.f32 %v1651, 1.442695
        %v1675 = vpow.pop %v1674
        %v1676 = vmul.f32 %v1652, 1.442695
        %v1677 = vpow.pop %v1676
        %v1678 = vmul.f32 %v1653, 1.442695
        %v1679 = vpow.pop %v1678
        %v1680 = vmul.f32 %v1654, 1.442695
        %v1681 = vpow.pop %v1680
        %v1682 = vmul.f32 %v1655, 1.442695
        %v1683 = vpow.pop %v1682
        %v1684 = vmul.f32 %v1656, 1.442695
        %v1685 = vpow.pop %v1684
        %v1686 = vmul.f32 %v1657, 1.442695
        %v1687 = vpow.pop %v1686
        %v1688 = vmul.f32 %v1658, 1.442695
        %v1689 = vpow.pop %v1688
        %v1690 = vmul.f32 %v1659, 1.442695
        %v1691 = vpow.pop %v1690
        %1692 = vadd.xlane.f32.xlu0 %v1661
        %v1693 = vpop.xlane.xlu0 %1692
        %1694 = vadd.xlane.f32.xlu0 %v1663
        %v1695 = vpop.xlane.xlu0 %1694
        %1696 = vadd.xlane.f32.xlu0 %v1665
        %v1697 = vpop.xlane.xlu0 %1696
        %1698 = vadd.xlane.f32.xlu0 %v1667
        %v1699 = vpop.xlane.xlu0 %1698
        %1700 = vadd.xlane.f32.xlu0 %v1669
        %v1701 = vpop.xlane.xlu0 %1700
        %1702 = vadd.xlane.f32.xlu0 %v1671
        %v1703 = vpop.xlane.xlu0 %1702
        %1704 = vadd.xlane.f32.xlu0 %v1673
        %v1705 = vpop.xlane.xlu0 %1704
        %1706 = vadd.xlane.f32.xlu0 %v1675
        %v1707 = vpop.xlane.xlu0 %1706
        %1708 = vadd.xlane.f32.xlu0 %v1677
        %v1709 = vpop.xlane.xlu0 %1708
        %1710 = vadd.xlane.f32.xlu0 %v1679
        %v1711 = vpop.xlane.xlu0 %1710
        %1712 = vadd.xlane.f32.xlu0 %v1681
        %v1713 = vpop.xlane.xlu0 %1712
        %1714 = vadd.xlane.f32.xlu0 %v1683
        %v1715 = vpop.xlane.xlu0 %1714
        %1716 = vadd.xlane.f32.xlu0 %v1685
        %v1717 = vpop.xlane.xlu0 %1716
        %1718 = vadd.xlane.f32.xlu0 %v1687
        %v1719 = vpop.xlane.xlu0 %1718
        %1720 = vadd.xlane.f32.xlu0 %v1689
        %v1721 = vpop.xlane.xlu0 %1720
        %1722 = vadd.xlane.f32.xlu0 %v1691
        %v1723 = vpop.xlane.xlu0 %1722
        %v1724 = vrcp.pop %v1693
        %v1725 = vrcp.pop %v1695
        %v1726 = vrcp.pop %v1697
        %v1727 = vrcp.pop %v1699
        %v1728 = vrcp.pop %v1701
        %v1729 = vrcp.pop %v1703
        %v1730 = vrcp.pop %v1705
        %v1731 = vrcp.pop %v1707
        %v1732 = vrcp.pop %v1709
        %v1733 = vrcp.pop %v1711
        %v1734 = vrcp.pop %v1713
        %v1735 = vrcp.pop %v1715
        %v1736 = vrcp.pop %v1717
        %v1737 = vrcp.pop %v1719
        %v1738 = vrcp.pop %v1721
        %v1739 = vrcp.pop %v1723
        %v1740 = vmul.f32 %v1661, %v1724
        %v1741 = vmul.f32 %v1663, %v1725
        %v1742 = vmul.f32 %v1665, %v1726
        %v1743 = vmul.f32 %v1667, %v1727
        %v1744 = vmul.f32 %v1669, %v1728
        %v1745 = vmul.f32 %v1671, %v1729
        %v1746 = vmul.f32 %v1673, %v1730
        %v1747 = vmul.f32 %v1675, %v1731
        %v1748 = vmul.f32 %v1677, %v1732
        %v1749 = vmul.f32 %v1679, %v1733
        %v1750 = vmul.f32 %v1681, %v1734
        %v1751 = vmul.f32 %v1683, %v1735
        %v1752 = vmul.f32 %v1685, %v1736
        %v1753 = vmul.f32 %v1687, %v1737
        %v1754 = vmul.f32 %v1689, %v1738
        %v1755 = vmul.f32 %v1691, %v1739
        %p1756 = scmp.eq.s32.totalorder %s42, 1
        // Predicated region
        $region97: #{transformer_forward.1} parent=67 // pred_check
          %p1757 = pneg %p1756
        $region98: #{transformer_forward.1} parent=67 // pred_check_branch
          %1759 = sbr.rel (%p1757) target = $region100
        $region99: #{transformer_forward.1} parent=67 // pred_region
          %1760 = vst [vmem:[%s566] sm:$0xff] %v1740
          %1761 = vst [vmem:[%s566 + $0x8] sm:$0xff] %v1741
          %1762 = vst [vmem:[%s566 + $0x10] sm:$0xff] %v1742
          %1763 = vst [vmem:[%s566 + $0x18] sm:$0xff] %v1743
          %1764 = vst [vmem:[%s566 + $0x20] sm:$0xff] %v1744
          %1765 = vst [vmem:[%s566 + $0x28] sm:$0xff] %v1745
          %1766 = vst [vmem:[%s566 + $0x30] sm:$0xff] %v1746
          %1767 = vst [vmem:[%s566 + $0x38] sm:$0xff] %v1747
          %1768 = vst [vmem:[%s566 + $0x40] sm:$0xff] %v1748
          %1769 = vst [vmem:[%s566 + $0x48] sm:$0xff] %v1749
          %1770 = vst [vmem:[%s566 + $0x50] sm:$0xff] %v1750
          %1771 = vst [vmem:[%s566 + $0x58] sm:$0xff] %v1751
          %1772 = vst [vmem:[%s566 + $0x60] sm:$0xff] %v1752
          %1773 = vst [vmem:[%s566 + $0x68] sm:$0xff] %v1753
          %1774 = vst [vmem:[%s566 + $0x70] sm:$0xff] %v1754
          %1775 = vst [vmem:[%s566 + $0x78] sm:$0xff] %v1755
        $region100: #{transformer_forward.1} parent=67 // pred_fallthru
          _
        %v1776 = vpack.c.bf16 %v1741, %v1740
        %v1777 = vpack.c.bf16 %v1743, %v1742
        %v1778 = vpack.c.bf16 %v1745, %v1744
        %v1779 = vpack.c.bf16 %v1747, %v1746
        %v1780 = vpack.c.bf16 %v1749, %v1748
        %v1781 = vpack.c.bf16 %v1751, %v1750
        %v1782 = vpack.c.bf16 %v1753, %v1752
        %v1783 = vpack.c.bf16 %v1755, %v1754
        %v1800 = vunpack.c.l.b16 %v1418
        %v1801 = vunpack.c.l.b16 %v1419
        %v1802 = vunpack.c.l.b16 %v1420
        %v1803 = vunpack.c.l.b16 %v1421
        %v1804 = vunpack.c.l.b16 %v1422
        %v1805 = vunpack.c.l.b16 %v1423
        %v1806 = vunpack.c.l.b16 %v1424
        %v1807 = vunpack.c.l.b16 %v1425
        %v1808 = vunpack.c.l.b16 %v1426
        %v1809 = vunpack.c.l.b16 %v1427
        %v1810 = vunpack.c.l.b16 %v1428
        %v1811 = vunpack.c.l.b16 %v1429
        %v1812 = vunpack.c.l.b16 %v1430
        %v1813 = vunpack.c.l.b16 %v1431
        %v1814 = vunpack.c.l.b16 %v1432
        %v1815 = vunpack.c.l.b16 %v1433
        %v1816 = vpack.c.b16 %v1801, %v1800
        %v1817 = vpack.c.b16 %v1803, %v1802
        %v1818 = vpack.c.b16 %v1805, %v1804
        %v1819 = vpack.c.b16 %v1807, %v1806
        %v1820 = vpack.c.b16 %v1809, %v1808
        %v1821 = vpack.c.b16 %v1811, %v1810
        %v1822 = vpack.c.b16 %v1813, %v1812
        %v1823 = vpack.c.b16 %v1815, %v1814
        %1832 = vmatpush.bf16.msra.mxu0 %v1823
        %1833 = vmatpush.bf16.msra.mxu0 %v1822
        %1834 = vmatpush.bf16.msra.mxu0 %v1821
        %1835 = vmatpush.bf16.msra.mxu0 %v1820
        %1836 = vmatpush.bf16.msra.mxu0 %v1819
        %1837 = vmatpush.bf16.msra.mxu0 %v1818
        %1838 = vmatpush.bf16.msra.mxu0 %v1817
        %1839 = vmatpush.bf16.msra.mxu0 %v1816
        %1840 = vmatmul.bf16.gmra.mxu0 %v1776
        %v1841 = vpop.f32.mrf.mxu0
        %v1842 = vadd.f32 0.0, %v1841
        %v1843 = vpop.f32.mrf.mxu0
        %v1844 = vadd.f32 0.0, %v1843
        %1845 = vmatmul.bf16.gmra.mxu0 %v1777
        %v1846 = vpop.f32.mrf.mxu0
        %v1847 = vadd.f32 0.0, %v1846
        %v1848 = vpop.f32.mrf.mxu0
        %v1849 = vadd.f32 0.0, %v1848
        %1850 = vmatmul.bf16.gmra.mxu0 %v1778
        %v1851 = vpop.f32.mrf.mxu0
        %v1852 = vadd.f32 0.0, %v1851
        %v1853 = vpop.f32.mrf.mxu0
        %v1854 = vadd.f32 0.0, %v1853
        %1855 = vmatmul.bf16.gmra.mxu0 %v1779
        %v1856 = vpop.f32.mrf.mxu0
        %v1857 = vadd.f32 0.0, %v1856
        %v1858 = vpop.f32.mrf.mxu0
        %v1859 = vadd.f32 0.0, %v1858
        %1860 = vmatmul.bf16.gmra.mxu0 %v1780
        %v1861 = vpop.f32.mrf.mxu0
        %v1862 = vadd.f32 0.0, %v1861
        %v1863 = vpop.f32.mrf.mxu0
        %v1864 = vadd.f32 0.0, %v1863
        %1865 = vmatmul.bf16.gmra.mxu0 %v1781
        %v1866 = vpop.f32.mrf.mxu0
        %v1867 = vadd.f32 0.0, %v1866
        %v1868 = vpop.f32.mrf.mxu0
        %v1869 = vadd.f32 0.0, %v1868
        %1870 = vmatmul.bf16.gmra.mxu0 %v1782
        %v1871 = vpop.f32.mrf.mxu0
        %v1872 = vadd.f32 0.0, %v1871
        %v1873 = vpop.f32.mrf.mxu0
        %v1874 = vadd.f32 0.0, %v1873
        %1875 = vmatmul.bf16.gmra.mxu0 %v1783
        %v1876 = vpop.f32.mrf.mxu0
        %v1877 = vadd.f32 0.0, %v1876
        %v1878 = vpop.f32.mrf.mxu0
        %v1879 = vadd.f32 0.0, %v1878
        %1880 = vdwg.mxu0
        %v1881 = vpack.c.bf16 %v1842, %v1842
        %v1882 = vpack.c.bf16 %v1844, %v1844
        %v1883 = vpack.c.bf16 %v1847, %v1847
        %v1884 = vpack.c.bf16 %v1849, %v1849
        %v1885 = vpack.c.bf16 %v1852, %v1852
        %v1886 = vpack.c.bf16 %v1854, %v1854
        %v1887 = vpack.c.bf16 %v1857, %v1857
        %v1888 = vpack.c.bf16 %v1859, %v1859
        %v1889 = vpack.c.bf16 %v1862, %v1862
        %v1890 = vpack.c.bf16 %v1864, %v1864
        %v1891 = vpack.c.bf16 %v1867, %v1867
        %v1892 = vpack.c.bf16 %v1869, %v1869
        %v1893 = vpack.c.bf16 %v1872, %v1872
        %v1894 = vpack.c.bf16 %v1874, %v1874
        %v1895 = vpack.c.bf16 %v1877, %v1877
        %v1896 = vpack.c.bf16 %v1879, %v1879
        %vm1897 = vcmask 257024
        %1898 = vst.msk [vmem:[#allocation4] sm:$0xf] %vm1897, %v1881
        %1899 = vst.msk [vmem:[#allocation4 + $0x4] sm:$0xf] %vm1897, %v1882
        %1900 = vst.msk [vmem:[#allocation4 + $0x8] sm:$0xf] %vm1897, %v1883
        %1901 = vst.msk [vmem:[#allocation4 + $0xc] sm:$0xf] %vm1897, %v1884
        %1902 = vst.msk [vmem:[#allocation4 + $0x10] sm:$0xf] %vm1897, %v1885
        %1903 = vst.msk [vmem:[#allocation4 + $0x14] sm:$0xf] %vm1897, %v1886
        %1904 = vst.msk [vmem:[#allocation4 + $0x18] sm:$0xf] %vm1897, %v1887
        %1905 = vst.msk [vmem:[#allocation4 + $0x1c] sm:$0xf] %vm1897, %v1888
        %1906 = vst.msk [vmem:[#allocation4 + $0x20] sm:$0xf] %vm1897, %v1889
        %1907 = vst.msk [vmem:[#allocation4 + $0x24] sm:$0xf] %vm1897, %v1890
        %1908 = vst.msk [vmem:[#allocation4 + $0x28] sm:$0xf] %vm1897, %v1891
        %1909 = vst.msk [vmem:[#allocation4 + $0x2c] sm:$0xf] %vm1897, %v1892
        %1910 = vst.msk [vmem:[#allocation4 + $0x30] sm:$0xf] %vm1897, %v1893
        %1911 = vst.msk [vmem:[#allocation4 + $0x34] sm:$0xf] %vm1897, %v1894
        %1912 = vst.msk [vmem:[#allocation4 + $0x38] sm:$0xf] %vm1897, %v1895
        %1913 = vst.msk [vmem:[#allocation4 + $0x3c] sm:$0xf] %vm1897, %v1896
        %v1914 = vld [vmem:[#allocation3] sm:$0xf]
        %v1915 = vld [vmem:[#allocation3 + $0xc] sm:$0xf]
        %v1916 = vld [vmem:[#allocation3 + $0x18] sm:$0xf]
        %v1917 = vld [vmem:[#allocation3 + $0x24] sm:$0xf]
        %v1918 = vld [vmem:[#allocation3 + $0x30] sm:$0xf]
        %v1919 = vld [vmem:[#allocation3 + $0x3c] sm:$0xf]
        %v1920 = vld [vmem:[#allocation3 + $0x48] sm:$0xf]
        %v1921 = vld [vmem:[#allocation3 + $0x54] sm:$0xf]
        %v1922 = vld [vmem:[#allocation3 + $0x60] sm:$0xf]
        %v1923 = vld [vmem:[#allocation3 + $0x6c] sm:$0xf]
        %v1924 = vld [vmem:[#allocation3 + $0x78] sm:$0xf]
        %v1925 = vld [vmem:[#allocation3 + $0x84] sm:$0xf]
        %v1926 = vld [vmem:[#allocation3 + $0x90] sm:$0xf]
        %v1927 = vld [vmem:[#allocation3 + $0x9c] sm:$0xf]
        %v1928 = vld [vmem:[#allocation3 + $0xa8] sm:$0xf]
        %v1929 = vld [vmem:[#allocation3 + $0xb4] sm:$0xf]
        %v1930 = vld [vmem:[#allocation3 + $0x4] sm:$0xf]
        %v1931 = vld [vmem:[#allocation3 + $0x10] sm:$0xf]
        %v1932 = vld [vmem:[#allocation3 + $0x1c] sm:$0xf]
        %v1933 = vld [vmem:[#allocation3 + $0x28] sm:$0xf]
        %v1934 = vld [vmem:[#allocation3 + $0x34] sm:$0xf]
        %v1935 = vld [vmem:[#allocation3 + $0x40] sm:$0xf]
        %v1936 = vld [vmem:[#allocation3 + $0x4c] sm:$0xf]
        %v1937 = vld [vmem:[#allocation3 + $0x58] sm:$0xf]
        %v1938 = vld [vmem:[#allocation3 + $0x64] sm:$0xf]
        %v1939 = vld [vmem:[#allocation3 + $0x70] sm:$0xf]
        %v1940 = vld [vmem:[#allocation3 + $0x7c] sm:$0xf]
        %v1941 = vld [vmem:[#allocation3 + $0x88] sm:$0xf]
        %v1942 = vld [vmem:[#allocation3 + $0x94] sm:$0xf]
        %v1943 = vld [vmem:[#allocation3 + $0xa0] sm:$0xf]
        %v1944 = vld [vmem:[#allocation3 + $0xac] sm:$0xf]
        %v1945 = vld [vmem:[#allocation3 + $0xb8] sm:$0xf]
        %v1946 = vld [vmem:[#allocation3 + $0x8] sm:$0xf]
        %v1947 = vld [vmem:[#allocation3 + $0x14] sm:$0xf]
        %v1948 = vld [vmem:[#allocation3 + $0x20] sm:$0xf]
        %v1949 = vld [vmem:[#allocation3 + $0x2c] sm:$0xf]
        %v1950 = vld [vmem:[#allocation3 + $0x38] sm:$0xf]
        %v1951 = vld [vmem:[#allocation3 + $0x44] sm:$0xf]
        %v1952 = vld [vmem:[#allocation3 + $0x50] sm:$0xf]
        %v1953 = vld [vmem:[#allocation3 + $0x5c] sm:$0xf]
        %v1954 = vld [vmem:[#allocation3 + $0x68] sm:$0xf]
        %v1955 = vld [vmem:[#allocation3 + $0x74] sm:$0xf]
        %v1956 = vld [vmem:[#allocation3 + $0x80] sm:$0xf]
        %v1957 = vld [vmem:[#allocation3 + $0x8c] sm:$0xf]
        %v1958 = vld [vmem:[#allocation3 + $0x98] sm:$0xf]
        %v1959 = vld [vmem:[#allocation3 + $0xa4] sm:$0xf]
        %v1960 = vld [vmem:[#allocation3 + $0xb0] sm:$0xf]
        %v1961 = vld [vmem:[#allocation3 + $0xbc] sm:$0xf]
        %v1978 = vunpack.c.l.b16 %v1914
        %v1979 = vunpack.c.l.b16 %v1915
        %v1980 = vunpack.c.l.b16 %v1916
        %v1981 = vunpack.c.l.b16 %v1917
        %v1982 = vunpack.c.l.b16 %v1918
        %v1983 = vunpack.c.l.b16 %v1919
        %v1984 = vunpack.c.l.b16 %v1920
        %v1985 = vunpack.c.l.b16 %v1921
        %v1986 = vunpack.c.l.b16 %v1922
        %v1987 = vunpack.c.l.b16 %v1923
        %v1988 = vunpack.c.l.b16 %v1924
        %v1989 = vunpack.c.l.b16 %v1925
        %v1990 = vunpack.c.l.b16 %v1926
        %v1991 = vunpack.c.l.b16 %v1927
        %v1992 = vunpack.c.l.b16 %v1928
        %v1993 = vunpack.c.l.b16 %v1929
        %v1994 = vpack.c.b16 %v1979, %v1978
        %v1995 = vpack.c.b16 %v1981, %v1980
        %v1996 = vpack.c.b16 %v1983, %v1982
        %v1997 = vpack.c.b16 %v1985, %v1984
        %v1998 = vpack.c.b16 %v1987, %v1986
        %v1999 = vpack.c.b16 %v1989, %v1988
        %v2000 = vpack.c.b16 %v1991, %v1990
        %v2001 = vpack.c.b16 %v1993, %v1992
        %2002 = vrot.lane.b32.xlu0 %v1994, 96
        %v2003 = vpop.permute.xlu0 %2002
        %2004 = vrot.lane.b32.xlu0 %v1995, 96
        %v2005 = vpop.permute.xlu0 %2004
        %2006 = vrot.lane.b32.xlu0 %v1996, 96
        %v2007 = vpop.permute.xlu0 %2006
        %2008 = vrot.lane.b32.xlu0 %v1997, 96
        %v2009 = vpop.permute.xlu0 %2008
        %2010 = vrot.lane.b32.xlu0 %v1998, 96
        %v2011 = vpop.permute.xlu0 %2010
        %2012 = vrot.lane.b32.xlu0 %v1999, 96
        %v2013 = vpop.permute.xlu0 %2012
        %2014 = vrot.lane.b32.xlu0 %v2000, 96
        %v2015 = vpop.permute.xlu0 %2014
        %2016 = vrot.lane.b32.xlu0 %v2001, 96
        %v2017 = vpop.permute.xlu0 %2016
        %v2034 = vunpack.c.l.b16 %v1930
        %v2035 = vunpack.c.l.b16 %v1931
        %v2036 = vunpack.c.l.b16 %v1932
        %v2037 = vunpack.c.l.b16 %v1933
        %v2038 = vunpack.c.l.b16 %v1934
        %v2039 = vunpack.c.l.b16 %v1935
        %v2040 = vunpack.c.l.b16 %v1936
        %v2041 = vunpack.c.l.b16 %v1937
        %v2042 = vunpack.c.l.b16 %v1938
        %v2043 = vunpack.c.l.b16 %v1939
        %v2044 = vunpack.c.l.b16 %v1940
        %v2045 = vunpack.c.l.b16 %v1941
        %v2046 = vunpack.c.l.b16 %v1942
        %v2047 = vunpack.c.l.b16 %v1943
        %v2048 = vunpack.c.l.b16 %v1944
        %v2049 = vunpack.c.l.b16 %v1945
        %v2050 = vpack.c.b16 %v2035, %v2034
        %v2051 = vpack.c.b16 %v2037, %v2036
        %v2052 = vpack.c.b16 %v2039, %v2038
        %v2053 = vpack.c.b16 %v2041, %v2040
        %v2054 = vpack.c.b16 %v2043, %v2042
        %v2055 = vpack.c.b16 %v2045, %v2044
        %v2056 = vpack.c.b16 %v2047, %v2046
        %v2057 = vpack.c.b16 %v2049, %v2048
        %2058 = vrot.lane.b32.xlu0 %v2050, 96
        %v2059 = vpop.permute.xlu0 %2058
        %2060 = vrot.lane.b32.xlu0 %v2051, 96
        %v2061 = vpop.permute.xlu0 %2060
        %2062 = vrot.lane.b32.xlu0 %v2052, 96
        %v2063 = vpop.permute.xlu0 %2062
        %2064 = vrot.lane.b32.xlu0 %v2053, 96
        %v2065 = vpop.permute.xlu0 %2064
        %2066 = vrot.lane.b32.xlu0 %v2054, 96
        %v2067 = vpop.permute.xlu0 %2066
        %2068 = vrot.lane.b32.xlu0 %v2055, 96
        %v2069 = vpop.permute.xlu0 %2068
        %2070 = vrot.lane.b32.xlu0 %v2056, 96
        %v2071 = vpop.permute.xlu0 %2070
        %2072 = vrot.lane.b32.xlu0 %v2057, 96
        %v2073 = vpop.permute.xlu0 %2072
        %v2075 = vsel %vm1514, %v2003, 0
        %v2078 = vsel %vm1514, %v2005, 0
        %v2081 = vsel %vm1514, %v2007, 0
        %v2084 = vsel %vm1514, %v2009, 0
        %v2087 = vsel %vm1514, %v2011, 0
        %v2090 = vsel %vm1514, %v2013, 0
        %v2093 = vsel %vm1514, %v2015, 0
        %v2096 = vsel %vm1514, %v2017, 0
        %v2099 = vsel %vm1514, %v2059, 0
        %v2102 = vsel %vm1514, %v2061, 0
        %v2105 = vsel %vm1514, %v2063, 0
        %v2108 = vsel %vm1514, %v2065, 0
        %v2111 = vsel %vm1514, %v2067, 0
        %v2114 = vsel %vm1514, %v2069, 0
        %v2117 = vsel %vm1514, %v2071, 0
        %v2120 = vsel %vm1514, %v2073, 0
        %2122 = vmatpush.bf16.xpose.msra.mxu0 %v2120
        %2123 = vmatpush.bf16.xpose.msra.mxu0 %v2117
        %2124 = vmatpush.bf16.xpose.msra.mxu0 %v2114
        %2125 = vmatpush.bf16.xpose.msra.mxu0 %v2111
        %2126 = vmatpush.bf16.xpose.msra.mxu0 %v2108
        %2127 = vmatpush.bf16.xpose.msra.mxu0 %v2105
        %2128 = vmatpush.bf16.xpose.msra.mxu0 %v2102
        %2129 = vmatpush.bf16.xpose.msra.mxu0 %v2099
        %2130 = vmatmul.bf16.gmra.mxu0 %v2075
        %v2131 = vpop.f32.mrf.mxu0
        %v2132 = vadd.f32 0.0, %v2131
        %v2133 = vpop.f32.mrf.mxu0
        %v2134 = vadd.f32 0.0, %v2133
        %2135 = vmatmul.bf16.gmra.mxu0 %v2078
        %v2136 = vpop.f32.mrf.mxu0
        %v2137 = vadd.f32 0.0, %v2136
        %v2138 = vpop.f32.mrf.mxu0
        %v2139 = vadd.f32 0.0, %v2138
        %2140 = vmatmul.bf16.gmra.mxu0 %v2081
        %v2141 = vpop.f32.mrf.mxu0
        %v2142 = vadd.f32 0.0, %v2141
        %v2143 = vpop.f32.mrf.mxu0
        %v2144 = vadd.f32 0.0, %v2143
        %2145 = vmatmul.bf16.gmra.mxu0 %v2084
        %v2146 = vpop.f32.mrf.mxu0
        %v2147 = vadd.f32 0.0, %v2146
        %v2148 = vpop.f32.mrf.mxu0
        %v2149 = vadd.f32 0.0, %v2148
        %2150 = vmatmul.bf16.gmra.mxu0 %v2087
        %v2151 = vpop.f32.mrf.mxu0
        %v2152 = vadd.f32 0.0, %v2151
        %v2153 = vpop.f32.mrf.mxu0
        %v2154 = vadd.f32 0.0, %v2153
        %2155 = vmatmul.bf16.gmra.mxu0 %v2090
        %v2156 = vpop.f32.mrf.mxu0
        %v2157 = vadd.f32 0.0, %v2156
        %v2158 = vpop.f32.mrf.mxu0
        %v2159 = vadd.f32 0.0, %v2158
        %2160 = vmatmul.bf16.gmra.mxu0 %v2093
        %v2161 = vpop.f32.mrf.mxu0
        %v2162 = vadd.f32 0.0, %v2161
        %v2163 = vpop.f32.mrf.mxu0
        %v2164 = vadd.f32 0.0, %v2163
        %2165 = vmatmul.bf16.gmra.mxu0 %v2096
        %v2166 = vpop.f32.mrf.mxu0
        %v2167 = vadd.f32 0.0, %v2166
        %v2168 = vpop.f32.mrf.mxu0
        %v2169 = vadd.f32 0.0, %v2168
        %2170 = vdwg.mxu0
        %2171 = vmax.xlane.f32.xlu0 %v2132
        %v2172 = vpop.xlane.xlu0 %2171
        %2173 = vmax.xlane.f32.xlu0 %v2134
        %v2174 = vpop.xlane.xlu0 %2173
        %2175 = vmax.xlane.f32.xlu0 %v2137
        %v2176 = vpop.xlane.xlu0 %2175
        %2177 = vmax.xlane.f32.xlu0 %v2139
        %v2178 = vpop.xlane.xlu0 %2177
        %2179 = vmax.xlane.f32.xlu0 %v2142
        %v2180 = vpop.xlane.xlu0 %2179
        %2181 = vmax.xlane.f32.xlu0 %v2144
        %v2182 = vpop.xlane.xlu0 %2181
        %2183 = vmax.xlane.f32.xlu0 %v2147
        %v2184 = vpop.xlane.xlu0 %2183
        %2185 = vmax.xlane.f32.xlu0 %v2149
        %v2186 = vpop.xlane.xlu0 %2185
        %2187 = vmax.xlane.f32.xlu0 %v2152
        %v2188 = vpop.xlane.xlu0 %2187
        %2189 = vmax.xlane.f32.xlu0 %v2154
        %v2190 = vpop.xlane.xlu0 %2189
        %2191 = vmax.xlane.f32.xlu0 %v2157
        %v2192 = vpop.xlane.xlu0 %2191
        %2193 = vmax.xlane.f32.xlu0 %v2159
        %v2194 = vpop.xlane.xlu0 %2193
        %2195 = vmax.xlane.f32.xlu0 %v2162
        %v2196 = vpop.xlane.xlu0 %2195
        %2197 = vmax.xlane.f32.xlu0 %v2164
        %v2198 = vpop.xlane.xlu0 %2197
        %2199 = vmax.xlane.f32.xlu0 %v2167
        %v2200 = vpop.xlane.xlu0 %2199
        %2201 = vmax.xlane.f32.xlu0 %v2169
        %v2202 = vpop.xlane.xlu0 %2201
        %v2203 = vsub.f32 %v2132, %v2172
        %v2204 = vsub.f32 %v2134, %v2174
        %v2205 = vsub.f32 %v2137, %v2176
        %v2206 = vsub.f32 %v2139, %v2178
        %v2207 = vsub.f32 %v2142, %v2180
        %v2208 = vsub.f32 %v2144, %v2182
        %v2209 = vsub.f32 %v2147, %v2184
        %v2210 = vsub.f32 %v2149, %v2186
        %v2211 = vsub.f32 %v2152, %v2188
        %v2212 = vsub.f32 %v2154, %v2190
        %v2213 = vsub.f32 %v2157, %v2192
        %v2214 = vsub.f32 %v2159, %v2194
        %v2215 = vsub.f32 %v2162, %v2196
        %v2216 = vsub.f32 %v2164, %v2198
        %v2217 = vsub.f32 %v2167, %v2200
        %v2218 = vsub.f32 %v2169, %v2202
        %v2219 = vmul.f32 %v2203, 1.442695
        %v2220 = vpow.pop %v2219
        %v2221 = vmul.f32 %v2204, 1.442695
        %v2222 = vpow.pop %v2221
        %v2223 = vmul.f32 %v2205, 1.442695
        %v2224 = vpow.pop %v2223
        %v2225 = vmul.f32 %v2206, 1.442695
        %v2226 = vpow.pop %v2225
        %v2227 = vmul.f32 %v2207, 1.442695
        %v2228 = vpow.pop %v2227
        %v2229 = vmul.f32 %v2208, 1.442695
        %v2230 = vpow.pop %v2229
        %v2231 = vmul.f32 %v2209, 1.442695
        %v2232 = vpow.pop %v2231
        %v2233 = vmul.f32 %v2210, 1.442695
        %v2234 = vpow.pop %v2233
        %v2235 = vmul.f32 %v2211, 1.442695
        %v2236 = vpow.pop %v2235
        %v2237 = vmul.f32 %v2212, 1.442695
        %v2238 = vpow.pop %v2237
        %v2239 = vmul.f32 %v2213, 1.442695
        %v2240 = vpow.pop %v2239
        %v2241 = vmul.f32 %v2214, 1.442695
        %v2242 = vpow.pop %v2241
        %v2243 = vmul.f32 %v2215, 1.442695
        %v2244 = vpow.pop %v2243
        %v2245 = vmul.f32 %v2216, 1.442695
        %v2246 = vpow.pop %v2245
        %v2247 = vmul.f32 %v2217, 1.442695
        %v2248 = vpow.pop %v2247
        %v2249 = vmul.f32 %v2218, 1.442695
        %v2250 = vpow.pop %v2249
        %2251 = vadd.xlane.f32.xlu0 %v2220
        %v2252 = vpop.xlane.xlu0 %2251
        %2253 = vadd.xlane.f32.xlu0 %v2222
        %v2254 = vpop.xlane.xlu0 %2253
        %2255 = vadd.xlane.f32.xlu0 %v2224
        %v2256 = vpop.xlane.xlu0 %2255
        %2257 = vadd.xlane.f32.xlu0 %v2226
        %v2258 = vpop.xlane.xlu0 %2257
        %2259 = vadd.xlane.f32.xlu0 %v2228
        %v2260 = vpop.xlane.xlu0 %2259
        %2261 = vadd.xlane.f32.xlu0 %v2230
        %v2262 = vpop.xlane.xlu0 %2261
        %2263 = vadd.xlane.f32.xlu0 %v2232
        %v2264 = vpop.xlane.xlu0 %2263
        %2265 = vadd.xlane.f32.xlu0 %v2234
        %v2266 = vpop.xlane.xlu0 %2265
        %2267 = vadd.xlane.f32.xlu0 %v2236
        %v2268 = vpop.xlane.xlu0 %2267
        %2269 = vadd.xlane.f32.xlu0 %v2238
        %v2270 = vpop.xlane.xlu0 %2269
        %2271 = vadd.xlane.f32.xlu0 %v2240
        %v2272 = vpop.xlane.xlu0 %2271
        %2273 = vadd.xlane.f32.xlu0 %v2242
        %v2274 = vpop.xlane.xlu0 %2273
        %2275 = vadd.xlane.f32.xlu0 %v2244
        %v2276 = vpop.xlane.xlu0 %2275
        %2277 = vadd.xlane.f32.xlu0 %v2246
        %v2278 = vpop.xlane.xlu0 %2277
        %2279 = vadd.xlane.f32.xlu0 %v2248
        %v2280 = vpop.xlane.xlu0 %2279
        %2281 = vadd.xlane.f32.xlu0 %v2250
        %v2282 = vpop.xlane.xlu0 %2281
        %v2283 = vrcp.pop %v2252
        %v2284 = vrcp.pop %v2254
        %v2285 = vrcp.pop %v2256
        %v2286 = vrcp.pop %v2258
        %v2287 = vrcp.pop %v2260
        %v2288 = vrcp.pop %v2262
        %v2289 = vrcp.pop %v2264
        %v2290 = vrcp.pop %v2266
        %v2291 = vrcp.pop %v2268
        %v2292 = vrcp.pop %v2270
        %v2293 = vrcp.pop %v2272
        %v2294 = vrcp.pop %v2274
        %v2295 = vrcp.pop %v2276
        %v2296 = vrcp.pop %v2278
        %v2297 = vrcp.pop %v2280
        %v2298 = vrcp.pop %v2282
        %v2299 = vmul.f32 %v2220, %v2283
        %v2300 = vmul.f32 %v2222, %v2284
        %v2301 = vmul.f32 %v2224, %v2285
        %v2302 = vmul.f32 %v2226, %v2286
        %v2303 = vmul.f32 %v2228, %v2287
        %v2304 = vmul.f32 %v2230, %v2288
        %v2305 = vmul.f32 %v2232, %v2289
        %v2306 = vmul.f32 %v2234, %v2290
        %v2307 = vmul.f32 %v2236, %v2291
        %v2308 = vmul.f32 %v2238, %v2292
        %v2309 = vmul.f32 %v2240, %v2293
        %v2310 = vmul.f32 %v2242, %v2294
        %v2311 = vmul.f32 %v2244, %v2295
        %v2312 = vmul.f32 %v2246, %v2296
        %v2313 = vmul.f32 %v2248, %v2297
        %v2314 = vmul.f32 %v2250, %v2298
        // Predicated region
        $region101: #{transformer_forward.1} parent=67 // pred_check
          %p2315 = pneg %p1756
        $region102: #{transformer_forward.1} parent=67 // pred_check_branch
          %2317 = sbr.rel (%p2315) target = $region104
        $region103: #{transformer_forward.1} parent=67 // pred_region
          %s2318 = scalar_lea.vmem %s566, 128 [#allocation17]
          %2319 = vst [vmem:[%s2318] sm:$0xff] %v2299
          %2320 = vst [vmem:[%s2318 + $0x8] sm:$0xff] %v2300
          %2321 = vst [vmem:[%s2318 + $0x10] sm:$0xff] %v2301
          %2322 = vst [vmem:[%s2318 + $0x18] sm:$0xff] %v2302
          %2323 = vst [vmem:[%s2318 + $0x20] sm:$0xff] %v2303
          %2324 = vst [vmem:[%s2318 + $0x28] sm:$0xff] %v2304
          %2325 = vst [vmem:[%s2318 + $0x30] sm:$0xff] %v2305
          %2326 = vst [vmem:[%s2318 + $0x38] sm:$0xff] %v2306
          %2327 = vst [vmem:[%s2318 + $0x40] sm:$0xff] %v2307
          %2328 = vst [vmem:[%s2318 + $0x48] sm:$0xff] %v2308
          %2329 = vst [vmem:[%s2318 + $0x50] sm:$0xff] %v2309
          %2330 = vst [vmem:[%s2318 + $0x58] sm:$0xff] %v2310
          %2331 = vst [vmem:[%s2318 + $0x60] sm:$0xff] %v2311
          %2332 = vst [vmem:[%s2318 + $0x68] sm:$0xff] %v2312
          %2333 = vst [vmem:[%s2318 + $0x70] sm:$0xff] %v2313
          %2334 = vst [vmem:[%s2318 + $0x78] sm:$0xff] %v2314
        $region104: #{transformer_forward.1} parent=67 // pred_fallthru
          _
        %v2335 = vpack.c.bf16 %v2300, %v2299
        %v2336 = vpack.c.bf16 %v2302, %v2301
        %v2337 = vpack.c.bf16 %v2304, %v2303
        %v2338 = vpack.c.bf16 %v2306, %v2305
        %v2339 = vpack.c.bf16 %v2308, %v2307
        %v2340 = vpack.c.bf16 %v2310, %v2309
        %v2341 = vpack.c.bf16 %v2312, %v2311
        %v2342 = vpack.c.bf16 %v2314, %v2313
        %v2359 = vunpack.c.l.b16 %v1946
        %v2360 = vunpack.c.l.b16 %v1947
        %v2361 = vunpack.c.l.b16 %v1948
        %v2362 = vunpack.c.l.b16 %v1949
        %v2363 = vunpack.c.l.b16 %v1950
        %v2364 = vunpack.c.l.b16 %v1951
        %v2365 = vunpack.c.l.b16 %v1952
        %v2366 = vunpack.c.l.b16 %v1953
        %v2367 = vunpack.c.l.b16 %v1954
        %v2368 = vunpack.c.l.b16 %v1955
        %v2369 = vunpack.c.l.b16 %v1956
        %v2370 = vunpack.c.l.b16 %v1957
        %v2371 = vunpack.c.l.b16 %v1958
        %v2372 = vunpack.c.l.b16 %v1959
        %v2373 = vunpack.c.l.b16 %v1960
        %v2374 = vunpack.c.l.b16 %v1961
        %v2375 = vpack.c.b16 %v2360, %v2359
        %v2376 = vpack.c.b16 %v2362, %v2361
        %v2377 = vpack.c.b16 %v2364, %v2363
        %v2378 = vpack.c.b16 %v2366, %v2365
        %v2379 = vpack.c.b16 %v2368, %v2367
        %v2380 = vpack.c.b16 %v2370, %v2369
        %v2381 = vpack.c.b16 %v2372, %v2371
        %v2382 = vpack.c.b16 %v2374, %v2373
        %2383 = vrot.lane.b32.xlu0 %v2375, 96
        %v2384 = vpop.permute.xlu0 %2383
        %2385 = vrot.lane.b32.xlu0 %v2376, 96
        %v2386 = vpop.permute.xlu0 %2385
        %2387 = vrot.lane.b32.xlu0 %v2377, 96
        %v2388 = vpop.permute.xlu0 %2387
        %2389 = vrot.lane.b32.xlu0 %v2378, 96
        %v2390 = vpop.permute.xlu0 %2389
        %2391 = vrot.lane.b32.xlu0 %v2379, 96
        %v2392 = vpop.permute.xlu0 %2391
        %2393 = vrot.lane.b32.xlu0 %v2380, 96
        %v2394 = vpop.permute.xlu0 %2393
        %2395 = vrot.lane.b32.xlu0 %v2381, 96
        %v2396 = vpop.permute.xlu0 %2395
        %2397 = vrot.lane.b32.xlu0 %v2382, 96
        %v2398 = vpop.permute.xlu0 %2397
        %2407 = vmatpush.bf16.msra.mxu0 %v2398
        %2408 = vmatpush.bf16.msra.mxu0 %v2396
        %2409 = vmatpush.bf16.msra.mxu0 %v2394
        %2410 = vmatpush.bf16.msra.mxu0 %v2392
        %2411 = vmatpush.bf16.msra.mxu0 %v2390
        %2412 = vmatpush.bf16.msra.mxu0 %v2388
        %2413 = vmatpush.bf16.msra.mxu0 %v2386
        %2414 = vmatpush.bf16.msra.mxu0 %v2384
        %2415 = vmatmul.bf16.gmra.mxu0 %v2335
        %v2416 = vpop.f32.mrf.mxu0
        %v2417 = vadd.f32 0.0, %v2416
        %v2418 = vpop.f32.mrf.mxu0
        %v2419 = vadd.f32 0.0, %v2418
        %2420 = vmatmul.bf16.gmra.mxu0 %v2336
        %v2421 = vpop.f32.mrf.mxu0
        %v2422 = vadd.f32 0.0, %v2421
        %v2423 = vpop.f32.mrf.mxu0
        %v2424 = vadd.f32 0.0, %v2423
        %2425 = vmatmul.bf16.gmra.mxu0 %v2337
        %v2426 = vpop.f32.mrf.mxu0
        %v2427 = vadd.f32 0.0, %v2426
        %v2428 = vpop.f32.mrf.mxu0
        %v2429 = vadd.f32 0.0, %v2428
        %2430 = vmatmul.bf16.gmra.mxu0 %v2338
        %v2431 = vpop.f32.mrf.mxu0
        %v2432 = vadd.f32 0.0, %v2431
        %v2433 = vpop.f32.mrf.mxu0
        %v2434 = vadd.f32 0.0, %v2433
        %2435 = vmatmul.bf16.gmra.mxu0 %v2339
        %v2436 = vpop.f32.mrf.mxu0
        %v2437 = vadd.f32 0.0, %v2436
        %v2438 = vpop.f32.mrf.mxu0
        %v2439 = vadd.f32 0.0, %v2438
        %2440 = vmatmul.bf16.gmra.mxu0 %v2340
        %v2441 = vpop.f32.mrf.mxu0
        %v2442 = vadd.f32 0.0, %v2441
        %v2443 = vpop.f32.mrf.mxu0
        %v2444 = vadd.f32 0.0, %v2443
        %2445 = vmatmul.bf16.gmra.mxu0 %v2341
        %v2446 = vpop.f32.mrf.mxu0
        %v2447 = vadd.f32 0.0, %v2446
        %v2448 = vpop.f32.mrf.mxu0
        %v2449 = vadd.f32 0.0, %v2448
        %2450 = vmatmul.bf16.gmra.mxu0 %v2342
        %v2451 = vpop.f32.mrf.mxu0
        %v2452 = vadd.f32 0.0, %v2451
        %v2453 = vpop.f32.mrf.mxu0
        %v2454 = vadd.f32 0.0, %v2453
        %2455 = vdwg.mxu0
        %v2456 = vpack.c.bf16 %v2417, %v2417
        %v2457 = vpack.c.bf16 %v2419, %v2419
        %v2458 = vpack.c.bf16 %v2422, %v2422
        %v2459 = vpack.c.bf16 %v2424, %v2424
        %v2460 = vpack.c.bf16 %v2427, %v2427
        %v2461 = vpack.c.bf16 %v2429, %v2429
        %v2462 = vpack.c.bf16 %v2432, %v2432
        %v2463 = vpack.c.bf16 %v2434, %v2434
        %v2464 = vpack.c.bf16 %v2437, %v2437
        %v2465 = vpack.c.bf16 %v2439, %v2439
        %v2466 = vpack.c.bf16 %v2442, %v2442
        %v2467 = vpack.c.bf16 %v2444, %v2444
        %v2468 = vpack.c.bf16 %v2447, %v2447
        %v2469 = vpack.c.bf16 %v2449, %v2449
        %v2470 = vpack.c.bf16 %v2452, %v2452
        %v2471 = vpack.c.bf16 %v2454, %v2454
        %2488 = vrot.lane.b32.xlu0 %v2456, 32
        %v2489 = vpop.permute.xlu0 %2488
        %2490 = vrot.lane.b32.xlu0 %v2457, 32
        %v2491 = vpop.permute.xlu0 %2490
        %2492 = vrot.lane.b32.xlu0 %v2458, 32
        %v2493 = vpop.permute.xlu0 %2492
        %2494 = vrot.lane.b32.xlu0 %v2459, 32
        %v2495 = vpop.permute.xlu0 %2494
        %2496 = vrot.lane.b32.xlu0 %v2460, 32
        %v2497 = vpop.permute.xlu0 %2496
        %2498 = vrot.lane.b32.xlu0 %v2461, 32
        %v2499 = vpop.permute.xlu0 %2498
        %2500 = vrot.lane.b32.xlu0 %v2462, 32
        %v2501 = vpop.permute.xlu0 %2500
        %2502 = vrot.lane.b32.xlu0 %v2463, 32
        %v2503 = vpop.permute.xlu0 %2502
        %2504 = vrot.lane.b32.xlu0 %v2464, 32
        %v2505 = vpop.permute.xlu0 %2504
        %2506 = vrot.lane.b32.xlu0 %v2465, 32
        %v2507 = vpop.permute.xlu0 %2506
        %2508 = vrot.lane.b32.xlu0 %v2466, 32
        %v2509 = vpop.permute.xlu0 %2508
        %2510 = vrot.lane.b32.xlu0 %v2467, 32
        %v2511 = vpop.permute.xlu0 %2510
        %2512 = vrot.lane.b32.xlu0 %v2468, 32
        %v2513 = vpop.permute.xlu0 %2512
        %2514 = vrot.lane.b32.xlu0 %v2469, 32
        %v2515 = vpop.permute.xlu0 %2514
        %2516 = vrot.lane.b32.xlu0 %v2470, 32
        %v2517 = vpop.permute.xlu0 %2516
        %2518 = vrot.lane.b32.xlu0 %v2471, 32
        %v2519 = vpop.permute.xlu0 %2518
        %vm2536 = vcmask 519424
        %2537 = vst.msk [vmem:[#allocation4] sm:$0xf] %vm2536, %v2489
        %2538 = vst.msk [vmem:[#allocation4 + $0x4] sm:$0xf] %vm2536, %v2491
        %2539 = vst.msk [vmem:[#allocation4 + $0x8] sm:$0xf] %vm2536, %v2493
        %2540 = vst.msk [vmem:[#allocation4 + $0xc] sm:$0xf] %vm2536, %v2495
        %2541 = vst.msk [vmem:[#allocation4 + $0x10] sm:$0xf] %vm2536, %v2497
        %2542 = vst.msk [vmem:[#allocation4 + $0x14] sm:$0xf] %vm2536, %v2499
        %2543 = vst.msk [vmem:[#allocation4 + $0x18] sm:$0xf] %vm2536, %v2501
        %2544 = vst.msk [vmem:[#allocation4 + $0x1c] sm:$0xf] %vm2536, %v2503
        %2545 = vst.msk [vmem:[#allocation4 + $0x20] sm:$0xf] %vm2536, %v2505
        %2546 = vst.msk [vmem:[#allocation4 + $0x24] sm:$0xf] %vm2536, %v2507
        %2547 = vst.msk [vmem:[#allocation4 + $0x28] sm:$0xf] %vm2536, %v2509
        %2548 = vst.msk [vmem:[#allocation4 + $0x2c] sm:$0xf] %vm2536, %v2511
        %2549 = vst.msk [vmem:[#allocation4 + $0x30] sm:$0xf] %vm2536, %v2513
        %2550 = vst.msk [vmem:[#allocation4 + $0x34] sm:$0xf] %vm2536, %v2515
        %2551 = vst.msk [vmem:[#allocation4 + $0x38] sm:$0xf] %vm2536, %v2517
        %2552 = vst.msk [vmem:[#allocation4 + $0x3c] sm:$0xf] %vm2536, %v2519
        %v2553 = vld [vmem:[#allocation3] sm:$0xf]
        %v2554 = vld [vmem:[#allocation3 + $0xc] sm:$0xf]
        %v2555 = vld [vmem:[#allocation3 + $0x18] sm:$0xf]
        %v2556 = vld [vmem:[#allocation3 + $0x24] sm:$0xf]
        %v2557 = vld [vmem:[#allocation3 + $0x30] sm:$0xf]
        %v2558 = vld [vmem:[#allocation3 + $0x3c] sm:$0xf]
        %v2559 = vld [vmem:[#allocation3 + $0x48] sm:$0xf]
        %v2560 = vld [vmem:[#allocation3 + $0x54] sm:$0xf]
        %v2561 = vld [vmem:[#allocation3 + $0x60] sm:$0xf]
        %v2562 = vld [vmem:[#allocation3 + $0x6c] sm:$0xf]
        %v2563 = vld [vmem:[#allocation3 + $0x78] sm:$0xf]
        %v2564 = vld [vmem:[#allocation3 + $0x84] sm:$0xf]
        %v2565 = vld [vmem:[#allocation3 + $0x90] sm:$0xf]
        %v2566 = vld [vmem:[#allocation3 + $0x9c] sm:$0xf]
        %v2567 = vld [vmem:[#allocation3 + $0xa8] sm:$0xf]
        %v2568 = vld [vmem:[#allocation3 + $0xb4] sm:$0xf]
        %v2569 = vld [vmem:[#allocation3 + $0x4] sm:$0xf]
        %v2570 = vld [vmem:[#allocation3 + $0x10] sm:$0xf]
        %v2571 = vld [vmem:[#allocation3 + $0x1c] sm:$0xf]
        %v2572 = vld [vmem:[#allocation3 + $0x28] sm:$0xf]
        %v2573 = vld [vmem:[#allocation3 + $0x34] sm:$0xf]
        %v2574 = vld [vmem:[#allocation3 + $0x40] sm:$0xf]
        %v2575 = vld [vmem:[#allocation3 + $0x4c] sm:$0xf]
        %v2576 = vld [vmem:[#allocation3 + $0x58] sm:$0xf]
        %v2577 = vld [vmem:[#allocation3 + $0x64] sm:$0xf]
        %v2578 = vld [vmem:[#allocation3 + $0x70] sm:$0xf]
        %v2579 = vld [vmem:[#allocation3 + $0x7c] sm:$0xf]
        %v2580 = vld [vmem:[#allocation3 + $0x88] sm:$0xf]
        %v2581 = vld [vmem:[#allocation3 + $0x94] sm:$0xf]
        %v2582 = vld [vmem:[#allocation3 + $0xa0] sm:$0xf]
        %v2583 = vld [vmem:[#allocation3 + $0xac] sm:$0xf]
        %v2584 = vld [vmem:[#allocation3 + $0xb8] sm:$0xf]
        %v2585 = vld [vmem:[#allocation3 + $0x8] sm:$0xf]
        %v2586 = vld [vmem:[#allocation3 + $0x14] sm:$0xf]
        %v2587 = vld [vmem:[#allocation3 + $0x20] sm:$0xf]
        %v2588 = vld [vmem:[#allocation3 + $0x2c] sm:$0xf]
        %v2589 = vld [vmem:[#allocation3 + $0x38] sm:$0xf]
        %v2590 = vld [vmem:[#allocation3 + $0x44] sm:$0xf]
        %v2591 = vld [vmem:[#allocation3 + $0x50] sm:$0xf]
        %v2592 = vld [vmem:[#allocation3 + $0x5c] sm:$0xf]
        %v2593 = vld [vmem:[#allocation3 + $0x68] sm:$0xf]
        %v2594 = vld [vmem:[#allocation3 + $0x74] sm:$0xf]
        %v2595 = vld [vmem:[#allocation3 + $0x80] sm:$0xf]
        %v2596 = vld [vmem:[#allocation3 + $0x8c] sm:$0xf]
        %v2597 = vld [vmem:[#allocation3 + $0x98] sm:$0xf]
        %v2598 = vld [vmem:[#allocation3 + $0xa4] sm:$0xf]
        %v2599 = vld [vmem:[#allocation3 + $0xb0] sm:$0xf]
        %v2600 = vld [vmem:[#allocation3 + $0xbc] sm:$0xf]
        %v2617 = vunpack.c.l.b16 %v2553
        %v2618 = vunpack.c.l.b16 %v2554
        %v2619 = vunpack.c.l.b16 %v2555
        %v2620 = vunpack.c.l.b16 %v2556
        %v2621 = vunpack.c.l.b16 %v2557
        %v2622 = vunpack.c.l.b16 %v2558
        %v2623 = vunpack.c.l.b16 %v2559
        %v2624 = vunpack.c.l.b16 %v2560
        %v2625 = vunpack.c.l.b16 %v2561
        %v2626 = vunpack.c.l.b16 %v2562
        %v2627 = vunpack.c.l.b16 %v2563
        %v2628 = vunpack.c.l.b16 %v2564
        %v2629 = vunpack.c.l.b16 %v2565
        %v2630 = vunpack.c.l.b16 %v2566
        %v2631 = vunpack.c.l.b16 %v2567
        %v2632 = vunpack.c.l.b16 %v2568
        %v2633 = vpack.c.b16 %v2618, %v2617
        %v2634 = vpack.c.b16 %v2620, %v2619
        %v2635 = vpack.c.b16 %v2622, %v2621
        %v2636 = vpack.c.b16 %v2624, %v2623
        %v2637 = vpack.c.b16 %v2626, %v2625
        %v2638 = vpack.c.b16 %v2628, %v2627
        %v2639 = vpack.c.b16 %v2630, %v2629
        %v2640 = vpack.c.b16 %v2632, %v2631
        %2641 = vrot.lane.b32.xlu0 %v2633, 64
        %v2642 = vpop.permute.xlu0 %2641
        %2643 = vrot.lane.b32.xlu0 %v2634, 64
        %v2644 = vpop.permute.xlu0 %2643
        %2645 = vrot.lane.b32.xlu0 %v2635, 64
        %v2646 = vpop.permute.xlu0 %2645
        %2647 = vrot.lane.b32.xlu0 %v2636, 64
        %v2648 = vpop.permute.xlu0 %2647
        %2649 = vrot.lane.b32.xlu0 %v2637, 64
        %v2650 = vpop.permute.xlu0 %2649
        %2651 = vrot.lane.b32.xlu0 %v2638, 64
        %v2652 = vpop.permute.xlu0 %2651
        %2653 = vrot.lane.b32.xlu0 %v2639, 64
        %v2654 = vpop.permute.xlu0 %2653
        %2655 = vrot.lane.b32.xlu0 %v2640, 64
        %v2656 = vpop.permute.xlu0 %2655
        %v2673 = vunpack.c.l.b16 %v2569
        %v2674 = vunpack.c.l.b16 %v2570
        %v2675 = vunpack.c.l.b16 %v2571
        %v2676 = vunpack.c.l.b16 %v2572
        %v2677 = vunpack.c.l.b16 %v2573
        %v2678 = vunpack.c.l.b16 %v2574
        %v2679 = vunpack.c.l.b16 %v2575
        %v2680 = vunpack.c.l.b16 %v2576
        %v2681 = vunpack.c.l.b16 %v2577
        %v2682 = vunpack.c.l.b16 %v2578
        %v2683 = vunpack.c.l.b16 %v2579
        %v2684 = vunpack.c.l.b16 %v2580
        %v2685 = vunpack.c.l.b16 %v2581
        %v2686 = vunpack.c.l.b16 %v2582
        %v2687 = vunpack.c.l.b16 %v2583
        %v2688 = vunpack.c.l.b16 %v2584
        %v2689 = vpack.c.b16 %v2674, %v2673
        %v2690 = vpack.c.b16 %v2676, %v2675
        %v2691 = vpack.c.b16 %v2678, %v2677
        %v2692 = vpack.c.b16 %v2680, %v2679
        %v2693 = vpack.c.b16 %v2682, %v2681
        %v2694 = vpack.c.b16 %v2684, %v2683
        %v2695 = vpack.c.b16 %v2686, %v2685
        %v2696 = vpack.c.b16 %v2688, %v2687
        %2697 = vrot.lane.b32.xlu0 %v2689, 64
        %v2698 = vpop.permute.xlu0 %2697
        %2699 = vrot.lane.b32.xlu0 %v2690, 64
        %v2700 = vpop.permute.xlu0 %2699
        %2701 = vrot.lane.b32.xlu0 %v2691, 64
        %v2702 = vpop.permute.xlu0 %2701
        %2703 = vrot.lane.b32.xlu0 %v2692, 64
        %v2704 = vpop.permute.xlu0 %2703
        %2705 = vrot.lane.b32.xlu0 %v2693, 64
        %v2706 = vpop.permute.xlu0 %2705
        %2707 = vrot.lane.b32.xlu0 %v2694, 64
        %v2708 = vpop.permute.xlu0 %2707
        %2709 = vrot.lane.b32.xlu0 %v2695, 64
        %v2710 = vpop.permute.xlu0 %2709
        %2711 = vrot.lane.b32.xlu0 %v2696, 64
        %v2712 = vpop.permute.xlu0 %2711
        %v2714 = vsel %vm1514, %v2642, 0
        %v2717 = vsel %vm1514, %v2644, 0
        %v2720 = vsel %vm1514, %v2646, 0
        %v2723 = vsel %vm1514, %v2648, 0
        %v2726 = vsel %vm1514, %v2650, 0
        %v2729 = vsel %vm1514, %v2652, 0
        %v2732 = vsel %vm1514, %v2654, 0
        %v2735 = vsel %vm1514, %v2656, 0
        %v2738 = vsel %vm1514, %v2698, 0
        %v2741 = vsel %vm1514, %v2700, 0
        %v2744 = vsel %vm1514, %v2702, 0
        %v2747 = vsel %vm1514, %v2704, 0
        %v2750 = vsel %vm1514, %v2706, 0
        %v2753 = vsel %vm1514, %v2708, 0
        %v2756 = vsel %vm1514, %v2710, 0
        %v2759 = vsel %vm1514, %v2712, 0
        %2761 = vmatpush.bf16.xpose.msra.mxu0 %v2759
        %2762 = vmatpush.bf16.xpose.msra.mxu0 %v2756
        %2763 = vmatpush.bf16.xpose.msra.mxu0 %v2753
        %2764 = vmatpush.bf16.xpose.msra.mxu0 %v2750
        %2765 = vmatpush.bf16.xpose.msra.mxu0 %v2747
        %2766 = vmatpush.bf16.xpose.msra.mxu0 %v2744
        %2767 = vmatpush.bf16.xpose.msra.mxu0 %v2741
        %2768 = vmatpush.bf16.xpose.msra.mxu0 %v2738
        %2769 = vmatmul.bf16.gmra.mxu0 %v2714
        %v2770 = vpop.f32.mrf.mxu0
        %v2771 = vadd.f32 0.0, %v2770
        %v2772 = vpop.f32.mrf.mxu0
        %v2773 = vadd.f32 0.0, %v2772
        %2774 = vmatmul.bf16.gmra.mxu0 %v2717
        %v2775 = vpop.f32.mrf.mxu0
        %v2776 = vadd.f32 0.0, %v2775
        %v2777 = vpop.f32.mrf.mxu0
        %v2778 = vadd.f32 0.0, %v2777
        %2779 = vmatmul.bf16.gmra.mxu0 %v2720
        %v2780 = vpop.f32.mrf.mxu0
        %v2781 = vadd.f32 0.0, %v2780
        %v2782 = vpop.f32.mrf.mxu0
        %v2783 = vadd.f32 0.0, %v2782
        %2784 = vmatmul.bf16.gmra.mxu0 %v2723
        %v2785 = vpop.f32.mrf.mxu0
        %v2786 = vadd.f32 0.0, %v2785
        %v2787 = vpop.f32.mrf.mxu0
        %v2788 = vadd.f32 0.0, %v2787
        %2789 = vmatmul.bf16.gmra.mxu0 %v2726
        %v2790 = vpop.f32.mrf.mxu0
        %v2791 = vadd.f32 0.0, %v2790
        %v2792 = vpop.f32.mrf.mxu0
        %v2793 = vadd.f32 0.0, %v2792
        %2794 = vmatmul.bf16.gmra.mxu0 %v2729
        %v2795 = vpop.f32.mrf.mxu0
        %v2796 = vadd.f32 0.0, %v2795
        %v2797 = vpop.f32.mrf.mxu0
        %v2798 = vadd.f32 0.0, %v2797
        %2799 = vmatmul.bf16.gmra.mxu0 %v2732
        %v2800 = vpop.f32.mrf.mxu0
        %v2801 = vadd.f32 0.0, %v2800
        %v2802 = vpop.f32.mrf.mxu0
        %v2803 = vadd.f32 0.0, %v2802
        %2804 = vmatmul.bf16.gmra.mxu0 %v2735
        %v2805 = vpop.f32.mrf.mxu0
        %v2806 = vadd.f32 0.0, %v2805
        %v2807 = vpop.f32.mrf.mxu0
        %v2808 = vadd.f32 0.0, %v2807
        %2809 = vdwg.mxu0
        %2810 = vmax.xlane.f32.xlu0 %v2771
        %v2811 = vpop.xlane.xlu0 %2810
        %2812 = vmax.xlane.f32.xlu0 %v2773
        %v2813 = vpop.xlane.xlu0 %2812
        %2814 = vmax.xlane.f32.xlu0 %v2776
        %v2815 = vpop.xlane.xlu0 %2814
        %2816 = vmax.xlane.f32.xlu0 %v2778
        %v2817 = vpop.xlane.xlu0 %2816
        %2818 = vmax.xlane.f32.xlu0 %v2781
        %v2819 = vpop.xlane.xlu0 %2818
        %2820 = vmax.xlane.f32.xlu0 %v2783
        %v2821 = vpop.xlane.xlu0 %2820
        %2822 = vmax.xlane.f32.xlu0 %v2786
        %v2823 = vpop.xlane.xlu0 %2822
        %2824 = vmax.xlane.f32.xlu0 %v2788
        %v2825 = vpop.xlane.xlu0 %2824
        %2826 = vmax.xlane.f32.xlu0 %v2791
        %v2827 = vpop.xlane.xlu0 %2826
        %2828 = vmax.xlane.f32.xlu0 %v2793
        %v2829 = vpop.xlane.xlu0 %2828
        %2830 = vmax.xlane.f32.xlu0 %v2796
        %v2831 = vpop.xlane.xlu0 %2830
        %2832 = vmax.xlane.f32.xlu0 %v2798
        %v2833 = vpop.xlane.xlu0 %2832
        %2834 = vmax.xlane.f32.xlu0 %v2801
        %v2835 = vpop.xlane.xlu0 %2834
        %2836 = vmax.xlane.f32.xlu0 %v2803
        %v2837 = vpop.xlane.xlu0 %2836
        %2838 = vmax.xlane.f32.xlu0 %v2806
        %v2839 = vpop.xlane.xlu0 %2838
        %2840 = vmax.xlane.f32.xlu0 %v2808
        %v2841 = vpop.xlane.xlu0 %2840
        %v2842 = vsub.f32 %v2771, %v2811
        %v2843 = vsub.f32 %v2773, %v2813
        %v2844 = vsub.f32 %v2776, %v2815
        %v2845 = vsub.f32 %v2778, %v2817
        %v2846 = vsub.f32 %v2781, %v2819
        %v2847 = vsub.f32 %v2783, %v2821
        %v2848 = vsub.f32 %v2786, %v2823
        %v2849 = vsub.f32 %v2788, %v2825
        %v2850 = vsub.f32 %v2791, %v2827
        %v2851 = vsub.f32 %v2793, %v2829
        %v2852 = vsub.f32 %v2796, %v2831
        %v2853 = vsub.f32 %v2798, %v2833
        %v2854 = vsub.f32 %v2801, %v2835
        %v2855 = vsub.f32 %v2803, %v2837
        %v2856 = vsub.f32 %v2806, %v2839
        %v2857 = vsub.f32 %v2808, %v2841
        %v2858 = vmul.f32 %v2842, 1.442695
        %v2859 = vpow.pop %v2858
        %v2860 = vmul.f32 %v2843, 1.442695
        %v2861 = vpow.pop %v2860
        %v2862 = vmul.f32 %v2844, 1.442695
        %v2863 = vpow.pop %v2862
        %v2864 = vmul.f32 %v2845, 1.442695
        %v2865 = vpow.pop %v2864
        %v2866 = vmul.f32 %v2846, 1.442695
        %v2867 = vpow.pop %v2866
        %v2868 = vmul.f32 %v2847, 1.442695
        %v2869 = vpow.pop %v2868
        %v2870 = vmul.f32 %v2848, 1.442695
        %v2871 = vpow.pop %v2870
        %v2872 = vmul.f32 %v2849, 1.442695
        %v2873 = vpow.pop %v2872
        %v2874 = vmul.f32 %v2850, 1.442695
        %v2875 = vpow.pop %v2874
        %v2876 = vmul.f32 %v2851, 1.442695
        %v2877 = vpow.pop %v2876
        %v2878 = vmul.f32 %v2852, 1.442695
        %v2879 = vpow.pop %v2878
        %v2880 = vmul.f32 %v2853, 1.442695
        %v2881 = vpow.pop %v2880
        %v2882 = vmul.f32 %v2854, 1.442695
        %v2883 = vpow.pop %v2882
        %v2884 = vmul.f32 %v2855, 1.442695
        %v2885 = vpow.pop %v2884
        %v2886 = vmul.f32 %v2856, 1.442695
        %v2887 = vpow.pop %v2886
        %v2888 = vmul.f32 %v2857, 1.442695
        %v2889 = vpow.pop %v2888
        %2890 = vadd.xlane.f32.xlu0 %v2859
        %v2891 = vpop.xlane.xlu0 %2890
        %2892 = vadd.xlane.f32.xlu0 %v2861
        %v2893 = vpop.xlane.xlu0 %2892
        %2894 = vadd.xlane.f32.xlu0 %v2863
        %v2895 = vpop.xlane.xlu0 %2894
        %2896 = vadd.xlane.f32.xlu0 %v2865
        %v2897 = vpop.xlane.xlu0 %2896
        %2898 = vadd.xlane.f32.xlu0 %v2867
        %v2899 = vpop.xlane.xlu0 %2898
        %2900 = vadd.xlane.f32.xlu0 %v2869
        %v2901 = vpop.xlane.xlu0 %2900
        %2902 = vadd.xlane.f32.xlu0 %v2871
        %v2903 = vpop.xlane.xlu0 %2902
        %2904 = vadd.xlane.f32.xlu0 %v2873
        %v2905 = vpop.xlane.xlu0 %2904
        %2906 = vadd.xlane.f32.xlu0 %v2875
        %v2907 = vpop.xlane.xlu0 %2906
        %2908 = vadd.xlane.f32.xlu0 %v2877
        %v2909 = vpop.xlane.xlu0 %2908
        %2910 = vadd.xlane.f32.xlu0 %v2879
        %v2911 = vpop.xlane.xlu0 %2910
        %2912 = vadd.xlane.f32.xlu0 %v2881
        %v2913 = vpop.xlane.xlu0 %2912
        %2914 = vadd.xlane.f32.xlu0 %v2883
        %v2915 = vpop.xlane.xlu0 %2914
        %2916 = vadd.xlane.f32.xlu0 %v2885
        %v2917 = vpop.xlane.xlu0 %2916
        %2918 = vadd.xlane.f32.xlu0 %v2887
        %v2919 = vpop.xlane.xlu0 %2918
        %2920 = vadd.xlane.f32.xlu0 %v2889
        %v2921 = vpop.xlane.xlu0 %2920
        %v2922 = vrcp.pop %v2891
        %v2923 = vrcp.pop %v2893
        %v2924 = vrcp.pop %v2895
        %v2925 = vrcp.pop %v2897
        %v2926 = vrcp.pop %v2899
        %v2927 = vrcp.pop %v2901
        %v2928 = vrcp.pop %v2903
        %v2929 = vrcp.pop %v2905
        %v2930 = vrcp.pop %v2907
        %v2931 = vrcp.pop %v2909
        %v2932 = vrcp.pop %v2911
        %v2933 = vrcp.pop %v2913
        %v2934 = vrcp.pop %v2915
        %v2935 = vrcp.pop %v2917
        %v2936 = vrcp.pop %v2919
        %v2937 = vrcp.pop %v2921
        %v2938 = vmul.f32 %v2859, %v2922
        %v2939 = vmul.f32 %v2861, %v2923
        %v2940 = vmul.f32 %v2863, %v2924
        %v2941 = vmul.f32 %v2865, %v2925
        %v2942 = vmul.f32 %v2867, %v2926
        %v2943 = vmul.f32 %v2869, %v2927
        %v2944 = vmul.f32 %v2871, %v2928
        %v2945 = vmul.f32 %v2873, %v2929
        %v2946 = vmul.f32 %v2875, %v2930
        %v2947 = vmul.f32 %v2877, %v2931
        %v2948 = vmul.f32 %v2879, %v2932
        %v2949 = vmul.f32 %v2881, %v2933
        %v2950 = vmul.f32 %v2883, %v2934
        %v2951 = vmul.f32 %v2885, %v2935
        %v2952 = vmul.f32 %v2887, %v2936
        %v2953 = vmul.f32 %v2889, %v2937
        // Predicated region
        $region105: #{transformer_forward.1} parent=67 // pred_check
          %p2954 = pneg %p1756
        $region106: #{transformer_forward.1} parent=67 // pred_check_branch
          %2956 = sbr.rel (%p2954) target = $region108
        $region107: #{transformer_forward.1} parent=67 // pred_region
          %s2957 = scalar_lea.vmem %s566, 256 [#allocation17]
          %2958 = vst [vmem:[%s2957] sm:$0xff] %v2938
          %2959 = vst [vmem:[%s2957 + $0x8] sm:$0xff] %v2939
          %2960 = vst [vmem:[%s2957 + $0x10] sm:$0xff] %v2940
          %2961 = vst [vmem:[%s2957 + $0x18] sm:$0xff] %v2941
          %2962 = vst [vmem:[%s2957 + $0x20] sm:$0xff] %v2942
          %2963 = vst [vmem:[%s2957 + $0x28] sm:$0xff] %v2943
          %2964 = vst [vmem:[%s2957 + $0x30] sm:$0xff] %v2944
          %2965 = vst [vmem:[%s2957 + $0x38] sm:$0xff] %v2945
          %2966 = vst [vmem:[%s2957 + $0x40] sm:$0xff] %v2946
          %2967 = vst [vmem:[%s2957 + $0x48] sm:$0xff] %v2947
          %2968 = vst [vmem:[%s2957 + $0x50] sm:$0xff] %v2948
          %2969 = vst [vmem:[%s2957 + $0x58] sm:$0xff] %v2949
          %2970 = vst [vmem:[%s2957 + $0x60] sm:$0xff] %v2950
          %2971 = vst [vmem:[%s2957 + $0x68] sm:$0xff] %v2951
          %2972 = vst [vmem:[%s2957 + $0x70] sm:$0xff] %v2952
          %2973 = vst [vmem:[%s2957 + $0x78] sm:$0xff] %v2953
        $region108: #{transformer_forward.1} parent=67 // pred_fallthru
          _
        %v2974 = vpack.c.bf16 %v2939, %v2938
        %v2975 = vpack.c.bf16 %v2941, %v2940
        %v2976 = vpack.c.bf16 %v2943, %v2942
        %v2977 = vpack.c.bf16 %v2945, %v2944
        %v2978 = vpack.c.bf16 %v2947, %v2946
        %v2979 = vpack.c.bf16 %v2949, %v2948
        %v2980 = vpack.c.bf16 %v2951, %v2950
        %v2981 = vpack.c.bf16 %v2953, %v2952
        %v2998 = vunpack.c.l.b16 %v2585
        %v2999 = vunpack.c.l.b16 %v2586
        %v3000 = vunpack.c.l.b16 %v2587
        %v3001 = vunpack.c.l.b16 %v2588
        %v3002 = vunpack.c.l.b16 %v2589
        %v3003 = vunpack.c.l.b16 %v2590
        %v3004 = vunpack.c.l.b16 %v2591
        %v3005 = vunpack.c.l.b16 %v2592
        %v3006 = vunpack.c.l.b16 %v2593
        %v3007 = vunpack.c.l.b16 %v2594
        %v3008 = vunpack.c.l.b16 %v2595
        %v3009 = vunpack.c.l.b16 %v2596
        %v3010 = vunpack.c.l.b16 %v2597
        %v3011 = vunpack.c.l.b16 %v2598
        %v3012 = vunpack.c.l.b16 %v2599
        %v3013 = vunpack.c.l.b16 %v2600
        %v3014 = vpack.c.b16 %v2999, %v2998
        %v3015 = vpack.c.b16 %v3001, %v3000
        %v3016 = vpack.c.b16 %v3003, %v3002
        %v3017 = vpack.c.b16 %v3005, %v3004
        %v3018 = vpack.c.b16 %v3007, %v3006
        %v3019 = vpack.c.b16 %v3009, %v3008
        %v3020 = vpack.c.b16 %v3011, %v3010
        %v3021 = vpack.c.b16 %v3013, %v3012
        %3022 = vrot.lane.b32.xlu0 %v3014, 64
        %v3023 = vpop.permute.xlu0 %3022
        %3024 = vrot.lane.b32.xlu0 %v3015, 64
        %v3025 = vpop.permute.xlu0 %3024
        %3026 = vrot.lane.b32.xlu0 %v3016, 64
        %v3027 = vpop.permute.xlu0 %3026
        %3028 = vrot.lane.b32.xlu0 %v3017, 64
        %v3029 = vpop.permute.xlu0 %3028
        %3030 = vrot.lane.b32.xlu0 %v3018, 64
        %v3031 = vpop.permute.xlu0 %3030
        %3032 = vrot.lane.b32.xlu0 %v3019, 64
        %v3033 = vpop.permute.xlu0 %3032
        %3034 = vrot.lane.b32.xlu0 %v3020, 64
        %v3035 = vpop.permute.xlu0 %3034
        %3036 = vrot.lane.b32.xlu0 %v3021, 64
        %v3037 = vpop.permute.xlu0 %3036
        %3046 = vmatpush.bf16.msra.mxu0 %v3037
        %3047 = vmatpush.bf16.msra.mxu0 %v3035
        %3048 = vmatpush.bf16.msra.mxu0 %v3033
        %3049 = vmatpush.bf16.msra.mxu0 %v3031
        %3050 = vmatpush.bf16.msra.mxu0 %v3029
        %3051 = vmatpush.bf16.msra.mxu0 %v3027
        %3052 = vmatpush.bf16.msra.mxu0 %v3025
        %3053 = vmatpush.bf16.msra.mxu0 %v3023
        %3054 = vmatmul.bf16.gmra.mxu0 %v2974
        %v3055 = vpop.f32.mrf.mxu0
        %v3056 = vadd.f32 0.0, %v3055
        %v3057 = vpop.f32.mrf.mxu0
        %v3058 = vadd.f32 0.0, %v3057
        %3059 = vmatmul.bf16.gmra.mxu0 %v2975
        %v3060 = vpop.f32.mrf.mxu0
        %v3061 = vadd.f32 0.0, %v3060
        %v3062 = vpop.f32.mrf.mxu0
        %v3063 = vadd.f32 0.0, %v3062
        %3064 = vmatmul.bf16.gmra.mxu0 %v2976
        %v3065 = vpop.f32.mrf.mxu0
        %v3066 = vadd.f32 0.0, %v3065
        %v3067 = vpop.f32.mrf.mxu0
        %v3068 = vadd.f32 0.0, %v3067
        %3069 = vmatmul.bf16.gmra.mxu0 %v2977
        %v3070 = vpop.f32.mrf.mxu0
        %v3071 = vadd.f32 0.0, %v3070
        %v3072 = vpop.f32.mrf.mxu0
        %v3073 = vadd.f32 0.0, %v3072
        %3074 = vmatmul.bf16.gmra.mxu0 %v2978
        %v3075 = vpop.f32.mrf.mxu0
        %v3076 = vadd.f32 0.0, %v3075
        %v3077 = vpop.f32.mrf.mxu0
        %v3078 = vadd.f32 0.0, %v3077
        %3079 = vmatmul.bf16.gmra.mxu0 %v2979
        %v3080 = vpop.f32.mrf.mxu0
        %v3081 = vadd.f32 0.0, %v3080
        %v3082 = vpop.f32.mrf.mxu0
        %v3083 = vadd.f32 0.0, %v3082
        %3084 = vmatmul.bf16.gmra.mxu0 %v2980
        %v3085 = vpop.f32.mrf.mxu0
        %v3086 = vadd.f32 0.0, %v3085
        %v3087 = vpop.f32.mrf.mxu0
        %v3088 = vadd.f32 0.0, %v3087
        %3089 = vmatmul.bf16.gmra.mxu0 %v2981
        %v3090 = vpop.f32.mrf.mxu0
        %v3091 = vadd.f32 0.0, %v3090
        %v3092 = vpop.f32.mrf.mxu0
        %v3093 = vadd.f32 0.0, %v3092
        %3094 = vdwg.mxu0
        %v3095 = vpack.c.bf16 %v3056, %v3056
        %v3096 = vpack.c.bf16 %v3058, %v3058
        %v3097 = vpack.c.bf16 %v3061, %v3061
        %v3098 = vpack.c.bf16 %v3063, %v3063
        %v3099 = vpack.c.bf16 %v3066, %v3066
        %v3100 = vpack.c.bf16 %v3068, %v3068
        %v3101 = vpack.c.bf16 %v3071, %v3071
        %v3102 = vpack.c.bf16 %v3073, %v3073
        %v3103 = vpack.c.bf16 %v3076, %v3076
        %v3104 = vpack.c.bf16 %v3078, %v3078
        %v3105 = vpack.c.bf16 %v3081, %v3081
        %v3106 = vpack.c.bf16 %v3083, %v3083
        %v3107 = vpack.c.bf16 %v3086, %v3086
        %v3108 = vpack.c.bf16 %v3088, %v3088
        %v3109 = vpack.c.bf16 %v3091, %v3091
        %v3110 = vpack.c.bf16 %v3093, %v3093
        %3127 = vrot.lane.b32.xlu0 %v3095, 64
        %v3128 = vpop.permute.xlu0 %3127
        %3129 = vrot.lane.b32.xlu0 %v3096, 64
        %v3130 = vpop.permute.xlu0 %3129
        %3131 = vrot.lane.b32.xlu0 %v3097, 64
        %v3132 = vpop.permute.xlu0 %3131
        %3133 = vrot.lane.b32.xlu0 %v3098, 64
        %v3134 = vpop.permute.xlu0 %3133
        %3135 = vrot.lane.b32.xlu0 %v3099, 64
        %v3136 = vpop.permute.xlu0 %3135
        %3137 = vrot.lane.b32.xlu0 %v3100, 64
        %v3138 = vpop.permute.xlu0 %3137
        %3139 = vrot.lane.b32.xlu0 %v3101, 64
        %v3140 = vpop.permute.xlu0 %3139
        %3141 = vrot.lane.b32.xlu0 %v3102, 64
        %v3142 = vpop.permute.xlu0 %3141
        %3143 = vrot.lane.b32.xlu0 %v3103, 64
        %v3144 = vpop.permute.xlu0 %3143
        %3145 = vrot.lane.b32.xlu0 %v3104, 64
        %v3146 = vpop.permute.xlu0 %3145
        %3147 = vrot.lane.b32.xlu0 %v3105, 64
        %v3148 = vpop.permute.xlu0 %3147
        %3149 = vrot.lane.b32.xlu0 %v3106, 64
        %v3150 = vpop.permute.xlu0 %3149
        %3151 = vrot.lane.b32.xlu0 %v3107, 64
        %v3152 = vpop.permute.xlu0 %3151
        %3153 = vrot.lane.b32.xlu0 %v3108, 64
        %v3154 = vpop.permute.xlu0 %3153
        %3155 = vrot.lane.b32.xlu0 %v3109, 64
        %v3156 = vpop.permute.xlu0 %3155
        %3157 = vrot.lane.b32.xlu0 %v3110, 64
        %v3158 = vpop.permute.xlu0 %3157
        %vm3175 = vcmask 781824
        %3176 = vst.msk [vmem:[#allocation4] sm:$0xf] %vm3175, %v3128
        %3177 = vst.msk [vmem:[#allocation4 + $0x4] sm:$0xf] %vm3175, %v3130
        %3178 = vst.msk [vmem:[#allocation4 + $0x8] sm:$0xf] %vm3175, %v3132
        %3179 = vst.msk [vmem:[#allocation4 + $0xc] sm:$0xf] %vm3175, %v3134
        %3180 = vst.msk [vmem:[#allocation4 + $0x10] sm:$0xf] %vm3175, %v3136
        %3181 = vst.msk [vmem:[#allocation4 + $0x14] sm:$0xf] %vm3175, %v3138
        %3182 = vst.msk [vmem:[#allocation4 + $0x18] sm:$0xf] %vm3175, %v3140
        %3183 = vst.msk [vmem:[#allocation4 + $0x1c] sm:$0xf] %vm3175, %v3142
        %3184 = vst.msk [vmem:[#allocation4 + $0x20] sm:$0xf] %vm3175, %v3144
        %3185 = vst.msk [vmem:[#allocation4 + $0x24] sm:$0xf] %vm3175, %v3146
        %3186 = vst.msk [vmem:[#allocation4 + $0x28] sm:$0xf] %vm3175, %v3148
        %3187 = vst.msk [vmem:[#allocation4 + $0x2c] sm:$0xf] %vm3175, %v3150
        %3188 = vst.msk [vmem:[#allocation4 + $0x30] sm:$0xf] %vm3175, %v3152
        %3189 = vst.msk [vmem:[#allocation4 + $0x34] sm:$0xf] %vm3175, %v3154
        %3190 = vst.msk [vmem:[#allocation4 + $0x38] sm:$0xf] %vm3175, %v3156
        %3191 = vst.msk [vmem:[#allocation4 + $0x3c] sm:$0xf] %vm3175, %v3158
        %v3192 = vld [vmem:[#allocation3] sm:$0xf]
        %v3193 = vld [vmem:[#allocation3 + $0xc] sm:$0xf]
        %v3194 = vld [vmem:[#allocation3 + $0x18] sm:$0xf]
        %v3195 = vld [vmem:[#allocation3 + $0x24] sm:$0xf]
        %v3196 = vld [vmem:[#allocation3 + $0x30] sm:$0xf]
        %v3197 = vld [vmem:[#allocation3 + $0x3c] sm:$0xf]
        %v3198 = vld [vmem:[#allocation3 + $0x48] sm:$0xf]
        %v3199 = vld [vmem:[#allocation3 + $0x54] sm:$0xf]
        %v3200 = vld [vmem:[#allocation3 + $0x60] sm:$0xf]
        %v3201 = vld [vmem:[#allocation3 + $0x6c] sm:$0xf]
        %v3202 = vld [vmem:[#allocation3 + $0x78] sm:$0xf]
        %v3203 = vld [vmem:[#allocation3 + $0x84] sm:$0xf]
        %v3204 = vld [vmem:[#allocation3 + $0x90] sm:$0xf]
        %v3205 = vld [vmem:[#allocation3 + $0x9c] sm:$0xf]
        %v3206 = vld [vmem:[#allocation3 + $0xa8] sm:$0xf]
        %v3207 = vld [vmem:[#allocation3 + $0xb4] sm:$0xf]
        %v3208 = vld [vmem:[#allocation3 + $0x4] sm:$0xf]
        %v3209 = vld [vmem:[#allocation3 + $0x10] sm:$0xf]
        %v3210 = vld [vmem:[#allocation3 + $0x1c] sm:$0xf]
        %v3211 = vld [vmem:[#allocation3 + $0x28] sm:$0xf]
        %v3212 = vld [vmem:[#allocation3 + $0x34] sm:$0xf]
        %v3213 = vld [vmem:[#allocation3 + $0x40] sm:$0xf]
        %v3214 = vld [vmem:[#allocation3 + $0x4c] sm:$0xf]
        %v3215 = vld [vmem:[#allocation3 + $0x58] sm:$0xf]
        %v3216 = vld [vmem:[#allocation3 + $0x64] sm:$0xf]
        %v3217 = vld [vmem:[#allocation3 + $0x70] sm:$0xf]
        %v3218 = vld [vmem:[#allocation3 + $0x7c] sm:$0xf]
        %v3219 = vld [vmem:[#allocation3 + $0x88] sm:$0xf]
        %v3220 = vld [vmem:[#allocation3 + $0x94] sm:$0xf]
        %v3221 = vld [vmem:[#allocation3 + $0xa0] sm:$0xf]
        %v3222 = vld [vmem:[#allocation3 + $0xac] sm:$0xf]
        %v3223 = vld [vmem:[#allocation3 + $0xb8] sm:$0xf]
        %v3224 = vld [vmem:[#allocation3 + $0x8] sm:$0xf]
        %v3225 = vld [vmem:[#allocation3 + $0x14] sm:$0xf]
        %v3226 = vld [vmem:[#allocation3 + $0x20] sm:$0xf]
        %v3227 = vld [vmem:[#allocation3 + $0x2c] sm:$0xf]
        %v3228 = vld [vmem:[#allocation3 + $0x38] sm:$0xf]
        %v3229 = vld [vmem:[#allocation3 + $0x44] sm:$0xf]
        %v3230 = vld [vmem:[#allocation3 + $0x50] sm:$0xf]
        %v3231 = vld [vmem:[#allocation3 + $0x5c] sm:$0xf]
        %v3232 = vld [vmem:[#allocation3 + $0x68] sm:$0xf]
        %v3233 = vld [vmem:[#allocation3 + $0x74] sm:$0xf]
        %v3234 = vld [vmem:[#allocation3 + $0x80] sm:$0xf]
        %v3235 = vld [vmem:[#allocation3 + $0x8c] sm:$0xf]
        %v3236 = vld [vmem:[#allocation3 + $0x98] sm:$0xf]
        %v3237 = vld [vmem:[#allocation3 + $0xa4] sm:$0xf]
        %v3238 = vld [vmem:[#allocation3 + $0xb0] sm:$0xf]
        %v3239 = vld [vmem:[#allocation3 + $0xbc] sm:$0xf]
        %v3256 = vunpack.c.l.b16 %v3192
        %v3257 = vunpack.c.l.b16 %v3193
        %v3258 = vunpack.c.l.b16 %v3194
        %v3259 = vunpack.c.l.b16 %v3195
        %v3260 = vunpack.c.l.b16 %v3196
        %v3261 = vunpack.c.l.b16 %v3197
        %v3262 = vunpack.c.l.b16 %v3198
        %v3263 = vunpack.c.l.b16 %v3199
        %v3264 = vunpack.c.l.b16 %v3200
        %v3265 = vunpack.c.l.b16 %v3201
        %v3266 = vunpack.c.l.b16 %v3202
        %v3267 = vunpack.c.l.b16 %v3203
        %v3268 = vunpack.c.l.b16 %v3204
        %v3269 = vunpack.c.l.b16 %v3205
        %v3270 = vunpack.c.l.b16 %v3206
        %v3271 = vunpack.c.l.b16 %v3207
        %v3272 = vpack.c.b16 %v3257, %v3256
        %v3273 = vpack.c.b16 %v3259, %v3258
        %v3274 = vpack.c.b16 %v3261, %v3260
        %v3275 = vpack.c.b16 %v3263, %v3262
        %v3276 = vpack.c.b16 %v3265, %v3264
        %v3277 = vpack.c.b16 %v3267, %v3266
        %v3278 = vpack.c.b16 %v3269, %v3268
        %v3279 = vpack.c.b16 %v3271, %v3270
        %3280 = vrot.lane.b32.xlu0 %v3272, 32
        %v3281 = vpop.permute.xlu0 %3280
        %3282 = vrot.lane.b32.xlu0 %v3273, 32
        %v3283 = vpop.permute.xlu0 %3282
        %3284 = vrot.lane.b32.xlu0 %v3274, 32
        %v3285 = vpop.permute.xlu0 %3284
        %3286 = vrot.lane.b32.xlu0 %v3275, 32
        %v3287 = vpop.permute.xlu0 %3286
        %3288 = vrot.lane.b32.xlu0 %v3276, 32
        %v3289 = vpop.permute.xlu0 %3288
        %3290 = vrot.lane.b32.xlu0 %v3277, 32
        %v3291 = vpop.permute.xlu0 %3290
        %3292 = vrot.lane.b32.xlu0 %v3278, 32
        %v3293 = vpop.permute.xlu0 %3292
        %3294 = vrot.lane.b32.xlu0 %v3279, 32
        %v3295 = vpop.permute.xlu0 %3294
        %v3312 = vunpack.c.l.b16 %v3208
        %v3313 = vunpack.c.l.b16 %v3209
        %v3314 = vunpack.c.l.b16 %v3210
        %v3315 = vunpack.c.l.b16 %v3211
        %v3316 = vunpack.c.l.b16 %v3212
        %v3317 = vunpack.c.l.b16 %v3213
        %v3318 = vunpack.c.l.b16 %v3214
        %v3319 = vunpack.c.l.b16 %v3215
        %v3320 = vunpack.c.l.b16 %v3216
        %v3321 = vunpack.c.l.b16 %v3217
        %v3322 = vunpack.c.l.b16 %v3218
        %v3323 = vunpack.c.l.b16 %v3219
        %v3324 = vunpack.c.l.b16 %v3220
        %v3325 = vunpack.c.l.b16 %v3221
        %v3326 = vunpack.c.l.b16 %v3222
        %v3327 = vunpack.c.l.b16 %v3223
        %v3328 = vpack.c.b16 %v3313, %v3312
        %v3329 = vpack.c.b16 %v3315, %v3314
        %v3330 = vpack.c.b16 %v3317, %v3316
        %v3331 = vpack.c.b16 %v3319, %v3318
        %v3332 = vpack.c.b16 %v3321, %v3320
        %v3333 = vpack.c.b16 %v3323, %v3322
        %v3334 = vpack.c.b16 %v3325, %v3324
        %v3335 = vpack.c.b16 %v3327, %v3326
        %3336 = vrot.lane.b32.xlu0 %v3328, 32
        %v3337 = vpop.permute.xlu0 %3336
        %3338 = vrot.lane.b32.xlu0 %v3329, 32
        %v3339 = vpop.permute.xlu0 %3338
        %3340 = vrot.lane.b32.xlu0 %v3330, 32
        %v3341 = vpop.permute.xlu0 %3340
        %3342 = vrot.lane.b32.xlu0 %v3331, 32
        %v3343 = vpop.permute.xlu0 %3342
        %3344 = vrot.lane.b32.xlu0 %v3332, 32
        %v3345 = vpop.permute.xlu0 %3344
        %3346 = vrot.lane.b32.xlu0 %v3333, 32
        %v3347 = vpop.permute.xlu0 %3346
        %3348 = vrot.lane.b32.xlu0 %v3334, 32
        %v3349 = vpop.permute.xlu0 %3348
        %3350 = vrot.lane.b32.xlu0 %v3335, 32
        %v3351 = vpop.permute.xlu0 %3350
        %v3353 = vsel %vm1514, %v3281, 0
        %v3356 = vsel %vm1514, %v3283, 0
        %v3359 = vsel %vm1514, %v3285, 0
        %v3362 = vsel %vm1514, %v3287, 0
        %v3365 = vsel %vm1514, %v3289, 0
        %v3368 = vsel %vm1514, %v3291, 0
        %v3371 = vsel %vm1514, %v3293, 0
        %v3374 = vsel %vm1514, %v3295, 0
        %v3377 = vsel %vm1514, %v3337, 0
        %v3380 = vsel %vm1514, %v3339, 0
        %v3383 = vsel %vm1514, %v3341, 0
        %v3386 = vsel %vm1514, %v3343, 0
        %v3389 = vsel %vm1514, %v3345, 0
        %v3392 = vsel %vm1514, %v3347, 0
        %v3395 = vsel %vm1514, %v3349, 0
        %v3398 = vsel %vm1514, %v3351, 0
        %3400 = vmatpush.bf16.xpose.msra.mxu0 %v3398
        %3401 = vmatpush.bf16.xpose.msra.mxu0 %v3395
        %3402 = vmatpush.bf16.xpose.msra.mxu0 %v3392
        %3403 = vmatpush.bf16.xpose.msra.mxu0 %v3389
        %3404 = vmatpush.bf16.xpose.msra.mxu0 %v3386
        %3405 = vmatpush.bf16.xpose.msra.mxu0 %v3383
        %3406 = vmatpush.bf16.xpose.msra.mxu0 %v3380
        %3407 = vmatpush.bf16.xpose.msra.mxu0 %v3377
        %3408 = vmatmul.bf16.gmra.mxu0 %v3353
        %v3409 = vpop.f32.mrf.mxu0
        %v3410 = vadd.f32 0.0, %v3409
        %v3411 = vpop.f32.mrf.mxu0
        %v3412 = vadd.f32 0.0, %v3411
        %3413 = vmatmul.bf16.gmra.mxu0 %v3356
        %v3414 = vpop.f32.mrf.mxu0
        %v3415 = vadd.f32 0.0, %v3414
        %v3416 = vpop.f32.mrf.mxu0
        %v3417 = vadd.f32 0.0, %v3416
        %3418 = vmatmul.bf16.gmra.mxu0 %v3359
        %v3419 = vpop.f32.mrf.mxu0
        %v3420 = vadd.f32 0.0, %v3419
        %v3421 = vpop.f32.mrf.mxu0
        %v3422 = vadd.f32 0.0, %v3421
        %3423 = vmatmul.bf16.gmra.mxu0 %v3362
        %v3424 = vpop.f32.mrf.mxu0
        %v3425 = vadd.f32 0.0, %v3424
        %v3426 = vpop.f32.mrf.mxu0
        %v3427 = vadd.f32 0.0, %v3426
        %3428 = vmatmul.bf16.gmra.mxu0 %v3365
        %v3429 = vpop.f32.mrf.mxu0
        %v3430 = vadd.f32 0.0, %v3429
        %v3431 = vpop.f32.mrf.mxu0
        %v3432 = vadd.f32 0.0, %v3431
        %3433 = vmatmul.bf16.gmra.mxu0 %v3368
        %v3434 = vpop.f32.mrf.mxu0
        %v3435 = vadd.f32 0.0, %v3434
        %v3436 = vpop.f32.mrf.mxu0
        %v3437 = vadd.f32 0.0, %v3436
        %3438 = vmatmul.bf16.gmra.mxu0 %v3371
        %v3439 = vpop.f32.mrf.mxu0
        %v3440 = vadd.f32 0.0, %v3439
        %v3441 = vpop.f32.mrf.mxu0
        %v3442 = vadd.f32 0.0, %v3441
        %3443 = vmatmul.bf16.gmra.mxu0 %v3374
        %v3444 = vpop.f32.mrf.mxu0
        %v3445 = vadd.f32 0.0, %v3444
        %v3446 = vpop.f32.mrf.mxu0
        %v3447 = vadd.f32 0.0, %v3446
        %3448 = vdwg.mxu0
        %3449 = vmax.xlane.f32.xlu0 %v3410
        %v3450 = vpop.xlane.xlu0 %3449
        %3451 = vmax.xlane.f32.xlu0 %v3412
        %v3452 = vpop.xlane.xlu0 %3451
        %3453 = vmax.xlane.f32.xlu0 %v3415
        %v3454 = vpop.xlane.xlu0 %3453
        %3455 = vmax.xlane.f32.xlu0 %v3417
        %v3456 = vpop.xlane.xlu0 %3455
        %3457 = vmax.xlane.f32.xlu0 %v3420
        %v3458 = vpop.xlane.xlu0 %3457
        %3459 = vmax.xlane.f32.xlu0 %v3422
        %v3460 = vpop.xlane.xlu0 %3459
        %3461 = vmax.xlane.f32.xlu0 %v3425
        %v3462 = vpop.xlane.xlu0 %3461
        %3463 = vmax.xlane.f32.xlu0 %v3427
        %v3464 = vpop.xlane.xlu0 %3463
        %3465 = vmax.xlane.f32.xlu0 %v3430
        %v3466 = vpop.xlane.xlu0 %3465
        %3467 = vmax.xlane.f32.xlu0 %v3432
        %v3468 = vpop.xlane.xlu0 %3467
        %3469 = vmax.xlane.f32.xlu0 %v3435
        %v3470 = vpop.xlane.xlu0 %3469
        %3471 = vmax.xlane.f32.xlu0 %v3437
        %v3472 = vpop.xlane.xlu0 %3471
        %3473 = vmax.xlane.f32.xlu0 %v3440
        %v3474 = vpop.xlane.xlu0 %3473
        %3475 = vmax.xlane.f32.xlu0 %v3442
        %v3476 = vpop.xlane.xlu0 %3475
        %3477 = vmax.xlane.f32.xlu0 %v3445
        %v3478 = vpop.xlane.xlu0 %3477
        %3479 = vmax.xlane.f32.xlu0 %v3447
        %v3480 = vpop.xlane.xlu0 %3479
        %v3481 = vsub.f32 %v3410, %v3450
        %v3482 = vsub.f32 %v3412, %v3452
        %v3483 = vsub.f32 %v3415, %v3454
        %v3484 = vsub.f32 %v3417, %v3456
        %v3485 = vsub.f32 %v3420, %v3458
        %v3486 = vsub.f32 %v3422, %v3460
        %v3487 = vsub.f32 %v3425, %v3462
        %v3488 = vsub.f32 %v3427, %v3464
        %v3489 = vsub.f32 %v3430, %v3466
        %v3490 = vsub.f32 %v3432, %v3468
        %v3491 = vsub.f32 %v3435, %v3470
        %v3492 = vsub.f32 %v3437, %v3472
        %v3493 = vsub.f32 %v3440, %v3474
        %v3494 = vsub.f32 %v3442, %v3476
        %v3495 = vsub.f32 %v3445, %v3478
        %v3496 = vsub.f32 %v3447, %v3480
        %v3497 = vmul.f32 %v3481, 1.442695
        %v3498 = vpow.pop %v3497
        %v3499 = vmul.f32 %v3482, 1.442695
        %v3500 = vpow.pop %v3499
        %v3501 = vmul.f32 %v3483, 1.442695
        %v3502 = vpow.pop %v3501
        %v3503 = vmul.f32 %v3484, 1.442695
        %v3504 = vpow.pop %v3503
        %v3505 = vmul.f32 %v3485, 1.442695
        %v3506 = vpow.pop %v3505
        %v3507 = vmul.f32 %v3486, 1.442695
        %v3508 = vpow.pop %v3507
        %v3509 = vmul.f32 %v3487, 1.442695
        %v3510 = vpow.pop %v3509
        %v3511 = vmul.f32 %v3488, 1.442695
        %v3512 = vpow.pop %v3511
        %v3513 = vmul.f32 %v3489, 1.442695
        %v3514 = vpow.pop %v3513
        %v3515 = vmul.f32 %v3490, 1.442695
        %v3516 = vpow.pop %v3515
        %v3517 = vmul.f32 %v3491, 1.442695
        %v3518 = vpow.pop %v3517
        %v3519 = vmul.f32 %v3492, 1.442695
        %v3520 = vpow.pop %v3519
        %v3521 = vmul.f32 %v3493, 1.442695
        %v3522 = vpow.pop %v3521
        %v3523 = vmul.f32 %v3494, 1.442695
        %v3524 = vpow.pop %v3523
        %v3525 = vmul.f32 %v3495, 1.442695
        %v3526 = vpow.pop %v3525
        %v3527 = vmul.f32 %v3496, 1.442695
        %v3528 = vpow.pop %v3527
        %3529 = vadd.xlane.f32.xlu0 %v3498
        %v3530 = vpop.xlane.xlu0 %3529
        %3531 = vadd.xlane.f32.xlu0 %v3500
        %v3532 = vpop.xlane.xlu0 %3531
        %3533 = vadd.xlane.f32.xlu0 %v3502
        %v3534 = vpop.xlane.xlu0 %3533
        %3535 = vadd.xlane.f32.xlu0 %v3504
        %v3536 = vpop.xlane.xlu0 %3535
        %3537 = vadd.xlane.f32.xlu0 %v3506
        %v3538 = vpop.xlane.xlu0 %3537
        %3539 = vadd.xlane.f32.xlu0 %v3508
        %v3540 = vpop.xlane.xlu0 %3539
        %3541 = vadd.xlane.f32.xlu0 %v3510
        %v3542 = vpop.xlane.xlu0 %3541
        %3543 = vadd.xlane.f32.xlu0 %v3512
        %v3544 = vpop.xlane.xlu0 %3543
        %3545 = vadd.xlane.f32.xlu0 %v3514
        %v3546 = vpop.xlane.xlu0 %3545
        %3547 = vadd.xlane.f32.xlu0 %v3516
        %v3548 = vpop.xlane.xlu0 %3547
        %3549 = vadd.xlane.f32.xlu0 %v3518
        %v3550 = vpop.xlane.xlu0 %3549
        %3551 = vadd.xlane.f32.xlu0 %v3520
        %v3552 = vpop.xlane.xlu0 %3551
        %3553 = vadd.xlane.f32.xlu0 %v3522
        %v3554 = vpop.xlane.xlu0 %3553
        %3555 = vadd.xlane.f32.xlu0 %v3524
        %v3556 = vpop.xlane.xlu0 %3555
        %3557 = vadd.xlane.f32.xlu0 %v3526
        %v3558 = vpop.xlane.xlu0 %3557
        %3559 = vadd.xlane.f32.xlu0 %v3528
        %v3560 = vpop.xlane.xlu0 %3559
        %v3561 = vrcp.pop %v3530
        %v3562 = vrcp.pop %v3532
        %v3563 = vrcp.pop %v3534
        %v3564 = vrcp.pop %v3536
        %v3565 = vrcp.pop %v3538
        %v3566 = vrcp.pop %v3540
        %v3567 = vrcp.pop %v3542
        %v3568 = vrcp.pop %v3544
        %v3569 = vrcp.pop %v3546
        %v3570 = vrcp.pop %v3548
        %v3571 = vrcp.pop %v3550
        %v3572 = vrcp.pop %v3552
        %v3573 = vrcp.pop %v3554
        %v3574 = vrcp.pop %v3556
        %v3575 = vrcp.pop %v3558
        %v3576 = vrcp.pop %v3560
        %v3577 = vmul.f32 %v3498, %v3561
        %v3578 = vmul.f32 %v3500, %v3562
        %v3579 = vmul.f32 %v3502, %v3563
        %v3580 = vmul.f32 %v3504, %v3564
        %v3581 = vmul.f32 %v3506, %v3565
        %v3582 = vmul.f32 %v3508, %v3566
        %v3583 = vmul.f32 %v3510, %v3567
        %v3584 = vmul.f32 %v3512, %v3568
        %v3585 = vmul.f32 %v3514, %v3569
        %v3586 = vmul.f32 %v3516, %v3570
        %v3587 = vmul.f32 %v3518, %v3571
        %v3588 = vmul.f32 %v3520, %v3572
        %v3589 = vmul.f32 %v3522, %v3573
        %v3590 = vmul.f32 %v3524, %v3574
        %v3591 = vmul.f32 %v3526, %v3575
        %v3592 = vmul.f32 %v3528, %v3576
        // Predicated region
        $region109: #{transformer_forward.1} parent=67 // pred_check
          %p3593 = pneg %p1756
        $region110: #{transformer_forward.1} parent=67 // pred_check_branch
          %3595 = sbr.rel (%p3593) target = $region112
        $region111: #{transformer_forward.1} parent=67 // pred_region
          %s3596 = scalar_lea.vmem %s566, 384 [#allocation17]
          %3597 = vst [vmem:[%s3596] sm:$0xff] %v3577
          %3598 = vst [vmem:[%s3596 + $0x8] sm:$0xff] %v3578
          %3599 = vst [vmem:[%s3596 + $0x10] sm:$0xff] %v3579
          %3600 = vst [vmem:[%s3596 + $0x18] sm:$0xff] %v3580
          %3601 = vst [vmem:[%s3596 + $0x20] sm:$0xff] %v3581
          %3602 = vst [vmem:[%s3596 + $0x28] sm:$0xff] %v3582
          %3603 = vst [vmem:[%s3596 + $0x30] sm:$0xff] %v3583
          %3604 = vst [vmem:[%s3596 + $0x38] sm:$0xff] %v3584
          %3605 = vst [vmem:[%s3596 + $0x40] sm:$0xff] %v3585
          %3606 = vst [vmem:[%s3596 + $0x48] sm:$0xff] %v3586
          %3607 = vst [vmem:[%s3596 + $0x50] sm:$0xff] %v3587
          %3608 = vst [vmem:[%s3596 + $0x58] sm:$0xff] %v3588
          %3609 = vst [vmem:[%s3596 + $0x60] sm:$0xff] %v3589
          %3610 = vst [vmem:[%s3596 + $0x68] sm:$0xff] %v3590
          %3611 = vst [vmem:[%s3596 + $0x70] sm:$0xff] %v3591
          %3612 = vst [vmem:[%s3596 + $0x78] sm:$0xff] %v3592
        $region112: #{transformer_forward.1} parent=67 // pred_fallthru
          _
        %v3613 = vpack.c.bf16 %v3578, %v3577
        %v3614 = vpack.c.bf16 %v3580, %v3579
        %v3615 = vpack.c.bf16 %v3582, %v3581
        %v3616 = vpack.c.bf16 %v3584, %v3583
        %v3617 = vpack.c.bf16 %v3586, %v3585
        %v3618 = vpack.c.bf16 %v3588, %v3587
        %v3619 = vpack.c.bf16 %v3590, %v3589
        %v3620 = vpack.c.bf16 %v3592, %v3591
        %v3637 = vunpack.c.l.b16 %v3224
        %v3638 = vunpack.c.l.b16 %v3225
        %v3639 = vunpack.c.l.b16 %v3226
        %v3640 = vunpack.c.l.b16 %v3227
        %v3641 = vunpack.c.l.b16 %v3228
        %v3642 = vunpack.c.l.b16 %v3229
        %v3643 = vunpack.c.l.b16 %v3230
        %v3644 = vunpack.c.l.b16 %v3231
        %v3645 = vunpack.c.l.b16 %v3232
        %v3646 = vunpack.c.l.b16 %v3233
        %v3647 = vunpack.c.l.b16 %v3234
        %v3648 = vunpack.c.l.b16 %v3235
        %v3649 = vunpack.c.l.b16 %v3236
        %v3650 = vunpack.c.l.b16 %v3237
        %v3651 = vunpack.c.l.b16 %v3238
        %v3652 = vunpack.c.l.b16 %v3239
        %v3653 = vpack.c.b16 %v3638, %v3637
        %v3654 = vpack.c.b16 %v3640, %v3639
        %v3655 = vpack.c.b16 %v3642, %v3641
        %v3656 = vpack.c.b16 %v3644, %v3643
        %v3657 = vpack.c.b16 %v3646, %v3645
        %v3658 = vpack.c.b16 %v3648, %v3647
        %v3659 = vpack.c.b16 %v3650, %v3649
        %v3660 = vpack.c.b16 %v3652, %v3651
        %3661 = vrot.lane.b32.xlu0 %v3653, 32
        %v3662 = vpop.permute.xlu0 %3661
        %3663 = vrot.lane.b32.xlu0 %v3654, 32
        %v3664 = vpop.permute.xlu0 %3663
        %3665 = vrot.lane.b32.xlu0 %v3655, 32
        %v3666 = vpop.permute.xlu0 %3665
        %3667 = vrot.lane.b32.xlu0 %v3656, 32
        %v3668 = vpop.permute.xlu0 %3667
        %3669 = vrot.lane.b32.xlu0 %v3657, 32
        %v3670 = vpop.permute.xlu0 %3669
        %3671 = vrot.lane.b32.xlu0 %v3658, 32
        %v3672 = vpop.permute.xlu0 %3671
        %3673 = vrot.lane.b32.xlu0 %v3659, 32
        %v3674 = vpop.permute.xlu0 %3673
        %3675 = vrot.lane.b32.xlu0 %v3660, 32
        %v3676 = vpop.permute.xlu0 %3675
        %3685 = vmatpush.bf16.msra.mxu0 %v3676
        %3686 = vmatpush.bf16.msra.mxu0 %v3674
        %3687 = vmatpush.bf16.msra.mxu0 %v3672
        %3688 = vmatpush.bf16.msra.mxu0 %v3670
        %3689 = vmatpush.bf16.msra.mxu0 %v3668
        %3690 = vmatpush.bf16.msra.mxu0 %v3666
        %3691 = vmatpush.bf16.msra.mxu0 %v3664
        %3692 = vmatpush.bf16.msra.mxu0 %v3662
        %3693 = vmatmul.bf16.gmra.mxu0 %v3613
        %v3694 = vpop.f32.mrf.mxu0
        %v3695 = vadd.f32 0.0, %v3694
        %v3696 = vpop.f32.mrf.mxu0
        %v3697 = vadd.f32 0.0, %v3696
        %3698 = vmatmul.bf16.gmra.mxu0 %v3614
        %v3699 = vpop.f32.mrf.mxu0
        %v3700 = vadd.f32 0.0, %v3699
        %v3701 = vpop.f32.mrf.mxu0
        %v3702 = vadd.f32 0.0, %v3701
        %3703 = vmatmul.bf16.gmra.mxu0 %v3615
        %v3704 = vpop.f32.mrf.mxu0
        %v3705 = vadd.f32 0.0, %v3704
        %v3706 = vpop.f32.mrf.mxu0
        %v3707 = vadd.f32 0.0, %v3706
        %3708 = vmatmul.bf16.gmra.mxu0 %v3616
        %v3709 = vpop.f32.mrf.mxu0
        %v3710 = vadd.f32 0.0, %v3709
        %v3711 = vpop.f32.mrf.mxu0
        %v3712 = vadd.f32 0.0, %v3711
        %3713 = vmatmul.bf16.gmra.mxu0 %v3617
        %v3714 = vpop.f32.mrf.mxu0
        %v3715 = vadd.f32 0.0, %v3714
        %v3716 = vpop.f32.mrf.mxu0
        %v3717 = vadd.f32 0.0, %v3716
        %3718 = vmatmul.bf16.gmra.mxu0 %v3618
        %v3719 = vpop.f32.mrf.mxu0
        %v3720 = vadd.f32 0.0, %v3719
        %v3721 = vpop.f32.mrf.mxu0
        %v3722 = vadd.f32 0.0, %v3721
        %3723 = vmatmul.bf16.gmra.mxu0 %v3619
        %v3724 = vpop.f32.mrf.mxu0
        %v3725 = vadd.f32 0.0, %v3724
        %v3726 = vpop.f32.mrf.mxu0
        %v3727 = vadd.f32 0.0, %v3726
        %3728 = vmatmul.bf16.gmra.mxu0 %v3620
        %v3729 = vpop.f32.mrf.mxu0
        %v3730 = vadd.f32 0.0, %v3729
        %v3731 = vpop.f32.mrf.mxu0
        %v3732 = vadd.f32 0.0, %v3731
        %3733 = vdwg.mxu0
        %v3734 = vpack.c.bf16 %v3695, %v3695
        %v3735 = vpack.c.bf16 %v3697, %v3697
        %v3736 = vpack.c.bf16 %v3700, %v3700
        %v3737 = vpack.c.bf16 %v3702, %v3702
        %v3738 = vpack.c.bf16 %v3705, %v3705
        %v3739 = vpack.c.bf16 %v3707, %v3707
        %v3740 = vpack.c.bf16 %v3710, %v3710
        %v3741 = vpack.c.bf16 %v3712, %v3712
        %v3742 = vpack.c.bf16 %v3715, %v3715
        %v3743 = vpack.c.bf16 %v3717, %v3717
        %v3744 = vpack.c.bf16 %v3720, %v3720
        %v3745 = vpack.c.bf16 %v3722, %v3722
        %v3746 = vpack.c.bf16 %v3725, %v3725
        %v3747 = vpack.c.bf16 %v3727, %v3727
        %v3748 = vpack.c.bf16 %v3730, %v3730
        %v3749 = vpack.c.bf16 %v3732, %v3732
        %3766 = vrot.lane.b32.xlu0 %v3734, 96
        %v3767 = vpop.permute.xlu0 %3766
        %3768 = vrot.lane.b32.xlu0 %v3735, 96
        %v3769 = vpop.permute.xlu0 %3768
        %3770 = vrot.lane.b32.xlu0 %v3736, 96
        %v3771 = vpop.permute.xlu0 %3770
        %3772 = vrot.lane.b32.xlu0 %v3737, 96
        %v3773 = vpop.permute.xlu0 %3772
        %3774 = vrot.lane.b32.xlu0 %v3738, 96
        %v3775 = vpop.permute.xlu0 %3774
        %3776 = vrot.lane.b32.xlu0 %v3739, 96
        %v3777 = vpop.permute.xlu0 %3776
        %3778 = vrot.lane.b32.xlu0 %v3740, 96
        %v3779 = vpop.permute.xlu0 %3778
        %3780 = vrot.lane.b32.xlu0 %v3741, 96
        %v3781 = vpop.permute.xlu0 %3780
        %3782 = vrot.lane.b32.xlu0 %v3742, 96
        %v3783 = vpop.permute.xlu0 %3782
        %3784 = vrot.lane.b32.xlu0 %v3743, 96
        %v3785 = vpop.permute.xlu0 %3784
        %3786 = vrot.lane.b32.xlu0 %v3744, 96
        %v3787 = vpop.permute.xlu0 %3786
        %3788 = vrot.lane.b32.xlu0 %v3745, 96
        %v3789 = vpop.permute.xlu0 %3788
        %3790 = vrot.lane.b32.xlu0 %v3746, 96
        %v3791 = vpop.permute.xlu0 %3790
        %3792 = vrot.lane.b32.xlu0 %v3747, 96
        %v3793 = vpop.permute.xlu0 %3792
        %3794 = vrot.lane.b32.xlu0 %v3748, 96
        %v3795 = vpop.permute.xlu0 %3794
        %3796 = vrot.lane.b32.xlu0 %v3749, 96
        %v3797 = vpop.permute.xlu0 %3796
        %vm3814 = vcmask 1044224
        %3815 = vst.msk [vmem:[#allocation4] sm:$0xf] %vm3814, %v3767
        %3816 = vst.msk [vmem:[#allocation4 + $0x4] sm:$0xf] %vm3814, %v3769
        %3817 = vst.msk [vmem:[#allocation4 + $0x8] sm:$0xf] %vm3814, %v3771
        %3818 = vst.msk [vmem:[#allocation4 + $0xc] sm:$0xf] %vm3814, %v3773
        %3819 = vst.msk [vmem:[#allocation4 + $0x10] sm:$0xf] %vm3814, %v3775
        %3820 = vst.msk [vmem:[#allocation4 + $0x14] sm:$0xf] %vm3814, %v3777
        %3821 = vst.msk [vmem:[#allocation4 + $0x18] sm:$0xf] %vm3814, %v3779
        %3822 = vst.msk [vmem:[#allocation4 + $0x1c] sm:$0xf] %vm3814, %v3781
        %3823 = vst.msk [vmem:[#allocation4 + $0x20] sm:$0xf] %vm3814, %v3783
        %3824 = vst.msk [vmem:[#allocation4 + $0x24] sm:$0xf] %vm3814, %v3785
        %3825 = vst.msk [vmem:[#allocation4 + $0x28] sm:$0xf] %vm3814, %v3787
        %3826 = vst.msk [vmem:[#allocation4 + $0x2c] sm:$0xf] %vm3814, %v3789
        %3827 = vst.msk [vmem:[#allocation4 + $0x30] sm:$0xf] %vm3814, %v3791
        %3828 = vst.msk [vmem:[#allocation4 + $0x34] sm:$0xf] %vm3814, %v3793
        %3829 = vst.msk [vmem:[#allocation4 + $0x38] sm:$0xf] %vm3814, %v3795
        %3830 = vst.msk [vmem:[#allocation4 + $0x3c] sm:$0xf] %vm3814, %v3797
        %v3831 = vld [vmem:[#allocation4] sm:$0xf]
        %v3832 = vld [vmem:[#allocation4 + $0x4] sm:$0xf]
        %v3833 = vld [vmem:[#allocation4 + $0x8] sm:$0xf]
        %v3834 = vld [vmem:[#allocation4 + $0xc] sm:$0xf]
        %v3835 = vld [vmem:[#allocation4 + $0x10] sm:$0xf]
        %v3836 = vld [vmem:[#allocation4 + $0x14] sm:$0xf]
        %v3837 = vld [vmem:[#allocation4 + $0x18] sm:$0xf]
        %v3838 = vld [vmem:[#allocation4 + $0x1c] sm:$0xf]
        %v3839 = vld [vmem:[#allocation4 + $0x20] sm:$0xf]
        %v3840 = vld [vmem:[#allocation4 + $0x24] sm:$0xf]
        %v3841 = vld [vmem:[#allocation4 + $0x28] sm:$0xf]
        %v3842 = vld [vmem:[#allocation4 + $0x2c] sm:$0xf]
        %v3843 = vld [vmem:[#allocation4 + $0x30] sm:$0xf]
        %v3844 = vld [vmem:[#allocation4 + $0x34] sm:$0xf]
        %v3845 = vld [vmem:[#allocation4 + $0x38] sm:$0xf]
        %v3846 = vld [vmem:[#allocation4 + $0x3c] sm:$0xf]
        %s3847 = smul.u32 %s42, 16
        %s3848 = smul.addr %s3847, 4
        %s3849 = scalar_lea.vmem [#allocation10], %s3848
        %v3850 = vld [vmem:[%s3849] sm:$0xf]
        %v3851 = vld [vmem:[%s3849 + $0x4] sm:$0xf]
        %v3852 = vld [vmem:[%s3849 + $0x8] sm:$0xf]
        %v3853 = vld [vmem:[%s3849 + $0xc] sm:$0xf]
        %v3854 = vld [vmem:[%s3849 + $0x10] sm:$0xf]
        %v3855 = vld [vmem:[%s3849 + $0x14] sm:$0xf]
        %v3856 = vld [vmem:[%s3849 + $0x18] sm:$0xf]
        %v3857 = vld [vmem:[%s3849 + $0x1c] sm:$0xf]
        %v3858 = vld [vmem:[%s3849 + $0x20] sm:$0xf]
        %v3859 = vld [vmem:[%s3849 + $0x24] sm:$0xf]
        %v3860 = vld [vmem:[%s3849 + $0x28] sm:$0xf]
        %v3861 = vld [vmem:[%s3849 + $0x2c] sm:$0xf]
        %v3862 = vld [vmem:[%s3849 + $0x30] sm:$0xf]
        %v3863 = vld [vmem:[%s3849 + $0x34] sm:$0xf]
        %v3864 = vld [vmem:[%s3849 + $0x38] sm:$0xf]
        %v3865 = vld [vmem:[%s3849 + $0x3c] sm:$0xf]
        %s3866 = scalar_lea.vmem %s5, %s42
        %v3867 = vld [vmem:[%s3866] sm:$0x1]
        %v3869 = vperm.slane %v3867, 0
        %v3887 = vunpack.c.l.b16 %v3831
        %v3888 = vunpack.c.l.b16 %v3832
        %v3889 = vunpack.c.l.b16 %v3833
        %v3890 = vunpack.c.l.b16 %v3834
        %v3891 = vunpack.c.l.b16 %v3835
        %v3892 = vunpack.c.l.b16 %v3836
        %v3893 = vunpack.c.l.b16 %v3837
        %v3894 = vunpack.c.l.b16 %v3838
        %v3895 = vunpack.c.l.b16 %v3839
        %v3896 = vunpack.c.l.b16 %v3840
        %v3897 = vunpack.c.l.b16 %v3841
        %v3898 = vunpack.c.l.b16 %v3842
        %v3899 = vunpack.c.l.b16 %v3843
        %v3900 = vunpack.c.l.b16 %v3844
        %v3901 = vunpack.c.l.b16 %v3845
        %v3902 = vunpack.c.l.b16 %v3846
        %v3903 = vpack.c.b16 %v3888, %v3887
        %v3904 = vpack.c.b16 %v3890, %v3889
        %v3905 = vpack.c.b16 %v3892, %v3891
        %v3906 = vpack.c.b16 %v3894, %v3893
        %v3907 = vpack.c.b16 %v3896, %v3895
        %v3908 = vpack.c.b16 %v3898, %v3897
        %v3909 = vpack.c.b16 %v3900, %v3899
        %v3910 = vpack.c.b16 %v3902, %v3901
        %v3935 = vunpack.c.l.b16 %v3850
        %v3936 = vunpack.c.l.b16 %v3851
        %v3937 = vunpack.c.l.b16 %v3852
        %v3938 = vunpack.c.l.b16 %v3853
        %v3939 = vunpack.c.l.b16 %v3854
        %v3940 = vunpack.c.l.b16 %v3855
        %v3941 = vunpack.c.l.b16 %v3856
        %v3942 = vunpack.c.l.b16 %v3857
        %v3943 = vunpack.c.l.b16 %v3858
        %v3944 = vunpack.c.l.b16 %v3859
        %v3945 = vunpack.c.l.b16 %v3860
        %v3946 = vunpack.c.l.b16 %v3861
        %v3947 = vunpack.c.l.b16 %v3862
        %v3948 = vunpack.c.l.b16 %v3863
        %v3949 = vunpack.c.l.b16 %v3864
        %v3950 = vunpack.c.l.b16 %v3865
        %v3951 = vpack.c.b16 %v3936, %v3935
        %v3952 = vpack.c.b16 %v3938, %v3937
        %v3953 = vpack.c.b16 %v3940, %v3939
        %v3954 = vpack.c.b16 %v3942, %v3941
        %v3955 = vpack.c.b16 %v3944, %v3943
        %v3956 = vpack.c.b16 %v3946, %v3945
        %v3957 = vpack.c.b16 %v3948, %v3947
        %v3958 = vpack.c.b16 %v3950, %v3949
        %3967 = vmatpush.bf16.msra.mxu0 %v3958
        %3968 = vmatpush.bf16.msra.mxu0 %v3957
        %3969 = vmatpush.bf16.msra.mxu0 %v3956
        %3970 = vmatpush.bf16.msra.mxu0 %v3955
        %3971 = vmatpush.bf16.msra.mxu0 %v3954
        %3972 = vmatpush.bf16.msra.mxu0 %v3953
        %3973 = vmatpush.bf16.msra.mxu0 %v3952
        %3974 = vmatpush.bf16.msra.mxu0 %v3951
        %3975 = vmatmul.bf16.gmra.mxu0 %v3903
        %v3976 = vpop.f32.mrf.mxu0
        %v3977 = vadd.f32 %v3869, %v3976
        %v3978 = vpop.f32.mrf.mxu0
        %v3979 = vadd.f32 %v3869, %v3978
        %3980 = vmatmul.bf16.gmra.mxu0 %v3904
        %v3981 = vpop.f32.mrf.mxu0
        %v3982 = vadd.f32 %v3869, %v3981
        %v3983 = vpop.f32.mrf.mxu0
        %v3984 = vadd.f32 %v3869, %v3983
        %3985 = vmatmul.bf16.gmra.mxu0 %v3905
        %v3986 = vpop.f32.mrf.mxu0
        %v3987 = vadd.f32 %v3869, %v3986
        %v3988 = vpop.f32.mrf.mxu0
        %v3989 = vadd.f32 %v3869, %v3988
        %3990 = vmatmul.bf16.gmra.mxu0 %v3906
        %v3991 = vpop.f32.mrf.mxu0
        %v3992 = vadd.f32 %v3869, %v3991
        %v3993 = vpop.f32.mrf.mxu0
        %v3994 = vadd.f32 %v3869, %v3993
        %3995 = vmatmul.bf16.gmra.mxu0 %v3907
        %v3996 = vpop.f32.mrf.mxu0
        %v3997 = vadd.f32 %v3869, %v3996
        %v3998 = vpop.f32.mrf.mxu0
        %v3999 = vadd.f32 %v3869, %v3998
        %4000 = vmatmul.bf16.gmra.mxu0 %v3908
        %v4001 = vpop.f32.mrf.mxu0
        %v4002 = vadd.f32 %v3869, %v4001
        %v4003 = vpop.f32.mrf.mxu0
        %v4004 = vadd.f32 %v3869, %v4003
        %4005 = vmatmul.bf16.gmra.mxu0 %v3909
        %v4006 = vpop.f32.mrf.mxu0
        %v4007 = vadd.f32 %v3869, %v4006
        %v4008 = vpop.f32.mrf.mxu0
        %v4009 = vadd.f32 %v3869, %v4008
        %4010 = vmatmul.bf16.gmra.mxu0 %v3910
        %v4011 = vpop.f32.mrf.mxu0
        %v4012 = vadd.f32 %v3869, %v4011
        %v4013 = vpop.f32.mrf.mxu0
        %v4014 = vadd.f32 %v3869, %v4013
        %4015 = vdwg.mxu0
        %v4016 = vadd.f32 %v3977, %v603
        %v4017 = vadd.f32 %v3979, %v604
        %v4018 = vadd.f32 %v3982, %v605
        %v4019 = vadd.f32 %v3984, %v606
        %v4020 = vadd.f32 %v3987, %v607
        %v4021 = vadd.f32 %v3989, %v608
        %v4022 = vadd.f32 %v3992, %v609
        %v4023 = vadd.f32 %v3994, %v610
        %v4024 = vadd.f32 %v3997, %v611
        %v4025 = vadd.f32 %v3999, %v612
        %v4026 = vadd.f32 %v4002, %v613
        %v4027 = vadd.f32 %v4004, %v614
        %v4028 = vadd.f32 %v4007, %v615
        %v4029 = vadd.f32 %v4009, %v616
        %v4030 = vadd.f32 %v4012, %v617
        %v4031 = vadd.f32 %v4014, %v618
        %s4032 = scalar_lea.vmem %s6, %s42
        %v4033 = vld [vmem:[%s4032] sm:$0x1]
        %s4034 = scalar_lea.vmem %s7, %s42
        %v4035 = vld [vmem:[%s4034] sm:$0x1]
        %4036 = vadd.xlane.f32.xlu0 %v4016
        %v4037 = vpop.xlane.xlu0 %4036
        %4038 = vadd.xlane.f32.xlu0 %v4017
        %v4039 = vpop.xlane.xlu0 %4038
        %4040 = vadd.xlane.f32.xlu0 %v4018
        %v4041 = vpop.xlane.xlu0 %4040
        %4042 = vadd.xlane.f32.xlu0 %v4019
        %v4043 = vpop.xlane.xlu0 %4042
        %4044 = vadd.xlane.f32.xlu0 %v4020
        %v4045 = vpop.xlane.xlu0 %4044
        %4046 = vadd.xlane.f32.xlu0 %v4021
        %v4047 = vpop.xlane.xlu0 %4046
        %4048 = vadd.xlane.f32.xlu0 %v4022
        %v4049 = vpop.xlane.xlu0 %4048
        %4050 = vadd.xlane.f32.xlu0 %v4023
        %v4051 = vpop.xlane.xlu0 %4050
        %4052 = vadd.xlane.f32.xlu0 %v4024
        %v4053 = vpop.xlane.xlu0 %4052
        %4054 = vadd.xlane.f32.xlu0 %v4025
        %v4055 = vpop.xlane.xlu0 %4054
        %4056 = vadd.xlane.f32.xlu0 %v4026
        %v4057 = vpop.xlane.xlu0 %4056
        %4058 = vadd.xlane.f32.xlu0 %v4027
        %v4059 = vpop.xlane.xlu0 %4058
        %4060 = vadd.xlane.f32.xlu0 %v4028
        %v4061 = vpop.xlane.xlu0 %4060
        %4062 = vadd.xlane.f32.xlu0 %v4029
        %v4063 = vpop.xlane.xlu0 %4062
        %4064 = vadd.xlane.f32.xlu0 %v4030
        %v4065 = vpop.xlane.xlu0 %4064
        %4066 = vadd.xlane.f32.xlu0 %v4031
        %v4067 = vpop.xlane.xlu0 %4066
        %v4068 = vmul.f32 %v4037, %v661
        %v4069 = vmul.f32 %v4039, %v661
        %v4070 = vmul.f32 %v4041, %v661
        %v4071 = vmul.f32 %v4043, %v661
        %v4072 = vmul.f32 %v4045, %v661
        %v4073 = vmul.f32 %v4047, %v661
        %v4074 = vmul.f32 %v4049, %v661
        %v4075 = vmul.f32 %v4051, %v661
        %v4076 = vmul.f32 %v4053, %v661
        %v4077 = vmul.f32 %v4055, %v661
        %v4078 = vmul.f32 %v4057, %v661
        %v4079 = vmul.f32 %v4059, %v661
        %v4080 = vmul.f32 %v4061, %v661
        %v4081 = vmul.f32 %v4063, %v661
        %v4082 = vmul.f32 %v4065, %v661
        %v4083 = vmul.f32 %v4067, %v661
        %v4084 = vsub.f32 %v4016, %v4068
        %v4085 = vsub.f32 %v4017, %v4069
        %v4086 = vsub.f32 %v4018, %v4070
        %v4087 = vsub.f32 %v4019, %v4071
        %v4088 = vsub.f32 %v4020, %v4072
        %v4089 = vsub.f32 %v4021, %v4073
        %v4090 = vsub.f32 %v4022, %v4074
        %v4091 = vsub.f32 %v4023, %v4075
        %v4092 = vsub.f32 %v4024, %v4076
        %v4093 = vsub.f32 %v4025, %v4077
        %v4094 = vsub.f32 %v4026, %v4078
        %v4095 = vsub.f32 %v4027, %v4079
        %v4096 = vsub.f32 %v4028, %v4080
        %v4097 = vsub.f32 %v4029, %v4081
        %v4098 = vsub.f32 %v4030, %v4082
        %v4099 = vsub.f32 %v4031, %v4083
        %v4100 = vmul.f32 %v4084, %v4084
        %v4101 = vmul.f32 %v4085, %v4085
        %v4102 = vmul.f32 %v4086, %v4086
        %v4103 = vmul.f32 %v4087, %v4087
        %v4104 = vmul.f32 %v4088, %v4088
        %v4105 = vmul.f32 %v4089, %v4089
        %v4106 = vmul.f32 %v4090, %v4090
        %v4107 = vmul.f32 %v4091, %v4091
        %v4108 = vmul.f32 %v4092, %v4092
        %v4109 = vmul.f32 %v4093, %v4093
        %v4110 = vmul.f32 %v4094, %v4094
        %v4111 = vmul.f32 %v4095, %v4095
        %v4112 = vmul.f32 %v4096, %v4096
        %v4113 = vmul.f32 %v4097, %v4097
        %v4114 = vmul.f32 %v4098, %v4098
        %v4115 = vmul.f32 %v4099, %v4099
        %4116 = vadd.xlane.f32.xlu0 %v4100
        %v4117 = vpop.xlane.xlu0 %4116
        %4118 = vadd.xlane.f32.xlu0 %v4101
        %v4119 = vpop.xlane.xlu0 %4118
        %4120 = vadd.xlane.f32.xlu0 %v4102
        %v4121 = vpop.xlane.xlu0 %4120
        %4122 = vadd.xlane.f32.xlu0 %v4103
        %v4123 = vpop.xlane.xlu0 %4122
        %4124 = vadd.xlane.f32.xlu0 %v4104
        %v4125 = vpop.xlane.xlu0 %4124
        %4126 = vadd.xlane.f32.xlu0 %v4105
        %v4127 = vpop.xlane.xlu0 %4126
        %4128 = vadd.xlane.f32.xlu0 %v4106
        %v4129 = vpop.xlane.xlu0 %4128
        %4130 = vadd.xlane.f32.xlu0 %v4107
        %v4131 = vpop.xlane.xlu0 %4130
        %4132 = vadd.xlane.f32.xlu0 %v4108
        %v4133 = vpop.xlane.xlu0 %4132
        %4134 = vadd.xlane.f32.xlu0 %v4109
        %v4135 = vpop.xlane.xlu0 %4134
        %4136 = vadd.xlane.f32.xlu0 %v4110
        %v4137 = vpop.xlane.xlu0 %4136
        %4138 = vadd.xlane.f32.xlu0 %v4111
        %v4139 = vpop.xlane.xlu0 %4138
        %4140 = vadd.xlane.f32.xlu0 %v4112
        %v4141 = vpop.xlane.xlu0 %4140
        %4142 = vadd.xlane.f32.xlu0 %v4113
        %v4143 = vpop.xlane.xlu0 %4142
        %4144 = vadd.xlane.f32.xlu0 %v4114
        %v4145 = vpop.xlane.xlu0 %4144
        %4146 = vadd.xlane.f32.xlu0 %v4115
        %v4147 = vpop.xlane.xlu0 %4146
        %v4148 = vmul.f32 %v4117, %v661
        %v4149 = vmul.f32 %v4119, %v661
        %v4150 = vmul.f32 %v4121, %v661
        %v4151 = vmul.f32 %v4123, %v661
        %v4152 = vmul.f32 %v4125, %v661
        %v4153 = vmul.f32 %v4127, %v661
        %v4154 = vmul.f32 %v4129, %v661
        %v4155 = vmul.f32 %v4131, %v661
        %v4156 = vmul.f32 %v4133, %v661
        %v4157 = vmul.f32 %v4135, %v661
        %v4158 = vmul.f32 %v4137, %v661
        %v4159 = vmul.f32 %v4139, %v661
        %v4160 = vmul.f32 %v4141, %v661
        %v4161 = vmul.f32 %v4143, %v661
        %v4162 = vmul.f32 %v4145, %v661
        %v4163 = vmul.f32 %v4147, %v661
        %v4164 = vadd.f32 %v4148, 1e-05
        %v4165 = vadd.f32 %v4149, 1e-05
        %v4166 = vadd.f32 %v4150, 1e-05
        %v4167 = vadd.f32 %v4151, 1e-05
        %v4168 = vadd.f32 %v4152, 1e-05
        %v4169 = vadd.f32 %v4153, 1e-05
        %v4170 = vadd.f32 %v4154, 1e-05
        %v4171 = vadd.f32 %v4155, 1e-05
        %v4172 = vadd.f32 %v4156, 1e-05
        %v4173 = vadd.f32 %v4157, 1e-05
        %v4174 = vadd.f32 %v4158, 1e-05
        %v4175 = vadd.f32 %v4159, 1e-05
        %v4176 = vadd.f32 %v4160, 1e-05
        %v4177 = vadd.f32 %v4161, 1e-05
        %v4178 = vadd.f32 %v4162, 1e-05
        %v4179 = vadd.f32 %v4163, 1e-05
        %v4180 = vrsqrt.pop %v4164
        %v4181 = vmul.f32 %v4180, %v4164
        %v4182 = vmul.f32 %v4181, %v4180
        %v4183 = vmul.f32 0.5, %v4182
        %v4184 = vsub.f32 1.5, %v4183
        %v4185 = vmul.f32 %v4180, %v4184
        %vm4186 = vweird.f32 %v4164
        %vm4187 = vweird.f32 %v4180
        %vm4188 = vmor %vm4186, %vm4187
        %v4189 = vsel %vm4188, %v4180, %v4185
        %v4190 = vrsqrt.pop %v4165
        %v4191 = vmul.f32 %v4190, %v4165
        %v4192 = vmul.f32 %v4191, %v4190
        %v4193 = vmul.f32 0.5, %v4192
        %v4194 = vsub.f32 1.5, %v4193
        %v4195 = vmul.f32 %v4190, %v4194
        %vm4196 = vweird.f32 %v4165
        %vm4197 = vweird.f32 %v4190
        %vm4198 = vmor %vm4196, %vm4197
        %v4199 = vsel %vm4198, %v4190, %v4195
        %v4200 = vrsqrt.pop %v4166
        %v4201 = vmul.f32 %v4200, %v4166
        %v4202 = vmul.f32 %v4201, %v4200
        %v4203 = vmul.f32 0.5, %v4202
        %v4204 = vsub.f32 1.5, %v4203
        %v4205 = vmul.f32 %v4200, %v4204
        %vm4206 = vweird.f32 %v4166
        %vm4207 = vweird.f32 %v4200
        %vm4208 = vmor %vm4206, %vm4207
        %v4209 = vsel %vm4208, %v4200, %v4205
        %v4210 = vrsqrt.pop %v4167
        %v4211 = vmul.f32 %v4210, %v4167
        %v4212 = vmul.f32 %v4211, %v4210
        %v4213 = vmul.f32 0.5, %v4212
        %v4214 = vsub.f32 1.5, %v4213
        %v4215 = vmul.f32 %v4210, %v4214
        %vm4216 = vweird.f32 %v4167
        %vm4217 = vweird.f32 %v4210
        %vm4218 = vmor %vm4216, %vm4217
        %v4219 = vsel %vm4218, %v4210, %v4215
        %v4220 = vrsqrt.pop %v4168
        %v4221 = vmul.f32 %v4220, %v4168
        %v4222 = vmul.f32 %v4221, %v4220
        %v4223 = vmul.f32 0.5, %v4222
        %v4224 = vsub.f32 1.5, %v4223
        %v4225 = vmul.f32 %v4220, %v4224
        %vm4226 = vweird.f32 %v4168
        %vm4227 = vweird.f32 %v4220
        %vm4228 = vmor %vm4226, %vm4227
        %v4229 = vsel %vm4228, %v4220, %v4225
        %v4230 = vrsqrt.pop %v4169
        %v4231 = vmul.f32 %v4230, %v4169
        %v4232 = vmul.f32 %v4231, %v4230
        %v4233 = vmul.f32 0.5, %v4232
        %v4234 = vsub.f32 1.5, %v4233
        %v4235 = vmul.f32 %v4230, %v4234
        %vm4236 = vweird.f32 %v4169
        %vm4237 = vweird.f32 %v4230
        %vm4238 = vmor %vm4236, %vm4237
        %v4239 = vsel %vm4238, %v4230, %v4235
        %v4240 = vrsqrt.pop %v4170
        %v4241 = vmul.f32 %v4240, %v4170
        %v4242 = vmul.f32 %v4241, %v4240
        %v4243 = vmul.f32 0.5, %v4242
        %v4244 = vsub.f32 1.5, %v4243
        %v4245 = vmul.f32 %v4240, %v4244
        %vm4246 = vweird.f32 %v4170
        %vm4247 = vweird.f32 %v4240
        %vm4248 = vmor %vm4246, %vm4247
        %v4249 = vsel %vm4248, %v4240, %v4245
        %v4250 = vrsqrt.pop %v4171
        %v4251 = vmul.f32 %v4250, %v4171
        %v4252 = vmul.f32 %v4251, %v4250
        %v4253 = vmul.f32 0.5, %v4252
        %v4254 = vsub.f32 1.5, %v4253
        %v4255 = vmul.f32 %v4250, %v4254
        %vm4256 = vweird.f32 %v4171
        %vm4257 = vweird.f32 %v4250
        %vm4258 = vmor %vm4256, %vm4257
        %v4259 = vsel %vm4258, %v4250, %v4255
        %v4260 = vrsqrt.pop %v4172
        %v4261 = vmul.f32 %v4260, %v4172
        %v4262 = vmul.f32 %v4261, %v4260
        %v4263 = vmul.f32 0.5, %v4262
        %v4264 = vsub.f32 1.5, %v4263
        %v4265 = vmul.f32 %v4260, %v4264
        %vm4266 = vweird.f32 %v4172
        %vm4267 = vweird.f32 %v4260
        %vm4268 = vmor %vm4266, %vm4267
        %v4269 = vsel %vm4268, %v4260, %v4265
        %v4270 = vrsqrt.pop %v4173
        %v4271 = vmul.f32 %v4270, %v4173
        %v4272 = vmul.f32 %v4271, %v4270
        %v4273 = vmul.f32 0.5, %v4272
        %v4274 = vsub.f32 1.5, %v4273
        %v4275 = vmul.f32 %v4270, %v4274
        %vm4276 = vweird.f32 %v4173
        %vm4277 = vweird.f32 %v4270
        %vm4278 = vmor %vm4276, %vm4277
        %v4279 = vsel %vm4278, %v4270, %v4275
        %v4280 = vrsqrt.pop %v4174
        %v4281 = vmul.f32 %v4280, %v4174
        %v4282 = vmul.f32 %v4281, %v4280
        %v4283 = vmul.f32 0.5, %v4282
        %v4284 = vsub.f32 1.5, %v4283
        %v4285 = vmul.f32 %v4280, %v4284
        %vm4286 = vweird.f32 %v4174
        %vm4287 = vweird.f32 %v4280
        %vm4288 = vmor %vm4286, %vm4287
        %v4289 = vsel %vm4288, %v4280, %v4285
        %v4290 = vrsqrt.pop %v4175
        %v4291 = vmul.f32 %v4290, %v4175
        %v4292 = vmul.f32 %v4291, %v4290
        %v4293 = vmul.f32 0.5, %v4292
        %v4294 = vsub.f32 1.5, %v4293
        %v4295 = vmul.f32 %v4290, %v4294
        %vm4296 = vweird.f32 %v4175
        %vm4297 = vweird.f32 %v4290
        %vm4298 = vmor %vm4296, %vm4297
        %v4299 = vsel %vm4298, %v4290, %v4295
        %v4300 = vrsqrt.pop %v4176
        %v4301 = vmul.f32 %v4300, %v4176
        %v4302 = vmul.f32 %v4301, %v4300
        %v4303 = vmul.f32 0.5, %v4302
        %v4304 = vsub.f32 1.5, %v4303
        %v4305 = vmul.f32 %v4300, %v4304
        %vm4306 = vweird.f32 %v4176
        %vm4307 = vweird.f32 %v4300
        %vm4308 = vmor %vm4306, %vm4307
        %v4309 = vsel %vm4308, %v4300, %v4305
        %v4310 = vrsqrt.pop %v4177
        %v4311 = vmul.f32 %v4310, %v4177
        %v4312 = vmul.f32 %v4311, %v4310
        %v4313 = vmul.f32 0.5, %v4312
        %v4314 = vsub.f32 1.5, %v4313
        %v4315 = vmul.f32 %v4310, %v4314
        %vm4316 = vweird.f32 %v4177
        %vm4317 = vweird.f32 %v4310
        %vm4318 = vmor %vm4316, %vm4317
        %v4319 = vsel %vm4318, %v4310, %v4315
        %v4320 = vrsqrt.pop %v4178
        %v4321 = vmul.f32 %v4320, %v4178
        %v4322 = vmul.f32 %v4321, %v4320
        %v4323 = vmul.f32 0.5, %v4322
        %v4324 = vsub.f32 1.5, %v4323
        %v4325 = vmul.f32 %v4320, %v4324
        %vm4326 = vweird.f32 %v4178
        %vm4327 = vweird.f32 %v4320
        %vm4328 = vmor %vm4326, %vm4327
        %v4329 = vsel %vm4328, %v4320, %v4325
        %v4330 = vrsqrt.pop %v4179
        %v4331 = vmul.f32 %v4330, %v4179
        %v4332 = vmul.f32 %v4331, %v4330
        %v4333 = vmul.f32 0.5, %v4332
        %v4334 = vsub.f32 1.5, %v4333
        %v4335 = vmul.f32 %v4330, %v4334
        %vm4336 = vweird.f32 %v4179
        %vm4337 = vweird.f32 %v4330
        %vm4338 = vmor %vm4336, %vm4337
        %v4339 = vsel %vm4338, %v4330, %v4335
        %v4340 = vmul.f32 %v4084, %v4189
        %v4341 = vmul.f32 %v4085, %v4199
        %v4342 = vmul.f32 %v4086, %v4209
        %v4343 = vmul.f32 %v4087, %v4219
        %v4344 = vmul.f32 %v4088, %v4229
        %v4345 = vmul.f32 %v4089, %v4239
        %v4346 = vmul.f32 %v4090, %v4249
        %v4347 = vmul.f32 %v4091, %v4259
        %v4348 = vmul.f32 %v4092, %v4269
        %v4349 = vmul.f32 %v4093, %v4279
        %v4350 = vmul.f32 %v4094, %v4289
        %v4351 = vmul.f32 %v4095, %v4299
        %v4352 = vmul.f32 %v4096, %v4309
        %v4353 = vmul.f32 %v4097, %v4319
        %v4354 = vmul.f32 %v4098, %v4329
        %v4355 = vmul.f32 %v4099, %v4339
        %v4357 = vperm.slane %v4033, 0
        %v4359 = vmul.f32 %v4340, %v4357
        %v4360 = vmul.f32 %v4341, %v4357
        %v4361 = vmul.f32 %v4342, %v4357
        %v4362 = vmul.f32 %v4343, %v4357
        %v4363 = vmul.f32 %v4344, %v4357
        %v4364 = vmul.f32 %v4345, %v4357
        %v4365 = vmul.f32 %v4346, %v4357
        %v4366 = vmul.f32 %v4347, %v4357
        %v4367 = vmul.f32 %v4348, %v4357
        %v4368 = vmul.f32 %v4349, %v4357
        %v4369 = vmul.f32 %v4350, %v4357
        %v4370 = vmul.f32 %v4351, %v4357
        %v4371 = vmul.f32 %v4352, %v4357
        %v4372 = vmul.f32 %v4353, %v4357
        %v4373 = vmul.f32 %v4354, %v4357
        %v4374 = vmul.f32 %v4355, %v4357
        %v4376 = vperm.slane %v4035, 0
        %v4378 = vadd.f32 %v4359, %v4376
        %v4379 = vadd.f32 %v4360, %v4376
        %v4380 = vadd.f32 %v4361, %v4376
        %v4381 = vadd.f32 %v4362, %v4376
        %v4382 = vadd.f32 %v4363, %v4376
        %v4383 = vadd.f32 %v4364, %v4376
        %v4384 = vadd.f32 %v4365, %v4376
        %v4385 = vadd.f32 %v4366, %v4376
        %v4386 = vadd.f32 %v4367, %v4376
        %v4387 = vadd.f32 %v4368, %v4376
        %v4388 = vadd.f32 %v4369, %v4376
        %v4389 = vadd.f32 %v4370, %v4376
        %v4390 = vadd.f32 %v4371, %v4376
        %v4391 = vadd.f32 %v4372, %v4376
        %v4392 = vadd.f32 %v4373, %v4376
        %v4393 = vadd.f32 %v4374, %v4376
        %v4394 = vpack.c.bf16 %v4379, %v4378
        %v4395 = vpack.c.bf16 %v4381, %v4380
        %v4396 = vpack.c.bf16 %v4383, %v4382
        %v4397 = vpack.c.bf16 %v4385, %v4384
        %v4398 = vpack.c.bf16 %v4387, %v4386
        %v4399 = vpack.c.bf16 %v4389, %v4388
        %v4400 = vpack.c.bf16 %v4391, %v4390
        %v4401 = vpack.c.bf16 %v4393, %v4392
        %s4402 = smul.u32 %s42, 32
        %s4403 = smul.addr %s4402, 4
        %s4404 = scalar_lea.vmem [#allocation11], %s4403
        %v4405 = vld [vmem:[%s4404] sm:$0xff]
        %v4406 = vld [vmem:[%s4404 + $0x8] sm:$0xff]
        %v4407 = vld [vmem:[%s4404 + $0x10] sm:$0xff]
        %v4408 = vld [vmem:[%s4404 + $0x18] sm:$0xff]
        %v4409 = vld [vmem:[%s4404 + $0x20] sm:$0xff]
        %v4410 = vld [vmem:[%s4404 + $0x28] sm:$0xff]
        %v4411 = vld [vmem:[%s4404 + $0x30] sm:$0xff]
        %v4412 = vld [vmem:[%s4404 + $0x38] sm:$0xff]
        %v4413 = vld [vmem:[%s4404 + $0x40] sm:$0xff]
        %v4414 = vld [vmem:[%s4404 + $0x48] sm:$0xff]
        %v4415 = vld [vmem:[%s4404 + $0x50] sm:$0xff]
        %v4416 = vld [vmem:[%s4404 + $0x58] sm:$0xff]
        %v4417 = vld [vmem:[%s4404 + $0x60] sm:$0xff]
        %v4418 = vld [vmem:[%s4404 + $0x68] sm:$0xff]
        %v4419 = vld [vmem:[%s4404 + $0x70] sm:$0xff]
        %v4420 = vld [vmem:[%s4404 + $0x78] sm:$0xff]
        %s4421 = smul.u32 %s42, 2
        %s4422 = scalar_lea.vmem %s9, %s4421
        %v4423 = vld [vmem:[%s4422] sm:$0x3]
        %v4425 = vperm.slane %v4423, 0
        %v4426 = vperm.slane %v4423, 1
        %v4445 = vunpack.c.l.b16 %v4405
        %v4446 = vunpack.c.h.b16 %v4405
        %v4447 = vunpack.c.l.b16 %v4406
        %v4448 = vunpack.c.h.b16 %v4406
        %v4449 = vunpack.c.l.b16 %v4407
        %v4450 = vunpack.c.h.b16 %v4407
        %v4451 = vunpack.c.l.b16 %v4408
        %v4452 = vunpack.c.h.b16 %v4408
        %v4453 = vunpack.c.l.b16 %v4409
        %v4454 = vunpack.c.h.b16 %v4409
        %v4455 = vunpack.c.l.b16 %v4410
        %v4456 = vunpack.c.h.b16 %v4410
        %v4457 = vunpack.c.l.b16 %v4411
        %v4458 = vunpack.c.h.b16 %v4411
        %v4459 = vunpack.c.l.b16 %v4412
        %v4460 = vunpack.c.h.b16 %v4412
        %v4461 = vunpack.c.l.b16 %v4413
        %v4462 = vunpack.c.h.b16 %v4413
        %v4463 = vunpack.c.l.b16 %v4414
        %v4464 = vunpack.c.h.b16 %v4414
        %v4465 = vunpack.c.l.b16 %v4415
        %v4466 = vunpack.c.h.b16 %v4415
        %v4467 = vunpack.c.l.b16 %v4416
        %v4468 = vunpack.c.h.b16 %v4416
        %v4469 = vunpack.c.l.b16 %v4417
        %v4470 = vunpack.c.h.b16 %v4417
        %v4471 = vunpack.c.l.b16 %v4418
        %v4472 = vunpack.c.h.b16 %v4418
        %v4473 = vunpack.c.l.b16 %v4419
        %v4474 = vunpack.c.h.b16 %v4419
        %v4475 = vunpack.c.l.b16 %v4420
        %v4476 = vunpack.c.h.b16 %v4420
        %v4477 = vpack.c.b16 %v4447, %v4445
        %v4478 = vpack.c.b16 %v4448, %v4446
        %v4479 = vpack.c.b16 %v4451, %v4449
        %v4480 = vpack.c.b16 %v4452, %v4450
        %v4481 = vpack.c.b16 %v4455, %v4453
        %v4482 = vpack.c.b16 %v4456, %v4454
        %v4483 = vpack.c.b16 %v4459, %v4457
        %v4484 = vpack.c.b16 %v4460, %v4458
        %v4485 = vpack.c.b16 %v4463, %v4461
        %v4486 = vpack.c.b16 %v4464, %v4462
        %v4487 = vpack.c.b16 %v4467, %v4465
        %v4488 = vpack.c.b16 %v4468, %v4466
        %v4489 = vpack.c.b16 %v4471, %v4469
        %v4490 = vpack.c.b16 %v4472, %v4470
        %v4491 = vpack.c.b16 %v4475, %v4473
        %v4492 = vpack.c.b16 %v4476, %v4474
        %4509 = vmatpush.bf16.msra.mxu0 %v4491
        %4510 = vmatpush.bf16.msra.mxu0 %v4489
        %4511 = vmatpush.bf16.msra.mxu0 %v4487
        %4512 = vmatpush.bf16.msra.mxu0 %v4485
        %4513 = vmatpush.bf16.msra.mxu0 %v4483
        %4514 = vmatpush.bf16.msra.mxu0 %v4481
        %4515 = vmatpush.bf16.msra.mxu0 %v4479
        %4516 = vmatpush.bf16.msra.mxu0 %v4477
        %4517 = vmatmul.bf16.gmra.mxu0 %v4394
        %v4518 = vpop.f32.mrf.mxu0
        %v4519 = vadd.f32 %v4425, %v4518
        %v4520 = vpop.f32.mrf.mxu0
        %v4521 = vadd.f32 %v4425, %v4520
        %4522 = vmatmul.bf16.gmra.mxu0 %v4395
        %v4523 = vpop.f32.mrf.mxu0
        %v4524 = vadd.f32 %v4425, %v4523
        %v4525 = vpop.f32.mrf.mxu0
        %v4526 = vadd.f32 %v4425, %v4525
        %4527 = vmatmul.bf16.gmra.mxu0 %v4396
        %v4528 = vpop.f32.mrf.mxu0
        %v4529 = vadd.f32 %v4425, %v4528
        %v4530 = vpop.f32.mrf.mxu0
        %v4531 = vadd.f32 %v4425, %v4530
        %4532 = vmatmul.bf16.gmra.mxu0 %v4397
        %v4533 = vpop.f32.mrf.mxu0
        %v4534 = vadd.f32 %v4425, %v4533
        %v4535 = vpop.f32.mrf.mxu0
        %v4536 = vadd.f32 %v4425, %v4535
        %4537 = vmatmul.bf16.gmra.mxu0 %v4398
        %v4538 = vpop.f32.mrf.mxu0
        %v4539 = vadd.f32 %v4425, %v4538
        %v4540 = vpop.f32.mrf.mxu0
        %v4541 = vadd.f32 %v4425, %v4540
        %4542 = vmatmul.bf16.gmra.mxu0 %v4399
        %v4543 = vpop.f32.mrf.mxu0
        %v4544 = vadd.f32 %v4425, %v4543
        %v4545 = vpop.f32.mrf.mxu0
        %v4546 = vadd.f32 %v4425, %v4545
        %4547 = vmatmul.bf16.gmra.mxu0 %v4400
        %v4548 = vpop.f32.mrf.mxu0
        %v4549 = vadd.f32 %v4425, %v4548
        %v4550 = vpop.f32.mrf.mxu0
        %v4551 = vadd.f32 %v4425, %v4550
        %4552 = vmatmul.bf16.gmra.mxu0 %v4401
        %v4553 = vpop.f32.mrf.mxu0
        %v4554 = vadd.f32 %v4425, %v4553
        %v4555 = vpop.f32.mrf.mxu0
        %v4556 = vadd.f32 %v4425, %v4555
        %4557 = vdwg.mxu0
        %4558 = vmatpush.bf16.msra.mxu0 %v4492
        %4559 = vmatpush.bf16.msra.mxu0 %v4490
        %4560 = vmatpush.bf16.msra.mxu0 %v4488
        %4561 = vmatpush.bf16.msra.mxu0 %v4486
        %4562 = vmatpush.bf16.msra.mxu0 %v4484
        %4563 = vmatpush.bf16.msra.mxu0 %v4482
        %4564 = vmatpush.bf16.msra.mxu0 %v4480
        %4565 = vmatpush.bf16.msra.mxu0 %v4478
        %4566 = vmatmul.bf16.gmra.mxu0 %v4394
        %v4567 = vpop.f32.mrf.mxu0
        %v4568 = vadd.f32 %v4426, %v4567
        %v4569 = vpop.f32.mrf.mxu0
        %v4570 = vadd.f32 %v4426, %v4569
        %4571 = vmatmul.bf16.gmra.mxu0 %v4395
        %v4572 = vpop.f32.mrf.mxu0
        %v4573 = vadd.f32 %v4426, %v4572
        %v4574 = vpop.f32.mrf.mxu0
        %v4575 = vadd.f32 %v4426, %v4574
        %4576 = vmatmul.bf16.gmra.mxu0 %v4396
        %v4577 = vpop.f32.mrf.mxu0
        %v4578 = vadd.f32 %v4426, %v4577
        %v4579 = vpop.f32.mrf.mxu0
        %v4580 = vadd.f32 %v4426, %v4579
        %4581 = vmatmul.bf16.gmra.mxu0 %v4397
        %v4582 = vpop.f32.mrf.mxu0
        %v4583 = vadd.f32 %v4426, %v4582
        %v4584 = vpop.f32.mrf.mxu0
        %v4585 = vadd.f32 %v4426, %v4584
        %4586 = vmatmul.bf16.gmra.mxu0 %v4398
        %v4587 = vpop.f32.mrf.mxu0
        %v4588 = vadd.f32 %v4426, %v4587
        %v4589 = vpop.f32.mrf.mxu0
        %v4590 = vadd.f32 %v4426, %v4589
        %4591 = vmatmul.bf16.gmra.mxu0 %v4399
        %v4592 = vpop.f32.mrf.mxu0
        %v4593 = vadd.f32 %v4426, %v4592
        %v4594 = vpop.f32.mrf.mxu0
        %v4595 = vadd.f32 %v4426, %v4594
        %4596 = vmatmul.bf16.gmra.mxu0 %v4400
        %v4597 = vpop.f32.mrf.mxu0
        %v4598 = vadd.f32 %v4426, %v4597
        %v4599 = vpop.f32.mrf.mxu0
        %v4600 = vadd.f32 %v4426, %v4599
        %4601 = vmatmul.bf16.gmra.mxu0 %v4401
        %v4602 = vpop.f32.mrf.mxu0
        %v4603 = vadd.f32 %v4426, %v4602
        %v4604 = vpop.f32.mrf.mxu0
        %v4605 = vadd.f32 %v4426, %v4604
        %4606 = vdwg.mxu0
        %v4607 = vmul.f32 %v4519, 0.70710677
        %v4608 = vmul.f32 %v4568, 0.70710677
        %v4609 = vmul.f32 %v4521, 0.70710677
        %v4610 = vmul.f32 %v4570, 0.70710677
        %v4611 = vmul.f32 %v4524, 0.70710677
        %v4612 = vmul.f32 %v4573, 0.70710677
        %v4613 = vmul.f32 %v4526, 0.70710677
        %v4614 = vmul.f32 %v4575, 0.70710677
        %v4615 = vmul.f32 %v4529, 0.70710677
        %v4616 = vmul.f32 %v4578, 0.70710677
        %v4617 = vmul.f32 %v4531, 0.70710677
        %v4618 = vmul.f32 %v4580, 0.70710677
        %v4619 = vmul.f32 %v4534, 0.70710677
        %v4620 = vmul.f32 %v4583, 0.70710677
        %v4621 = vmul.f32 %v4536, 0.70710677
        %v4622 = vmul.f32 %v4585, 0.70710677
        %v4623 = vmul.f32 %v4539, 0.70710677
        %v4624 = vmul.f32 %v4588, 0.70710677
        %v4625 = vmul.f32 %v4541, 0.70710677
        %v4626 = vmul.f32 %v4590, 0.70710677
        %v4627 = vmul.f32 %v4544, 0.70710677
        %v4628 = vmul.f32 %v4593, 0.70710677
        %v4629 = vmul.f32 %v4546, 0.70710677
        %v4630 = vmul.f32 %v4595, 0.70710677
        %v4631 = vmul.f32 %v4549, 0.70710677
        %v4632 = vmul.f32 %v4598, 0.70710677
        %v4633 = vmul.f32 %v4551, 0.70710677
        %v4634 = vmul.f32 %v4600, 0.70710677
        %v4635 = vmul.f32 %v4554, 0.70710677
        %v4636 = vmul.f32 %v4603, 0.70710677
        %v4637 = vmul.f32 %v4556, 0.70710677
        %v4638 = vmul.f32 %v4605, 0.70710677
        %v4639 = vand.u32 2147483647, %v4607
        %v4640 = vand.u32 2147483647, %v4608
        %v4641 = vand.u32 2147483647, %v4609
        %v4642 = vand.u32 2147483647, %v4610
        %v4643 = vand.u32 2147483647, %v4611
        %v4644 = vand.u32 2147483647, %v4612
        %v4645 = vand.u32 2147483647, %v4613
        %v4646 = vand.u32 2147483647, %v4614
        %v4647 = vand.u32 2147483647, %v4615
        %v4648 = vand.u32 2147483647, %v4616
        %v4649 = vand.u32 2147483647, %v4617
        %v4650 = vand.u32 2147483647, %v4618
        %v4651 = vand.u32 2147483647, %v4619
        %v4652 = vand.u32 2147483647, %v4620
        %v4653 = vand.u32 2147483647, %v4621
        %v4654 = vand.u32 2147483647, %v4622
        %v4655 = vand.u32 2147483647, %v4623
        %v4656 = vand.u32 2147483647, %v4624
        %v4657 = vand.u32 2147483647, %v4625
        %v4658 = vand.u32 2147483647, %v4626
        %v4659 = vand.u32 2147483647, %v4627
        %v4660 = vand.u32 2147483647, %v4628
        %v4661 = vand.u32 2147483647, %v4629
        %v4662 = vand.u32 2147483647, %v4630
        %v4663 = vand.u32 2147483647, %v4631
        %v4664 = vand.u32 2147483647, %v4632
        %v4665 = vand.u32 2147483647, %v4633
        %v4666 = vand.u32 2147483647, %v4634
        %v4667 = vand.u32 2147483647, %v4635
        %v4668 = vand.u32 2147483647, %v4636
        %v4669 = vand.u32 2147483647, %v4637
        %v4670 = vand.u32 2147483647, %v4638
        %v4671 = vmul.f32 %v4639, 0.3275911
        %v4672 = vmul.f32 %v4640, 0.3275911
        %v4673 = vmul.f32 %v4641, 0.3275911
        %v4674 = vmul.f32 %v4642, 0.3275911
        %v4675 = vmul.f32 %v4643, 0.3275911
        %v4676 = vmul.f32 %v4644, 0.3275911
        %v4677 = vmul.f32 %v4645, 0.3275911
        %v4678 = vmul.f32 %v4646, 0.3275911
        %v4679 = vmul.f32 %v4647, 0.3275911
        %v4680 = vmul.f32 %v4648, 0.3275911
        %v4681 = vmul.f32 %v4649, 0.3275911
        %v4682 = vmul.f32 %v4650, 0.3275911
        %v4683 = vmul.f32 %v4651, 0.3275911
        %v4684 = vmul.f32 %v4652, 0.3275911
        %v4685 = vmul.f32 %v4653, 0.3275911
        %v4686 = vmul.f32 %v4654, 0.3275911
        %v4687 = vmul.f32 %v4655, 0.3275911
        %v4688 = vmul.f32 %v4656, 0.3275911
        %v4689 = vmul.f32 %v4657, 0.3275911
        %v4690 = vmul.f32 %v4658, 0.3275911
        %v4691 = vmul.f32 %v4659, 0.3275911
        %v4692 = vmul.f32 %v4660, 0.3275911
        %v4693 = vmul.f32 %v4661, 0.3275911
        %v4694 = vmul.f32 %v4662, 0.3275911
        %v4695 = vmul.f32 %v4663, 0.3275911
        %v4696 = vmul.f32 %v4664, 0.3275911
        %v4697 = vmul.f32 %v4665, 0.3275911
        %v4698 = vmul.f32 %v4666, 0.3275911
        %v4699 = vmul.f32 %v4667, 0.3275911
        %v4700 = vmul.f32 %v4668, 0.3275911
        %v4701 = vmul.f32 %v4669, 0.3275911
        %v4702 = vmul.f32 %v4670, 0.3275911
        %v4703 = vadd.f32 %v4671, 1.0
        %v4704 = vadd.f32 %v4672, 1.0
        %v4705 = vadd.f32 %v4673, 1.0
        %v4706 = vadd.f32 %v4674, 1.0
        %v4707 = vadd.f32 %v4675, 1.0
        %v4708 = vadd.f32 %v4676, 1.0
        %v4709 = vadd.f32 %v4677, 1.0
        %v4710 = vadd.f32 %v4678, 1.0
        %v4711 = vadd.f32 %v4679, 1.0
        %v4712 = vadd.f32 %v4680, 1.0
        %v4713 = vadd.f32 %v4681, 1.0
        %v4714 = vadd.f32 %v4682, 1.0
        %v4715 = vadd.f32 %v4683, 1.0
        %v4716 = vadd.f32 %v4684, 1.0
        %v4717 = vadd.f32 %v4685, 1.0
        %v4718 = vadd.f32 %v4686, 1.0
        %v4719 = vadd.f32 %v4687, 1.0
        %v4720 = vadd.f32 %v4688, 1.0
        %v4721 = vadd.f32 %v4689, 1.0
        %v4722 = vadd.f32 %v4690, 1.0
        %v4723 = vadd.f32 %v4691, 1.0
        %v4724 = vadd.f32 %v4692, 1.0
        %v4725 = vadd.f32 %v4693, 1.0
        %v4726 = vadd.f32 %v4694, 1.0
        %v4727 = vadd.f32 %v4695, 1.0
        %v4728 = vadd.f32 %v4696, 1.0
        %v4729 = vadd.f32 %v4697, 1.0
        %v4730 = vadd.f32 %v4698, 1.0
        %v4731 = vadd.f32 %v4699, 1.0
        %v4732 = vadd.f32 %v4700, 1.0
        %v4733 = vadd.f32 %v4701, 1.0
        %v4734 = vadd.f32 %v4702, 1.0
        %v4735 = vrcp.pop %v4703
        %v4736 = vrcp.pop %v4704
        %v4737 = vrcp.pop %v4705
        %v4738 = vrcp.pop %v4706
        %v4739 = vrcp.pop %v4707
        %v4740 = vrcp.pop %v4708
        %v4741 = vrcp.pop %v4709
        %v4742 = vrcp.pop %v4710
        %v4743 = vrcp.pop %v4711
        %v4744 = vrcp.pop %v4712
        %v4745 = vrcp.pop %v4713
        %v4746 = vrcp.pop %v4714
        %v4747 = vrcp.pop %v4715
        %v4748 = vrcp.pop %v4716
        %v4749 = vrcp.pop %v4717
        %v4750 = vrcp.pop %v4718
        %v4751 = vrcp.pop %v4719
        %v4752 = vrcp.pop %v4720
        %v4753 = vrcp.pop %v4721
        %v4754 = vrcp.pop %v4722
        %v4755 = vrcp.pop %v4723
        %v4756 = vrcp.pop %v4724
        %v4757 = vrcp.pop %v4725
        %v4758 = vrcp.pop %v4726
        %v4759 = vrcp.pop %v4727
        %v4760 = vrcp.pop %v4728
        %v4761 = vrcp.pop %v4729
        %v4762 = vrcp.pop %v4730
        %v4763 = vrcp.pop %v4731
        %v4764 = vrcp.pop %v4732
        %v4765 = vrcp.pop %v4733
        %v4766 = vrcp.pop %v4734
        %v4767 = vmul.f32 %v4735, 1.0614054
        %v4768 = vmul.f32 %v4736, 1.0614054
        %v4769 = vmul.f32 %v4737, 1.0614054
        %v4770 = vmul.f32 %v4738, 1.0614054
        %v4771 = vmul.f32 %v4739, 1.0614054
        %v4772 = vmul.f32 %v4740, 1.0614054
        %v4773 = vmul.f32 %v4741, 1.0614054
        %v4774 = vmul.f32 %v4742, 1.0614054
        %v4775 = vmul.f32 %v4743, 1.0614054
        %v4776 = vmul.f32 %v4744, 1.0614054
        %v4777 = vmul.f32 %v4745, 1.0614054
        %v4778 = vmul.f32 %v4746, 1.0614054
        %v4779 = vmul.f32 %v4747, 1.0614054
        %v4780 = vmul.f32 %v4748, 1.0614054
        %v4781 = vmul.f32 %v4749, 1.0614054
        %v4782 = vmul.f32 %v4750, 1.0614054
        %v4783 = vmul.f32 %v4751, 1.0614054
        %v4784 = vmul.f32 %v4752, 1.0614054
        %v4785 = vmul.f32 %v4753, 1.0614054
        %v4786 = vmul.f32 %v4754, 1.0614054
        %v4787 = vmul.f32 %v4755, 1.0614054
        %v4788 = vmul.f32 %v4756, 1.0614054
        %v4789 = vmul.f32 %v4757, 1.0614054
        %v4790 = vmul.f32 %v4758, 1.0614054
        %v4791 = vmul.f32 %v4759, 1.0614054
        %v4792 = vmul.f32 %v4760, 1.0614054
        %v4793 = vmul.f32 %v4761, 1.0614054
        %v4794 = vmul.f32 %v4762, 1.0614054
        %v4795 = vmul.f32 %v4763, 1.0614054
        %v4796 = vmul.f32 %v4764, 1.0614054
        %v4797 = vmul.f32 %v4765, 1.0614054
        %v4798 = vmul.f32 %v4766, 1.0614054
        %v4799 = vadd.f32 %v4767, -1.4531521
        %v4800 = vadd.f32 %v4768, -1.4531521
        %v4801 = vadd.f32 %v4769, -1.4531521
        %v4802 = vadd.f32 %v4770, -1.4531521
        %v4803 = vadd.f32 %v4771, -1.4531521
        %v4804 = vadd.f32 %v4772, -1.4531521
        %v4805 = vadd.f32 %v4773, -1.4531521
        %v4806 = vadd.f32 %v4774, -1.4531521
        %v4807 = vadd.f32 %v4775, -1.4531521
        %v4808 = vadd.f32 %v4776, -1.4531521
        %v4809 = vadd.f32 %v4777, -1.4531521
        %v4810 = vadd.f32 %v4778, -1.4531521
        %v4811 = vadd.f32 %v4779, -1.4531521
        %v4812 = vadd.f32 %v4780, -1.4531521
        %v4813 = vadd.f32 %v4781, -1.4531521
        %v4814 = vadd.f32 %v4782, -1.4531521
        %v4815 = vadd.f32 %v4783, -1.4531521
        %v4816 = vadd.f32 %v4784, -1.4531521
        %v4817 = vadd.f32 %v4785, -1.4531521
        %v4818 = vadd.f32 %v4786, -1.4531521
        %v4819 = vadd.f32 %v4787, -1.4531521
        %v4820 = vadd.f32 %v4788, -1.4531521
        %v4821 = vadd.f32 %v4789, -1.4531521
        %v4822 = vadd.f32 %v4790, -1.4531521
        %v4823 = vadd.f32 %v4791, -1.4531521
        %v4824 = vadd.f32 %v4792, -1.4531521
        %v4825 = vadd.f32 %v4793, -1.4531521
        %v4826 = vadd.f32 %v4794, -1.4531521
        %v4827 = vadd.f32 %v4795, -1.4531521
        %v4828 = vadd.f32 %v4796, -1.4531521
        %v4829 = vadd.f32 %v4797, -1.4531521
        %v4830 = vadd.f32 %v4798, -1.4531521
        %v4831 = vmul.f32 %v4735, %v4799
        %v4832 = vmul.f32 %v4736, %v4800
        %v4833 = vmul.f32 %v4737, %v4801
        %v4834 = vmul.f32 %v4738, %v4802
        %v4835 = vmul.f32 %v4739, %v4803
        %v4836 = vmul.f32 %v4740, %v4804
        %v4837 = vmul.f32 %v4741, %v4805
        %v4838 = vmul.f32 %v4742, %v4806
        %v4839 = vmul.f32 %v4743, %v4807
        %v4840 = vmul.f32 %v4744, %v4808
        %v4841 = vmul.f32 %v4745, %v4809
        %v4842 = vmul.f32 %v4746, %v4810
        %v4843 = vmul.f32 %v4747, %v4811
        %v4844 = vmul.f32 %v4748, %v4812
        %v4845 = vmul.f32 %v4749, %v4813
        %v4846 = vmul.f32 %v4750, %v4814
        %v4847 = vmul.f32 %v4751, %v4815
        %v4848 = vmul.f32 %v4752, %v4816
        %v4849 = vmul.f32 %v4753, %v4817
        %v4850 = vmul.f32 %v4754, %v4818
        %v4851 = vmul.f32 %v4755, %v4819
        %v4852 = vmul.f32 %v4756, %v4820
        %v4853 = vmul.f32 %v4757, %v4821
        %v4854 = vmul.f32 %v4758, %v4822
        %v4855 = vmul.f32 %v4759, %v4823
        %v4856 = vmul.f32 %v4760, %v4824
        %v4857 = vmul.f32 %v4761, %v4825
        %v4858 = vmul.f32 %v4762, %v4826
        %v4859 = vmul.f32 %v4763, %v4827
        %v4860 = vmul.f32 %v4764, %v4828
        %v4861 = vmul.f32 %v4765, %v4829
        %v4862 = vmul.f32 %v4766, %v4830
        %v4863 = vadd.f32 %v4831, 1.4214138
        %v4864 = vadd.f32 %v4832, 1.4214138
        %v4865 = vadd.f32 %v4833, 1.4214138
        %v4866 = vadd.f32 %v4834, 1.4214138
        %v4867 = vadd.f32 %v4835, 1.4214138
        %v4868 = vadd.f32 %v4836, 1.4214138
        %v4869 = vadd.f32 %v4837, 1.4214138
        %v4870 = vadd.f32 %v4838, 1.4214138
        %v4871 = vadd.f32 %v4839, 1.4214138
        %v4872 = vadd.f32 %v4840, 1.4214138
        %v4873 = vadd.f32 %v4841, 1.4214138
        %v4874 = vadd.f32 %v4842, 1.4214138
        %v4875 = vadd.f32 %v4843, 1.4214138
        %v4876 = vadd.f32 %v4844, 1.4214138
        %v4877 = vadd.f32 %v4845, 1.4214138
        %v4878 = vadd.f32 %v4846, 1.4214138
        %v4879 = vadd.f32 %v4847, 1.4214138
        %v4880 = vadd.f32 %v4848, 1.4214138
        %v4881 = vadd.f32 %v4849, 1.4214138
        %v4882 = vadd.f32 %v4850, 1.4214138
        %v4883 = vadd.f32 %v4851, 1.4214138
        %v4884 = vadd.f32 %v4852, 1.4214138
        %v4885 = vadd.f32 %v4853, 1.4214138
        %v4886 = vadd.f32 %v4854, 1.4214138
        %v4887 = vadd.f32 %v4855, 1.4214138
        %v4888 = vadd.f32 %v4856, 1.4214138
        %v4889 = vadd.f32 %v4857, 1.4214138
        %v4890 = vadd.f32 %v4858, 1.4214138
        %v4891 = vadd.f32 %v4859, 1.4214138
        %v4892 = vadd.f32 %v4860, 1.4214138
        %v4893 = vadd.f32 %v4861, 1.4214138
        %v4894 = vadd.f32 %v4862, 1.4214138
        %v4895 = vmul.f32 %v4735, %v4863
        %v4896 = vmul.f32 %v4736, %v4864
        %v4897 = vmul.f32 %v4737, %v4865
        %v4898 = vmul.f32 %v4738, %v4866
        %v4899 = vmul.f32 %v4739, %v4867
        %v4900 = vmul.f32 %v4740, %v4868
        %v4901 = vmul.f32 %v4741, %v4869
        %v4902 = vmul.f32 %v4742, %v4870
        %v4903 = vmul.f32 %v4743, %v4871
        %v4904 = vmul.f32 %v4744, %v4872
        %v4905 = vmul.f32 %v4745, %v4873
        %v4906 = vmul.f32 %v4746, %v4874
        %v4907 = vmul.f32 %v4747, %v4875
        %v4908 = vmul.f32 %v4748, %v4876
        %v4909 = vmul.f32 %v4749, %v4877
        %v4910 = vmul.f32 %v4750, %v4878
        %v4911 = vmul.f32 %v4751, %v4879
        %v4912 = vmul.f32 %v4752, %v4880
        %v4913 = vmul.f32 %v4753, %v4881
        %v4914 = vmul.f32 %v4754, %v4882
        %v4915 = vmul.f32 %v4755, %v4883
        %v4916 = vmul.f32 %v4756, %v4884
        %v4917 = vmul.f32 %v4757, %v4885
        %v4918 = vmul.f32 %v4758, %v4886
        %v4919 = vmul.f32 %v4759, %v4887
        %v4920 = vmul.f32 %v4760, %v4888
        %v4921 = vmul.f32 %v4761, %v4889
        %v4922 = vmul.f32 %v4762, %v4890
        %v4923 = vmul.f32 %v4763, %v4891
        %v4924 = vmul.f32 %v4764, %v4892
        %v4925 = vmul.f32 %v4765, %v4893
        %v4926 = vmul.f32 %v4766, %v4894
        %v4927 = vadd.f32 %v4895, -0.28449672
        %v4928 = vadd.f32 %v4896, -0.28449672
        %v4929 = vadd.f32 %v4897, -0.28449672
        %v4930 = vadd.f32 %v4898, -0.28449672
        %v4931 = vadd.f32 %v4899, -0.28449672
        %v4932 = vadd.f32 %v4900, -0.28449672
        %v4933 = vadd.f32 %v4901, -0.28449672
        %v4934 = vadd.f32 %v4902, -0.28449672
        %v4935 = vadd.f32 %v4903, -0.28449672
        %v4936 = vadd.f32 %v4904, -0.28449672
        %v4937 = vadd.f32 %v4905, -0.28449672
        %v4938 = vadd.f32 %v4906, -0.28449672
        %v4939 = vadd.f32 %v4907, -0.28449672
        %v4940 = vadd.f32 %v4908, -0.28449672
        %v4941 = vadd.f32 %v4909, -0.28449672
        %v4942 = vadd.f32 %v4910, -0.28449672
        %v4943 = vadd.f32 %v4911, -0.28449672
        %v4944 = vadd.f32 %v4912, -0.28449672
        %v4945 = vadd.f32 %v4913, -0.28449672
        %v4946 = vadd.f32 %v4914, -0.28449672
        %v4947 = vadd.f32 %v4915, -0.28449672
        %v4948 = vadd.f32 %v4916, -0.28449672
        %v4949 = vadd.f32 %v4917, -0.28449672
        %v4950 = vadd.f32 %v4918, -0.28449672
        %v4951 = vadd.f32 %v4919, -0.28449672
        %v4952 = vadd.f32 %v4920, -0.28449672
        %v4953 = vadd.f32 %v4921, -0.28449672
        %v4954 = vadd.f32 %v4922, -0.28449672
        %v4955 = vadd.f32 %v4923, -0.28449672
        %v4956 = vadd.f32 %v4924, -0.28449672
        %v4957 = vadd.f32 %v4925, -0.28449672
        %v4958 = vadd.f32 %v4926, -0.28449672
        %v4959 = vmul.f32 %v4735, %v4927
        %v4960 = vmul.f32 %v4736, %v4928
        %v4961 = vmul.f32 %v4737, %v4929
        %v4962 = vmul.f32 %v4738, %v4930
        %v4963 = vmul.f32 %v4739, %v4931
        %v4964 = vmul.f32 %v4740, %v4932
        %v4965 = vmul.f32 %v4741, %v4933
        %v4966 = vmul.f32 %v4742, %v4934
        %v4967 = vmul.f32 %v4743, %v4935
        %v4968 = vmul.f32 %v4744, %v4936
        %v4969 = vmul.f32 %v4745, %v4937
        %v4970 = vmul.f32 %v4746, %v4938
        %v4971 = vmul.f32 %v4747, %v4939
        %v4972 = vmul.f32 %v4748, %v4940
        %v4973 = vmul.f32 %v4749, %v4941
        %v4974 = vmul.f32 %v4750, %v4942
        %v4975 = vmul.f32 %v4751, %v4943
        %v4976 = vmul.f32 %v4752, %v4944
        %v4977 = vmul.f32 %v4753, %v4945
        %v4978 = vmul.f32 %v4754, %v4946
        %v4979 = vmul.f32 %v4755, %v4947
        %v4980 = vmul.f32 %v4756, %v4948
        %v4981 = vmul.f32 %v4757, %v4949
        %v4982 = vmul.f32 %v4758, %v4950
        %v4983 = vmul.f32 %v4759, %v4951
        %v4984 = vmul.f32 %v4760, %v4952
        %v4985 = vmul.f32 %v4761, %v4953
        %v4986 = vmul.f32 %v4762, %v4954
        %v4987 = vmul.f32 %v4763, %v4955
        %v4988 = vmul.f32 %v4764, %v4956
        %v4989 = vmul.f32 %v4765, %v4957
        %v4990 = vmul.f32 %v4766, %v4958
        %v4991 = vadd.f32 %v4959, 0.2548296
        %v4992 = vadd.f32 %v4960, 0.2548296
        %v4993 = vadd.f32 %v4961, 0.2548296
        %v4994 = vadd.f32 %v4962, 0.2548296
        %v4995 = vadd.f32 %v4963, 0.2548296
        %v4996 = vadd.f32 %v4964, 0.2548296
        %v4997 = vadd.f32 %v4965, 0.2548296
        %v4998 = vadd.f32 %v4966, 0.2548296
        %v4999 = vadd.f32 %v4967, 0.2548296
        %v5000 = vadd.f32 %v4968, 0.2548296
        %v5001 = vadd.f32 %v4969, 0.2548296
        %v5002 = vadd.f32 %v4970, 0.2548296
        %v5003 = vadd.f32 %v4971, 0.2548296
        %v5004 = vadd.f32 %v4972, 0.2548296
        %v5005 = vadd.f32 %v4973, 0.2548296
        %v5006 = vadd.f32 %v4974, 0.2548296
        %v5007 = vadd.f32 %v4975, 0.2548296
        %v5008 = vadd.f32 %v4976, 0.2548296
        %v5009 = vadd.f32 %v4977, 0.2548296
        %v5010 = vadd.f32 %v4978, 0.2548296
        %v5011 = vadd.f32 %v4979, 0.2548296
        %v5012 = vadd.f32 %v4980, 0.2548296
        %v5013 = vadd.f32 %v4981, 0.2548296
        %v5014 = vadd.f32 %v4982, 0.2548296
        %v5015 = vadd.f32 %v4983, 0.2548296
        %v5016 = vadd.f32 %v4984, 0.2548296
        %v5017 = vadd.f32 %v4985, 0.2548296
        %v5018 = vadd.f32 %v4986, 0.2548296
        %v5019 = vadd.f32 %v4987, 0.2548296
        %v5020 = vadd.f32 %v4988, 0.2548296
        %v5021 = vadd.f32 %v4989, 0.2548296
        %v5022 = vadd.f32 %v4990, 0.2548296
        %v5023 = vmul.f32 %v4735, %v4991
        %v5024 = vmul.f32 %v4736, %v4992
        %v5025 = vmul.f32 %v4737, %v4993
        %v5026 = vmul.f32 %v4738, %v4994
        %v5027 = vmul.f32 %v4739, %v4995
        %v5028 = vmul.f32 %v4740, %v4996
        %v5029 = vmul.f32 %v4741, %v4997
        %v5030 = vmul.f32 %v4742, %v4998
        %v5031 = vmul.f32 %v4743, %v4999
        %v5032 = vmul.f32 %v4744, %v5000
        %v5033 = vmul.f32 %v4745, %v5001
        %v5034 = vmul.f32 %v4746, %v5002
        %v5035 = vmul.f32 %v4747, %v5003
        %v5036 = vmul.f32 %v4748, %v5004
        %v5037 = vmul.f32 %v4749, %v5005
        %v5038 = vmul.f32 %v4750, %v5006
        %v5039 = vmul.f32 %v4751, %v5007
        %v5040 = vmul.f32 %v4752, %v5008
        %v5041 = vmul.f32 %v4753, %v5009
        %v5042 = vmul.f32 %v4754, %v5010
        %v5043 = vmul.f32 %v4755, %v5011
        %v5044 = vmul.f32 %v4756, %v5012
        %v5045 = vmul.f32 %v4757, %v5013
        %v5046 = vmul.f32 %v4758, %v5014
        %v5047 = vmul.f32 %v4759, %v5015
        %v5048 = vmul.f32 %v4760, %v5016
        %v5049 = vmul.f32 %v4761, %v5017
        %v5050 = vmul.f32 %v4762, %v5018
        %v5051 = vmul.f32 %v4763, %v5019
        %v5052 = vmul.f32 %v4764, %v5020
        %v5053 = vmul.f32 %v4765, %v5021
        %v5054 = vmul.f32 %v4766, %v5022
        %v5055 = vsub.f32 0.0, %v4639
        %v5056 = vsub.f32 0.0, %v4640
        %v5057 = vsub.f32 0.0, %v4641
        %v5058 = vsub.f32 0.0, %v4642
        %v5059 = vsub.f32 0.0, %v4643
        %v5060 = vsub.f32 0.0, %v4644
        %v5061 = vsub.f32 0.0, %v4645
        %v5062 = vsub.f32 0.0, %v4646
        %v5063 = vsub.f32 0.0, %v4647
        %v5064 = vsub.f32 0.0, %v4648
        %v5065 = vsub.f32 0.0, %v4649
        %v5066 = vsub.f32 0.0, %v4650
        %v5067 = vsub.f32 0.0, %v4651
        %v5068 = vsub.f32 0.0, %v4652
        %v5069 = vsub.f32 0.0, %v4653
        %v5070 = vsub.f32 0.0, %v4654
        %v5071 = vsub.f32 0.0, %v4655
        %v5072 = vsub.f32 0.0, %v4656
        %v5073 = vsub.f32 0.0, %v4657
        %v5074 = vsub.f32 0.0, %v4658
        %v5075 = vsub.f32 0.0, %v4659
        %v5076 = vsub.f32 0.0, %v4660
        %v5077 = vsub.f32 0.0, %v4661
        %v5078 = vsub.f32 0.0, %v4662
        %v5079 = vsub.f32 0.0, %v4663
        %v5080 = vsub.f32 0.0, %v4664
        %v5081 = vsub.f32 0.0, %v4665
        %v5082 = vsub.f32 0.0, %v4666
        %v5083 = vsub.f32 0.0, %v4667
        %v5084 = vsub.f32 0.0, %v4668
        %v5085 = vsub.f32 0.0, %v4669
        %v5086 = vsub.f32 0.0, %v4670
        %v5087 = vmul.f32 %v5055, %v4639
        %v5088 = vmul.f32 %v5056, %v4640
        %v5089 = vmul.f32 %v5057, %v4641
        %v5090 = vmul.f32 %v5058, %v4642
        %v5091 = vmul.f32 %v5059, %v4643
        %v5092 = vmul.f32 %v5060, %v4644
        %v5093 = vmul.f32 %v5061, %v4645
        %v5094 = vmul.f32 %v5062, %v4646
        %v5095 = vmul.f32 %v5063, %v4647
        %v5096 = vmul.f32 %v5064, %v4648
        %v5097 = vmul.f32 %v5065, %v4649
        %v5098 = vmul.f32 %v5066, %v4650
        %v5099 = vmul.f32 %v5067, %v4651
        %v5100 = vmul.f32 %v5068, %v4652
        %v5101 = vmul.f32 %v5069, %v4653
        %v5102 = vmul.f32 %v5070, %v4654
        %v5103 = vmul.f32 %v5071, %v4655
        %v5104 = vmul.f32 %v5072, %v4656
        %v5105 = vmul.f32 %v5073, %v4657
        %v5106 = vmul.f32 %v5074, %v4658
        %v5107 = vmul.f32 %v5075, %v4659
        %v5108 = vmul.f32 %v5076, %v4660
        %v5109 = vmul.f32 %v5077, %v4661
        %v5110 = vmul.f32 %v5078, %v4662
        %v5111 = vmul.f32 %v5079, %v4663
        %v5112 = vmul.f32 %v5080, %v4664
        %v5113 = vmul.f32 %v5081, %v4665
        %v5114 = vmul.f32 %v5082, %v4666
        %v5115 = vmul.f32 %v5083, %v4667
        %v5116 = vmul.f32 %v5084, %v4668
        %v5117 = vmul.f32 %v5085, %v4669
        %v5118 = vmul.f32 %v5086, %v4670
        %v5119 = vmul.f32 %v5087, 1.442695
        %v5120 = vpow.pop %v5119
        %v5121 = vmul.f32 %v5088, 1.442695
        %v5122 = vpow.pop %v5121
        %v5123 = vmul.f32 %v5089, 1.442695
        %v5124 = vpow.pop %v5123
        %v5125 = vmul.f32 %v5090, 1.442695
        %v5126 = vpow.pop %v5125
        %v5127 = vmul.f32 %v5091, 1.442695
        %v5128 = vpow.pop %v5127
        %v5129 = vmul.f32 %v5092, 1.442695
        %v5130 = vpow.pop %v5129
        %v5131 = vmul.f32 %v5093, 1.442695
        %v5132 = vpow.pop %v5131
        %v5133 = vmul.f32 %v5094, 1.442695
        %v5134 = vpow.pop %v5133
        %v5135 = vmul.f32 %v5095, 1.442695
        %v5136 = vpow.pop %v5135
        %v5137 = vmul.f32 %v5096, 1.442695
        %v5138 = vpow.pop %v5137
        %v5139 = vmul.f32 %v5097, 1.442695
        %v5140 = vpow.pop %v5139
        %v5141 = vmul.f32 %v5098, 1.442695
        %v5142 = vpow.pop %v5141
        %v5143 = vmul.f32 %v5099, 1.442695
        %v5144 = vpow.pop %v5143
        %v5145 = vmul.f32 %v5100, 1.442695
        %v5146 = vpow.pop %v5145
        %v5147 = vmul.f32 %v5101, 1.442695
        %v5148 = vpow.pop %v5147
        %v5149 = vmul.f32 %v5102, 1.442695
        %v5150 = vpow.pop %v5149
        %v5151 = vmul.f32 %v5103, 1.442695
        %v5152 = vpow.pop %v5151
        %v5153 = vmul.f32 %v5104, 1.442695
        %v5154 = vpow.pop %v5153
        %v5155 = vmul.f32 %v5105, 1.442695
        %v5156 = vpow.pop %v5155
        %v5157 = vmul.f32 %v5106, 1.442695
        %v5158 = vpow.pop %v5157
        %v5159 = vmul.f32 %v5107, 1.442695
        %v5160 = vpow.pop %v5159
        %v5161 = vmul.f32 %v5108, 1.442695
        %v5162 = vpow.pop %v5161
        %v5163 = vmul.f32 %v5109, 1.442695
        %v5164 = vpow.pop %v5163
        %v5165 = vmul.f32 %v5110, 1.442695
        %v5166 = vpow.pop %v5165
        %v5167 = vmul.f32 %v5111, 1.442695
        %v5168 = vpow.pop %v5167
        %v5169 = vmul.f32 %v5112, 1.442695
        %v5170 = vpow.pop %v5169
        %v5171 = vmul.f32 %v5113, 1.442695
        %v5172 = vpow.pop %v5171
        %v5173 = vmul.f32 %v5114, 1.442695
        %v5174 = vpow.pop %v5173
        %v5175 = vmul.f32 %v5115, 1.442695
        %v5176 = vpow.pop %v5175
        %v5177 = vmul.f32 %v5116, 1.442695
        %v5178 = vpow.pop %v5177
        %v5179 = vmul.f32 %v5117, 1.442695
        %v5180 = vpow.pop %v5179
        %v5181 = vmul.f32 %v5118, 1.442695
        %v5182 = vpow.pop %v5181
        %v5183 = vmul.f32 %v5023, %v5120
        %v5184 = vmul.f32 %v5024, %v5122
        %v5185 = vmul.f32 %v5025, %v5124
        %v5186 = vmul.f32 %v5026, %v5126
        %v5187 = vmul.f32 %v5027, %v5128
        %v5188 = vmul.f32 %v5028, %v5130
        %v5189 = vmul.f32 %v5029, %v5132
        %v5190 = vmul.f32 %v5030, %v5134
        %v5191 = vmul.f32 %v5031, %v5136
        %v5192 = vmul.f32 %v5032, %v5138
        %v5193 = vmul.f32 %v5033, %v5140
        %v5194 = vmul.f32 %v5034, %v5142
        %v5195 = vmul.f32 %v5035, %v5144
        %v5196 = vmul.f32 %v5036, %v5146
        %v5197 = vmul.f32 %v5037, %v5148
        %v5198 = vmul.f32 %v5038, %v5150
        %v5199 = vmul.f32 %v5039, %v5152
        %v5200 = vmul.f32 %v5040, %v5154
        %v5201 = vmul.f32 %v5041, %v5156
        %v5202 = vmul.f32 %v5042, %v5158
        %v5203 = vmul.f32 %v5043, %v5160
        %v5204 = vmul.f32 %v5044, %v5162
        %v5205 = vmul.f32 %v5045, %v5164
        %v5206 = vmul.f32 %v5046, %v5166
        %v5207 = vmul.f32 %v5047, %v5168
        %v5208 = vmul.f32 %v5048, %v5170
        %v5209 = vmul.f32 %v5049, %v5172
        %v5210 = vmul.f32 %v5050, %v5174
        %v5211 = vmul.f32 %v5051, %v5176
        %v5212 = vmul.f32 %v5052, %v5178
        %v5213 = vmul.f32 %v5053, %v5180
        %v5214 = vmul.f32 %v5054, %v5182
        %v5215 = vsub.f32 1.0, %v5183
        %v5216 = vsub.f32 1.0, %v5184
        %v5217 = vsub.f32 1.0, %v5185
        %v5218 = vsub.f32 1.0, %v5186
        %v5219 = vsub.f32 1.0, %v5187
        %v5220 = vsub.f32 1.0, %v5188
        %v5221 = vsub.f32 1.0, %v5189
        %v5222 = vsub.f32 1.0, %v5190
        %v5223 = vsub.f32 1.0, %v5191
        %v5224 = vsub.f32 1.0, %v5192
        %v5225 = vsub.f32 1.0, %v5193
        %v5226 = vsub.f32 1.0, %v5194
        %v5227 = vsub.f32 1.0, %v5195
        %v5228 = vsub.f32 1.0, %v5196
        %v5229 = vsub.f32 1.0, %v5197
        %v5230 = vsub.f32 1.0, %v5198
        %v5231 = vsub.f32 1.0, %v5199
        %v5232 = vsub.f32 1.0, %v5200
        %v5233 = vsub.f32 1.0, %v5201
        %v5234 = vsub.f32 1.0, %v5202
        %v5235 = vsub.f32 1.0, %v5203
        %v5236 = vsub.f32 1.0, %v5204
        %v5237 = vsub.f32 1.0, %v5205
        %v5238 = vsub.f32 1.0, %v5206
        %v5239 = vsub.f32 1.0, %v5207
        %v5240 = vsub.f32 1.0, %v5208
        %v5241 = vsub.f32 1.0, %v5209
        %v5242 = vsub.f32 1.0, %v5210
        %v5243 = vsub.f32 1.0, %v5211
        %v5244 = vsub.f32 1.0, %v5212
        %v5245 = vsub.f32 1.0, %v5213
        %v5246 = vsub.f32 1.0, %v5214
        %vm5247 = vcmp.ge.f32.partialorder %v4607, 0.0
        %vm5248 = vcmp.ge.f32.partialorder %v4608, 0.0
        %vm5249 = vcmp.ge.f32.partialorder %v4609, 0.0
        %vm5250 = vcmp.ge.f32.partialorder %v4610, 0.0
        %vm5251 = vcmp.ge.f32.partialorder %v4611, 0.0
        %vm5252 = vcmp.ge.f32.partialorder %v4612, 0.0
        %vm5253 = vcmp.ge.f32.partialorder %v4613, 0.0
        %vm5254 = vcmp.ge.f32.partialorder %v4614, 0.0
        %vm5255 = vcmp.ge.f32.partialorder %v4615, 0.0
        %vm5256 = vcmp.ge.f32.partialorder %v4616, 0.0
        %vm5257 = vcmp.ge.f32.partialorder %v4617, 0.0
        %vm5258 = vcmp.ge.f32.partialorder %v4618, 0.0
        %vm5259 = vcmp.ge.f32.partialorder %v4619, 0.0
        %vm5260 = vcmp.ge.f32.partialorder %v4620, 0.0
        %vm5261 = vcmp.ge.f32.partialorder %v4621, 0.0
        %vm5262 = vcmp.ge.f32.partialorder %v4622, 0.0
        %vm5263 = vcmp.ge.f32.partialorder %v4623, 0.0
        %vm5264 = vcmp.ge.f32.partialorder %v4624, 0.0
        %vm5265 = vcmp.ge.f32.partialorder %v4625, 0.0
        %vm5266 = vcmp.ge.f32.partialorder %v4626, 0.0
        %vm5267 = vcmp.ge.f32.partialorder %v4627, 0.0
        %vm5268 = vcmp.ge.f32.partialorder %v4628, 0.0
        %vm5269 = vcmp.ge.f32.partialorder %v4629, 0.0
        %vm5270 = vcmp.ge.f32.partialorder %v4630, 0.0
        %vm5271 = vcmp.ge.f32.partialorder %v4631, 0.0
        %vm5272 = vcmp.ge.f32.partialorder %v4632, 0.0
        %vm5273 = vcmp.ge.f32.partialorder %v4633, 0.0
        %vm5274 = vcmp.ge.f32.partialorder %v4634, 0.0
        %vm5275 = vcmp.ge.f32.partialorder %v4635, 0.0
        %vm5276 = vcmp.ge.f32.partialorder %v4636, 0.0
        %vm5277 = vcmp.ge.f32.partialorder %v4637, 0.0
        %vm5278 = vcmp.ge.f32.partialorder %v4638, 0.0
        %v5279 = vsub.f32 0.0, %v5215
        %v5280 = vsub.f32 0.0, %v5216
        %v5281 = vsub.f32 0.0, %v5217
        %v5282 = vsub.f32 0.0, %v5218
        %v5283 = vsub.f32 0.0, %v5219
        %v5284 = vsub.f32 0.0, %v5220
        %v5285 = vsub.f32 0.0, %v5221
        %v5286 = vsub.f32 0.0, %v5222
        %v5287 = vsub.f32 0.0, %v5223
        %v5288 = vsub.f32 0.0, %v5224
        %v5289 = vsub.f32 0.0, %v5225
        %v5290 = vsub.f32 0.0, %v5226
        %v5291 = vsub.f32 0.0, %v5227
        %v5292 = vsub.f32 0.0, %v5228
        %v5293 = vsub.f32 0.0, %v5229
        %v5294 = vsub.f32 0.0, %v5230
        %v5295 = vsub.f32 0.0, %v5231
        %v5296 = vsub.f32 0.0, %v5232
        %v5297 = vsub.f32 0.0, %v5233
        %v5298 = vsub.f32 0.0, %v5234
        %v5299 = vsub.f32 0.0, %v5235
        %v5300 = vsub.f32 0.0, %v5236
        %v5301 = vsub.f32 0.0, %v5237
        %v5302 = vsub.f32 0.0, %v5238
        %v5303 = vsub.f32 0.0, %v5239
        %v5304 = vsub.f32 0.0, %v5240
        %v5305 = vsub.f32 0.0, %v5241
        %v5306 = vsub.f32 0.0, %v5242
        %v5307 = vsub.f32 0.0, %v5243
        %v5308 = vsub.f32 0.0, %v5244
        %v5309 = vsub.f32 0.0, %v5245
        %v5310 = vsub.f32 0.0, %v5246
        %v5311 = vsel %vm5247, %v5215, %v5279
        %v5312 = vsel %vm5248, %v5216, %v5280
        %v5313 = vsel %vm5249, %v5217, %v5281
        %v5314 = vsel %vm5250, %v5218, %v5282
        %v5315 = vsel %vm5251, %v5219, %v5283
        %v5316 = vsel %vm5252, %v5220, %v5284
        %v5317 = vsel %vm5253, %v5221, %v5285
        %v5318 = vsel %vm5254, %v5222, %v5286
        %v5319 = vsel %vm5255, %v5223, %v5287
        %v5320 = vsel %vm5256, %v5224, %v5288
        %v5321 = vsel %vm5257, %v5225, %v5289
        %v5322 = vsel %vm5258, %v5226, %v5290
        %v5323 = vsel %vm5259, %v5227, %v5291
        %v5324 = vsel %vm5260, %v5228, %v5292
        %v5325 = vsel %vm5261, %v5229, %v5293
        %v5326 = vsel %vm5262, %v5230, %v5294
        %v5327 = vsel %vm5263, %v5231, %v5295
        %v5328 = vsel %vm5264, %v5232, %v5296
        %v5329 = vsel %vm5265, %v5233, %v5297
        %v5330 = vsel %vm5266, %v5234, %v5298
        %v5331 = vsel %vm5267, %v5235, %v5299
        %v5332 = vsel %vm5268, %v5236, %v5300
        %v5333 = vsel %vm5269, %v5237, %v5301
        %v5334 = vsel %vm5270, %v5238, %v5302
        %v5335 = vsel %vm5271, %v5239, %v5303
        %v5336 = vsel %vm5272, %v5240, %v5304
        %v5337 = vsel %vm5273, %v5241, %v5305
        %v5338 = vsel %vm5274, %v5242, %v5306
        %v5339 = vsel %vm5275, %v5243, %v5307
        %v5340 = vsel %vm5276, %v5244, %v5308
        %v5341 = vsel %vm5277, %v5245, %v5309
        %v5342 = vsel %vm5278, %v5246, %v5310
        %v5343 = vmul.f32 %v4519, 0.5
        %v5344 = vmul.f32 %v4568, 0.5
        %v5345 = vmul.f32 %v4521, 0.5
        %v5346 = vmul.f32 %v4570, 0.5
        %v5347 = vmul.f32 %v4524, 0.5
        %v5348 = vmul.f32 %v4573, 0.5
        %v5349 = vmul.f32 %v4526, 0.5
        %v5350 = vmul.f32 %v4575, 0.5
        %v5351 = vmul.f32 %v4529, 0.5
        %v5352 = vmul.f32 %v4578, 0.5
        %v5353 = vmul.f32 %v4531, 0.5
        %v5354 = vmul.f32 %v4580, 0.5
        %v5355 = vmul.f32 %v4534, 0.5
        %v5356 = vmul.f32 %v4583, 0.5
        %v5357 = vmul.f32 %v4536, 0.5
        %v5358 = vmul.f32 %v4585, 0.5
        %v5359 = vmul.f32 %v4539, 0.5
        %v5360 = vmul.f32 %v4588, 0.5
        %v5361 = vmul.f32 %v4541, 0.5
        %v5362 = vmul.f32 %v4590, 0.5
        %v5363 = vmul.f32 %v4544, 0.5
        %v5364 = vmul.f32 %v4593, 0.5
        %v5365 = vmul.f32 %v4546, 0.5
        %v5366 = vmul.f32 %v4595, 0.5
        %v5367 = vmul.f32 %v4549, 0.5
        %v5368 = vmul.f32 %v4598, 0.5
        %v5369 = vmul.f32 %v4551, 0.5
        %v5370 = vmul.f32 %v4600, 0.5
        %v5371 = vmul.f32 %v4554, 0.5
        %v5372 = vmul.f32 %v4603, 0.5
        %v5373 = vmul.f32 %v4556, 0.5
        %v5374 = vmul.f32 %v4605, 0.5
        %v5375 = vadd.f32 %v5311, 1.0
        %v5376 = vadd.f32 %v5312, 1.0
        %v5377 = vadd.f32 %v5313, 1.0
        %v5378 = vadd.f32 %v5314, 1.0
        %v5379 = vadd.f32 %v5315, 1.0
        %v5380 = vadd.f32 %v5316, 1.0
        %v5381 = vadd.f32 %v5317, 1.0
        %v5382 = vadd.f32 %v5318, 1.0
        %v5383 = vadd.f32 %v5319, 1.0
        %v5384 = vadd.f32 %v5320, 1.0
        %v5385 = vadd.f32 %v5321, 1.0
        %v5386 = vadd.f32 %v5322, 1.0
        %v5387 = vadd.f32 %v5323, 1.0
        %v5388 = vadd.f32 %v5324, 1.0
        %v5389 = vadd.f32 %v5325, 1.0
        %v5390 = vadd.f32 %v5326, 1.0
        %v5391 = vadd.f32 %v5327, 1.0
        %v5392 = vadd.f32 %v5328, 1.0
        %v5393 = vadd.f32 %v5329, 1.0
        %v5394 = vadd.f32 %v5330, 1.0
        %v5395 = vadd.f32 %v5331, 1.0
        %v5396 = vadd.f32 %v5332, 1.0
        %v5397 = vadd.f32 %v5333, 1.0
        %v5398 = vadd.f32 %v5334, 1.0
        %v5399 = vadd.f32 %v5335, 1.0
        %v5400 = vadd.f32 %v5336, 1.0
        %v5401 = vadd.f32 %v5337, 1.0
        %v5402 = vadd.f32 %v5338, 1.0
        %v5403 = vadd.f32 %v5339, 1.0
        %v5404 = vadd.f32 %v5340, 1.0
        %v5405 = vadd.f32 %v5341, 1.0
        %v5406 = vadd.f32 %v5342, 1.0
        %v5407 = vmul.f32 %v5343, %v5375
        %v5408 = vmul.f32 %v5344, %v5376
        %v5409 = vmul.f32 %v5345, %v5377
        %v5410 = vmul.f32 %v5346, %v5378
        %v5411 = vmul.f32 %v5347, %v5379
        %v5412 = vmul.f32 %v5348, %v5380
        %v5413 = vmul.f32 %v5349, %v5381
        %v5414 = vmul.f32 %v5350, %v5382
        %v5415 = vmul.f32 %v5351, %v5383
        %v5416 = vmul.f32 %v5352, %v5384
        %v5417 = vmul.f32 %v5353, %v5385
        %v5418 = vmul.f32 %v5354, %v5386
        %v5419 = vmul.f32 %v5355, %v5387
        %v5420 = vmul.f32 %v5356, %v5388
        %v5421 = vmul.f32 %v5357, %v5389
        %v5422 = vmul.f32 %v5358, %v5390
        %v5423 = vmul.f32 %v5359, %v5391
        %v5424 = vmul.f32 %v5360, %v5392
        %v5425 = vmul.f32 %v5361, %v5393
        %v5426 = vmul.f32 %v5362, %v5394
        %v5427 = vmul.f32 %v5363, %v5395
        %v5428 = vmul.f32 %v5364, %v5396
        %v5429 = vmul.f32 %v5365, %v5397
        %v5430 = vmul.f32 %v5366, %v5398
        %v5431 = vmul.f32 %v5367, %v5399
        %v5432 = vmul.f32 %v5368, %v5400
        %v5433 = vmul.f32 %v5369, %v5401
        %v5434 = vmul.f32 %v5370, %v5402
        %v5435 = vmul.f32 %v5371, %v5403
        %v5436 = vmul.f32 %v5372, %v5404
        %v5437 = vmul.f32 %v5373, %v5405
        %v5438 = vmul.f32 %v5374, %v5406
        %v5439 = vpack.c.bf16 %v5409, %v5407
        %v5440 = vpack.c.bf16 %v5410, %v5408
        %v5441 = vpack.c.bf16 %v5413, %v5411
        %v5442 = vpack.c.bf16 %v5414, %v5412
        %v5443 = vpack.c.bf16 %v5417, %v5415
        %v5444 = vpack.c.bf16 %v5418, %v5416
        %v5445 = vpack.c.bf16 %v5421, %v5419
        %v5446 = vpack.c.bf16 %v5422, %v5420
        %v5447 = vpack.c.bf16 %v5425, %v5423
        %v5448 = vpack.c.bf16 %v5426, %v5424
        %v5449 = vpack.c.bf16 %v5429, %v5427
        %v5450 = vpack.c.bf16 %v5430, %v5428
        %v5451 = vpack.c.bf16 %v5433, %v5431
        %v5452 = vpack.c.bf16 %v5434, %v5432
        %v5453 = vpack.c.bf16 %v5437, %v5435
        %v5454 = vpack.c.bf16 %v5438, %v5436
        %s5455 = smul.addr %s4402, 4
        %s5456 = scalar_lea.vmem [#allocation13], %s5455
        %v5457 = vld [vmem:[%s5456] sm:$0xf]
        %v5458 = vld [vmem:[%s5456 + $0x4] sm:$0xf]
        %v5459 = vld [vmem:[%s5456 + $0x8] sm:$0xf]
        %v5460 = vld [vmem:[%s5456 + $0xc] sm:$0xf]
        %v5461 = vld [vmem:[%s5456 + $0x10] sm:$0xf]
        %v5462 = vld [vmem:[%s5456 + $0x14] sm:$0xf]
        %v5463 = vld [vmem:[%s5456 + $0x18] sm:$0xf]
        %v5464 = vld [vmem:[%s5456 + $0x1c] sm:$0xf]
        %v5465 = vld [vmem:[%s5456 + $0x20] sm:$0xf]
        %v5466 = vld [vmem:[%s5456 + $0x24] sm:$0xf]
        %v5467 = vld [vmem:[%s5456 + $0x28] sm:$0xf]
        %v5468 = vld [vmem:[%s5456 + $0x2c] sm:$0xf]
        %v5469 = vld [vmem:[%s5456 + $0x30] sm:$0xf]
        %v5470 = vld [vmem:[%s5456 + $0x34] sm:$0xf]
        %v5471 = vld [vmem:[%s5456 + $0x38] sm:$0xf]
        %v5472 = vld [vmem:[%s5456 + $0x3c] sm:$0xf]
        %v5473 = vld [vmem:[%s5456 + $0x40] sm:$0xf]
        %v5474 = vld [vmem:[%s5456 + $0x44] sm:$0xf]
        %v5475 = vld [vmem:[%s5456 + $0x48] sm:$0xf]
        %v5476 = vld [vmem:[%s5456 + $0x4c] sm:$0xf]
        %v5477 = vld [vmem:[%s5456 + $0x50] sm:$0xf]
        %v5478 = vld [vmem:[%s5456 + $0x54] sm:$0xf]
        %v5479 = vld [vmem:[%s5456 + $0x58] sm:$0xf]
        %v5480 = vld [vmem:[%s5456 + $0x5c] sm:$0xf]
        %v5481 = vld [vmem:[%s5456 + $0x60] sm:$0xf]
        %v5482 = vld [vmem:[%s5456 + $0x64] sm:$0xf]
        %v5483 = vld [vmem:[%s5456 + $0x68] sm:$0xf]
        %v5484 = vld [vmem:[%s5456 + $0x6c] sm:$0xf]
        %v5485 = vld [vmem:[%s5456 + $0x70] sm:$0xf]
        %v5486 = vld [vmem:[%s5456 + $0x74] sm:$0xf]
        %v5487 = vld [vmem:[%s5456 + $0x78] sm:$0xf]
        %v5488 = vld [vmem:[%s5456 + $0x7c] sm:$0xf]
        %s5489 = scalar_lea.vmem [#allocation14], %s42
        %v5490 = vld [vmem:[%s5489] sm:$0x1]
        %v5492 = vperm.slane %v5490, 0
        %v5526 = vunpack.c.l.b16 %v5457
        %v5527 = vunpack.c.l.b16 %v5458
        %v5528 = vunpack.c.l.b16 %v5459
        %v5529 = vunpack.c.l.b16 %v5460
        %v5530 = vunpack.c.l.b16 %v5461
        %v5531 = vunpack.c.l.b16 %v5462
        %v5532 = vunpack.c.l.b16 %v5463
        %v5533 = vunpack.c.l.b16 %v5464
        %v5534 = vunpack.c.l.b16 %v5465
        %v5535 = vunpack.c.l.b16 %v5466
        %v5536 = vunpack.c.l.b16 %v5467
        %v5537 = vunpack.c.l.b16 %v5468
        %v5538 = vunpack.c.l.b16 %v5469
        %v5539 = vunpack.c.l.b16 %v5470
        %v5540 = vunpack.c.l.b16 %v5471
        %v5541 = vunpack.c.l.b16 %v5472
        %v5542 = vunpack.c.l.b16 %v5473
        %v5543 = vunpack.c.l.b16 %v5474
        %v5544 = vunpack.c.l.b16 %v5475
        %v5545 = vunpack.c.l.b16 %v5476
        %v5546 = vunpack.c.l.b16 %v5477
        %v5547 = vunpack.c.l.b16 %v5478
        %v5548 = vunpack.c.l.b16 %v5479
        %v5549 = vunpack.c.l.b16 %v5480
        %v5550 = vunpack.c.l.b16 %v5481
        %v5551 = vunpack.c.l.b16 %v5482
        %v5552 = vunpack.c.l.b16 %v5483
        %v5553 = vunpack.c.l.b16 %v5484
        %v5554 = vunpack.c.l.b16 %v5485
        %v5555 = vunpack.c.l.b16 %v5486
        %v5556 = vunpack.c.l.b16 %v5487
        %v5557 = vunpack.c.l.b16 %v5488
        %v5558 = vpack.c.b16 %v5527, %v5526
        %v5559 = vpack.c.b16 %v5529, %v5528
        %v5560 = vpack.c.b16 %v5531, %v5530
        %v5561 = vpack.c.b16 %v5533, %v5532
        %v5562 = vpack.c.b16 %v5535, %v5534
        %v5563 = vpack.c.b16 %v5537, %v5536
        %v5564 = vpack.c.b16 %v5539, %v5538
        %v5565 = vpack.c.b16 %v5541, %v5540
        %v5566 = vpack.c.b16 %v5543, %v5542
        %v5567 = vpack.c.b16 %v5545, %v5544
        %v5568 = vpack.c.b16 %v5547, %v5546
        %v5569 = vpack.c.b16 %v5549, %v5548
        %v5570 = vpack.c.b16 %v5551, %v5550
        %v5571 = vpack.c.b16 %v5553, %v5552
        %v5572 = vpack.c.b16 %v5555, %v5554
        %v5573 = vpack.c.b16 %v5557, %v5556
        %5590 = vmatpush.bf16.msra.mxu0 %v5565
        %5591 = vmatpush.bf16.msra.mxu0 %v5564
        %5592 = vmatpush.bf16.msra.mxu0 %v5563
        %5593 = vmatpush.bf16.msra.mxu0 %v5562
        %5594 = vmatpush.bf16.msra.mxu0 %v5561
        %5595 = vmatpush.bf16.msra.mxu0 %v5560
        %5596 = vmatpush.bf16.msra.mxu0 %v5559
        %5597 = vmatpush.bf16.msra.mxu0 %v5558
        %5598 = vmatmul.bf16.gmra.mxu0 %v5439
        %v5599 = vpop.f32.mrf.mxu0
        %v5600 = vadd.f32 %v5492, %v5599
        %v5601 = vpop.f32.mrf.mxu0
        %v5602 = vadd.f32 %v5492, %v5601
        %5603 = vmatmul.bf16.gmra.mxu0 %v5441
        %v5604 = vpop.f32.mrf.mxu0
        %v5605 = vadd.f32 %v5492, %v5604
        %v5606 = vpop.f32.mrf.mxu0
        %v5607 = vadd.f32 %v5492, %v5606
        %5608 = vmatmul.bf16.gmra.mxu0 %v5443
        %v5609 = vpop.f32.mrf.mxu0
        %v5610 = vadd.f32 %v5492, %v5609
        %v5611 = vpop.f32.mrf.mxu0
        %v5612 = vadd.f32 %v5492, %v5611
        %5613 = vmatmul.bf16.gmra.mxu0 %v5445
        %v5614 = vpop.f32.mrf.mxu0
        %v5615 = vadd.f32 %v5492, %v5614
        %v5616 = vpop.f32.mrf.mxu0
        %v5617 = vadd.f32 %v5492, %v5616
        %5618 = vmatmul.bf16.gmra.mxu0 %v5447
        %v5619 = vpop.f32.mrf.mxu0
        %v5620 = vadd.f32 %v5492, %v5619
        %v5621 = vpop.f32.mrf.mxu0
        %v5622 = vadd.f32 %v5492, %v5621
        %5623 = vmatmul.bf16.gmra.mxu0 %v5449
        %v5624 = vpop.f32.mrf.mxu0
        %v5625 = vadd.f32 %v5492, %v5624
        %v5626 = vpop.f32.mrf.mxu0
        %v5627 = vadd.f32 %v5492, %v5626
        %5628 = vmatmul.bf16.gmra.mxu0 %v5451
        %v5629 = vpop.f32.mrf.mxu0
        %v5630 = vadd.f32 %v5492, %v5629
        %v5631 = vpop.f32.mrf.mxu0
        %v5632 = vadd.f32 %v5492, %v5631
        %5633 = vmatmul.bf16.gmra.mxu0 %v5453
        %v5634 = vpop.f32.mrf.mxu0
        %v5635 = vadd.f32 %v5492, %v5634
        %v5636 = vpop.f32.mrf.mxu0
        %v5637 = vadd.f32 %v5492, %v5636
        %5638 = vdwg.mxu0
        %5639 = vmatpush.bf16.msra.mxu0 %v5573
        %5640 = vmatpush.bf16.msra.mxu0 %v5572
        %5641 = vmatpush.bf16.msra.mxu0 %v5571
        %5642 = vmatpush.bf16.msra.mxu0 %v5570
        %5643 = vmatpush.bf16.msra.mxu0 %v5569
        %5644 = vmatpush.bf16.msra.mxu0 %v5568
        %5645 = vmatpush.bf16.msra.mxu0 %v5567
        %5646 = vmatpush.bf16.msra.mxu0 %v5566
        %5647 = vmatmul.bf16.gmra.mxu0 %v5440
        %v5648 = vpop.f32.mrf.mxu0
        %v5649 = vadd.f32 %v5600, %v5648
        %v5650 = vpop.f32.mrf.mxu0
        %v5651 = vadd.f32 %v5602, %v5650
        %5652 = vmatmul.bf16.gmra.mxu0 %v5442
        %v5653 = vpop.f32.mrf.mxu0
        %v5654 = vadd.f32 %v5605, %v5653
        %v5655 = vpop.f32.mrf.mxu0
        %v5656 = vadd.f32 %v5607, %v5655
        %5657 = vmatmul.bf16.gmra.mxu0 %v5444
        %v5658 = vpop.f32.mrf.mxu0
        %v5659 = vadd.f32 %v5610, %v5658
        %v5660 = vpop.f32.mrf.mxu0
        %v5661 = vadd.f32 %v5612, %v5660
        %5662 = vmatmul.bf16.gmra.mxu0 %v5446
        %v5663 = vpop.f32.mrf.mxu0
        %v5664 = vadd.f32 %v5615, %v5663
        %v5665 = vpop.f32.mrf.mxu0
        %v5666 = vadd.f32 %v5617, %v5665
        %5667 = vmatmul.bf16.gmra.mxu0 %v5448
        %v5668 = vpop.f32.mrf.mxu0
        %v5669 = vadd.f32 %v5620, %v5668
        %v5670 = vpop.f32.mrf.mxu0
        %v5671 = vadd.f32 %v5622, %v5670
        %5672 = vmatmul.bf16.gmra.mxu0 %v5450
        %v5673 = vpop.f32.mrf.mxu0
        %v5674 = vadd.f32 %v5625, %v5673
        %v5675 = vpop.f32.mrf.mxu0
        %v5676 = vadd.f32 %v5627, %v5675
        %5677 = vmatmul.bf16.gmra.mxu0 %v5452
        %v5678 = vpop.f32.mrf.mxu0
        %v5679 = vadd.f32 %v5630, %v5678
        %v5680 = vpop.f32.mrf.mxu0
        %v5681 = vadd.f32 %v5632, %v5680
        %5682 = vmatmul.bf16.gmra.mxu0 %v5454
        %v5683 = vpop.f32.mrf.mxu0
        %v5684 = vadd.f32 %v5635, %v5683
        %v5685 = vpop.f32.mrf.mxu0
        %v5686 = vadd.f32 %v5637, %v5685
        %5687 = vdwg.mxu0
        %v5688 = vadd.f32 %v5649, %v4016
        %v5689 = vadd.f32 %v5651, %v4017
        %v5690 = vadd.f32 %v5654, %v4018
        %v5691 = vadd.f32 %v5656, %v4019
        %v5692 = vadd.f32 %v5659, %v4020
        %v5693 = vadd.f32 %v5661, %v4021
        %v5694 = vadd.f32 %v5664, %v4022
        %v5695 = vadd.f32 %v5666, %v4023
        %v5696 = vadd.f32 %v5669, %v4024
        %v5697 = vadd.f32 %v5671, %v4025
        %v5698 = vadd.f32 %v5674, %v4026
        %v5699 = vadd.f32 %v5676, %v4027
        %v5700 = vadd.f32 %v5679, %v4028
        %v5701 = vadd.f32 %v5681, %v4029
        %v5702 = vadd.f32 %v5684, %v4030
        %v5703 = vadd.f32 %v5686, %v4031
        %p5704 = scmp.lt.s32.totalorder %s42, 1
        // Predicated region
        $region113: #{transformer_forward.1} parent=67 // pred_check
          %p5705 = pneg %p5704
        $region114: #{transformer_forward.1} parent=67 // pred_check_branch
          %5707 = sbr.rel (%p5705) target = $region116
        $region115: #{transformer_forward.1} parent=67 // pred_region
          %5708 = vst [vmem:[#allocation2] sm:$0xff] %v5688
          %5709 = vst [vmem:[#allocation2 + $0x8] sm:$0xff] %v5689
          %5710 = vst [vmem:[#allocation2 + $0x10] sm:$0xff] %v5690
          %5711 = vst [vmem:[#allocation2 + $0x18] sm:$0xff] %v5691
          %5712 = vst [vmem:[#allocation2 + $0x20] sm:$0xff] %v5692
          %5713 = vst [vmem:[#allocation2 + $0x28] sm:$0xff] %v5693
          %5714 = vst [vmem:[#allocation2 + $0x30] sm:$0xff] %v5694
          %5715 = vst [vmem:[#allocation2 + $0x38] sm:$0xff] %v5695
          %5716 = vst [vmem:[#allocation2 + $0x40] sm:$0xff] %v5696
          %5717 = vst [vmem:[#allocation2 + $0x48] sm:$0xff] %v5697
          %5718 = vst [vmem:[#allocation2 + $0x50] sm:$0xff] %v5698
          %5719 = vst [vmem:[#allocation2 + $0x58] sm:$0xff] %v5699
          %5720 = vst [vmem:[#allocation2 + $0x60] sm:$0xff] %v5700
          %5721 = vst [vmem:[#allocation2 + $0x68] sm:$0xff] %v5701
          %5722 = vst [vmem:[#allocation2 + $0x70] sm:$0xff] %v5702
          %5723 = vst [vmem:[#allocation2 + $0x78] sm:$0xff] %v5703
        $region116: #{transformer_forward.1} parent=67 // pred_fallthru
          _
        // Predicated region
        $region117: #{transformer_forward.1} parent=67 // pred_check
          %p5724 = pneg %p1756
        $region118: #{transformer_forward.1} parent=67 // pred_check_branch
          %5726 = sbr.rel (%p5724) target = $region120
        $region119: #{transformer_forward.1} parent=67 // pred_region
          %5727 = vst [vmem:[%s559] sm:$0xff] %v5688
          %5728 = vst [vmem:[%s559 + $0x8] sm:$0xff] %v5689
          %5729 = vst [vmem:[%s559 + $0x10] sm:$0xff] %v5690
          %5730 = vst [vmem:[%s559 + $0x18] sm:$0xff] %v5691
          %5731 = vst [vmem:[%s559 + $0x20] sm:$0xff] %v5692
          %5732 = vst [vmem:[%s559 + $0x28] sm:$0xff] %v5693
          %5733 = vst [vmem:[%s559 + $0x30] sm:$0xff] %v5694
          %5734 = vst [vmem:[%s559 + $0x38] sm:$0xff] %v5695
          %5735 = vst [vmem:[%s559 + $0x40] sm:$0xff] %v5696
          %5736 = vst [vmem:[%s559 + $0x48] sm:$0xff] %v5697
          %5737 = vst [vmem:[%s559 + $0x50] sm:$0xff] %v5698
          %5738 = vst [vmem:[%s559 + $0x58] sm:$0xff] %v5699
          %5739 = vst [vmem:[%s559 + $0x60] sm:$0xff] %v5700
          %5740 = vst [vmem:[%s559 + $0x68] sm:$0xff] %v5701
          %5741 = vst [vmem:[%s559 + $0x70] sm:$0xff] %v5702
          %5742 = vst [vmem:[%s559 + $0x78] sm:$0xff] %v5703
        $region120: #{transformer_forward.1} parent=67 // pred_fallthru
          _
        %s5743 = sand.u32 %s314, 1
        %s5744 = scalar_lea.sflag [#allocation7], %s5743
        %s5745 = sand.u32 %s314, 1
        %s5746 = smul.addr %s5745, 128
        %s5747 = scalar_lea.vmem [#allocation16], %s5746
        %s5748 = sand.u32 %s340, 1
        %s5749 = scalar_lea.sflag [#allocation18], %s5748
        %s5750 = sand.u32 %s340, 1
        %s5751 = smul.addr %s5750, 512
        %s5752 = scalar_lea.vmem [#allocation17], %s5751
        // Predicated region
        $region121: #{transformer_forward.1} parent=67 // pred_check
          %p5753 = pneg %p324
        $region122: #{transformer_forward.1} parent=67 // pred_check_branch
          %5755 = sbr.rel (%p5753) target = $region124
        $region123: #{transformer_forward.1} parent=67 // pred_region
          %5757 = vsyncadd %s5744, 0
          %s5758 = smul.addr %s41, 16
          %s5759 = smul.addr %s5758, 8
          %s5760 = scalar_lea.hbm %s12, %s5759
          %s5761 = sshll.u32 %s5747, 4
          %s5762 = int_to_ptr.vmem [resolvable:$true] %s5761
          %s5763 = sshll.u32 %s5760, 4
          %s5764 = int_to_ptr.hbm [resolvable:$true] %s5763
          %5769 = dma.vmem_to_hbm [thread:$0]  %s5762, 2048, %s5764, %s5744, 128, 128, 8
        $region124: #{transformer_forward.1} parent=67 // pred_fallthru
          _
        // Predicated region
        $region125: #{transformer_forward.1} parent=67 // pred_check
          %p5770 = pneg %p350
        $region126: #{transformer_forward.1} parent=67 // pred_check_branch
          %5772 = sbr.rel (%p5770) target = $region128
        $region127: #{transformer_forward.1} parent=67 // pred_region
          %5774 = vsyncadd %s5749, 0
          %s5775 = smul.addr %s41, 64
          %s5776 = smul.addr %s5775, 8
          %s5777 = scalar_lea.hbm %s13, %s5776
          %s5778 = sshll.u32 %s5752, 4
          %s5779 = int_to_ptr.vmem [resolvable:$true] %s5778
          %s5780 = sshll.u32 %s5777, 4
          %s5781 = int_to_ptr.hbm [resolvable:$true] %s5780
          %5786 = dma.vmem_to_hbm [thread:$0]  %s5779, 8192, %s5781, %s5749, 128, 128, 8
        $region128: #{transformer_forward.1} parent=67 // pred_fallthru
          _
      $region68: #{transformer_forward.1} parent=5 // pred_fallthru
        _
      %p5787 = scmp.le.s32.totalorder 2, %s32
      // Predicated region
      $region129: #{transformer_forward.1} parent=5 // pred_check
        %p5788 = pneg %p5787
      $region130: #{transformer_forward.1} parent=5 // pred_check_branch
        %5790 = sbr.rel (%p5788) target = $region132
      $region131: #{transformer_forward.1} parent=5 // pred_region
        %s5791 = ssub.s32 %s32, 2
        // Predicated region
        $region133: #{transformer_forward.1} parent=131 // pred_check
          %p5792 = pneg %p330
        $region134: #{transformer_forward.1} parent=131 // pred_check_branch
          %5794 = sbr.rel (%p5792) target = $region136
        $region135: #{transformer_forward.1} parent=131 // pred_region
          %s5795 = sand.u32 %s315, 1
          %s5796 = scalar_lea.sflag [#allocation7], %s5795
          %s5797 = sand.u32 %s315, 1
          %s5798 = smul.addr %s5797, 128
          %s5799 = scalar_lea.vmem [#allocation16], %s5798
          %5801 = dma.done %s5796, 2048
        $region136: #{transformer_forward.1} parent=131 // pred_fallthru
          _
        // Predicated region
        $region137: #{transformer_forward.1} parent=131 // pred_check
          %p5802 = pneg %p356
        $region138: #{transformer_forward.1} parent=131 // pred_check_branch
          %5804 = sbr.rel (%p5802) target = $region140
        $region139: #{transformer_forward.1} parent=131 // pred_region
          %s5805 = sand.u32 %s341, 1
          %s5806 = scalar_lea.sflag [#allocation18], %s5805
          %s5807 = sand.u32 %s341, 1
          %s5808 = smul.addr %s5807, 512
          %s5809 = scalar_lea.vmem [#allocation17], %s5808
          %5811 = dma.done %s5806, 8192
        $region140: #{transformer_forward.1} parent=131 // pred_fallthru
          _
      $region132: #{transformer_forward.1} parent=5 // pred_fallthru
        _
    $region6: #{transformer_forward.1} parent=1 // loop_footer
      %s36 = sadd.s32 1, %s32
    $region7: #{transformer_forward.1} parent=1 // loop_footer_branch
      %31 = sbr.rel target = $region3
    $region8: #{transformer_forward.1} parent=1 // loop_exit
      _
    %5812 = vsyncpa [#allocation6], 1
    %s5813 = scalar_lea.sflag [#allocation6], 1
    %5814 = vsyncpa %s5813, 1
    %5815 = vsyncpa [#allocation9], 1
    %5816 = vsyncpa [#allocation12], 1
    %5817 = vsyncpa [#allocation15], 1
    %5818 = vsyncpa [#allocation7], 1
    %s5819 = scalar_lea.sflag [#allocation7], 1
    %5820 = vsyncpa %s5819, 1
    %5821 = vsyncpa [#allocation18], 1
    %s5822 = scalar_lea.sflag [#allocation18], 1
    %5823 = vsyncpa %s5822, 1

</llo_original>
